<compile_context>
chip_gen: v7x
topology: tpu7x:2x2x1
jax: 0.10.0
libtpu: 0.0.40
codegen_flags: <defaults>
</compile_context>

<pallas_src>
import functools

import jax
import jax.numpy as jnp
import numpy as np
from jax.experimental import pallas as pl
from jax.experimental.pallas import tpu as pltpu

LANE = 128  # TPU lane width; feature / enhancement node lanes are padded to this


# --------------------------------------------------------------------------- #
# Kernel
# --------------------------------------------------------------------------- #
def bls_kernel(x_ref, we_ref, wsum_ref, wb_ref, wh_ref, whb_ref,
               wpy_ref, wpt_ref, pb_ref, out_ref, *, s, d):
    h = x_ref[...]                                        # (tm, D) bf16 raw rows

    # Feature-node matmul on the *raw* bf16 rows so the MXU push is issued
    # first.  Lane 0 of we_ref is an all-ones column, so raw[:, 0] == sum_j h_j
    # (f32 MXU accumulation) — the per-row normalization is applied afterwards
    # via the folded identity
    #     Hn @ We' = (H @ We') * rstd - (mu * rstd) * colsum(We')
    raw = jnp.dot(h, we_ref[...], preferred_element_type=jnp.float32)  # (tm, LANE)

    hf = h.astype(jnp.float32)
    s1 = raw[:, 0:1]                                      # (tm, 1) row sums (MXU)
    s2 = jnp.sum(hf * hf, axis=-1, keepdims=True)         # (tm, 1) f32 accumulation
    mu = s1 * (1.0 / d)
    var = (s2 - s1 * mu) * (1.0 / (d - 1))                # unbiased (torch.std)
    rstd = jax.lax.rsqrt(var)                             # EUP rsqrt

    # ps min/max rescale + H1 bias column are pre-folded into we_ref / wb_ref.
    y = (raw - mu * wsum_ref[...]) * rstd + wb_ref[...]   # (tm, LANE)
    y_bf = y.astype(jnp.bfloat16)

    # Enhancement nodes: T2 = tanh((H2 @ Wh) * (s / max(H2 @ Wh)))  (per row).
    # Padded columns carry a -1e30 bias so they never win the max; their tanh
    # output only ever hits zero rows of wpt_ref below.
    t2 = jnp.dot(y_bf, wh_ref[...],
                 preferred_element_type=jnp.float32) + whb_ref[...]
    l2 = s / jnp.max(t2, axis=-1, keepdims=True)          # exact divide, (tm, 1)
    t2 = jnp.tanh(t2 * l2)

    # predict(T3) with T3 = concat([y, T2], dim=1) split into two matmuls so no
    # in-kernel lane concatenation is needed.
    out = (jnp.dot(y_bf, wpy_ref[...], preferred_element_type=jnp.float32)
           + jnp.dot(t2.astype(jnp.bfloat16), wpt_ref[...],
                     preferred_element_type=jnp.float32)
           + pb_ref[...])
    out_ref[...] = out.astype(out_ref.dtype)


# --------------------------------------------------------------------------- #
# pallas_call wrapper
# --------------------------------------------------------------------------- #
def _bls_call(x_bf, params, tm, out_dtype):
    """One pallas_call over an (M, D) bf16 slab; M is a multiple of tm, or
    tm == M (single full block, exempt from the (8,128) tiling constraint)."""
    M, D = x_bf.shape
    out_dim = params["pb"].shape[1]
    lane = params["We"].shape[1]

    def resident(arr):
        # Full-array block at a constant block index: stays VMEM-resident.
        return pl.BlockSpec(arr.shape, lambda i: (0, 0))

    weight_bytes = sum(int(a.size) * a.dtype.itemsize
                       for a in (params["We"], params["We_colsum"],
                                 params["We_bias"], params["Wh"],
                                 params["Wh_bias"], params["Wp_y"],
                                 params["Wp_t2"], params["pb"]))
    cost = pl.CostEstimate(
        flops=int(2 * M * lane * (D + lane + 2 * out_dim)),
        transcendentals=int(M * (lane + 1)),              # tanh + rsqrt
        bytes_accessed=int(M * (D + out_dim) * 2 + weight_bytes),
    )

    kernel = functools.partial(bls_kernel, s=params["s"], d=D)

    return pl.pallas_call(
        kernel,
        out_shape=jax.ShapeDtypeStruct((M, out_dim), out_dtype),
        grid=(M // tm,),
        in_specs=[
            pl.BlockSpec((tm, D), lambda i: (i, 0)),      # x rows (streamed bf16)
            resident(params["We"]),                       # (D, LANE)    bf16
            resident(params["We_colsum"]),                # (1, LANE)    f32
            resident(params["We_bias"]),                  # (1, LANE)    f32
            resident(params["Wh"]),                       # (LANE, LANE) bf16
            resident(params["Wh_bias"]),                  # (1, LANE)    f32
            resident(params["Wp_y"]),                     # (LANE, out)  bf16
            resident(params["Wp_t2"]),                    # (LANE, out)  bf16
            resident(params["pb"]),                       # (1, out)     f32
        ],
        out_specs=pl.BlockSpec((tm, out_dim), lambda i: (i, 0)),
        compiler_params=pltpu.CompilerParams(
            # Row tiles are independent -> shard the grid across TensorCores.
            # TODO(synk): if "parallel" does not core-shard on v7x, switch to
            # pltpu.CORE_PARALLEL / an explicit leading core axis.
            dimension_semantics=("parallel",),
            # Explicit scoped-VMEM budget (fits v7x's 64 MiB with headroom;
            # peak usage at tm=512 is ~30 MiB including double buffering).
            vmem_limit_bytes=48 * 1024 * 1024,
        ),
        cost_estimate=cost,
    )(x_bf, params["We"], params["We_colsum"], params["We_bias"],
      params["Wh"], params["Wh_bias"],
      params["Wp_y"], params["Wp_t2"], params["pb"])


def bls_forward_rows(x_rows, params, *, tm_max=512, out_dtype=jnp.bfloat16):
    """Batched forward: x_rows is (M, D), one independent flattened sample per
    row.  Rows stream as bf16; weights are VMEM-resident bf16; output is bf16."""
    x_bf = x_rows.astype(jnp.bfloat16)
    M, _ = x_bf.shape

    if M < 32:
        # Small batch: single full-array block, grid of 1.
        return _bls_call(x_bf, params, tm=M, out_dtype=out_dtype)

    # >= 2 grid steps (feeds both v7x TensorCores), 16-row aligned (bf16
    # sublane packing), capped so bf16 I/O double buffers + f32 temporaries
    # stay well under v7x's 64 MiB VMEM.
    tm = min(tm_max, ((M // 2) // 16) * 16)
    m_main = (M // tm) * tm
    out = _bls_call(x_bf[:m_main], params, tm=tm, out_dtype=out_dtype)
    if m_main != M:
        # Remainder rows: one extra full-block call — no host-side padding copy.
        tail = _bls_call(x_bf[m_main:], params, tm=M - m_main, out_dtype=out_dtype)
        out = jnp.concatenate([out, tail], axis=0)
    return out


def bls_forward(x, params, **kw):
    """Module-semantics forward: x.view(1, -1) -> (1, product(x.shape))."""
    return bls_forward_rows(x.reshape(1, -1), params, **kw)


# --------------------------------------------------------------------------- #
# Pure-JAX reference (mirrors the PyTorch forward, per row) + parameters
# --------------------------------------------------------------------------- #
def bls_forward_ref_rows(x_rows, raw):
    H = x_rows.astype(jnp.float32)
    D = H.shape[1]
    mu = jnp.mean(H, axis=-1, keepdims=True)
    std = jnp.sqrt(jnp.sum((H - mu) ** 2, axis=-1, keepdims=True) / (D - 1))
    Hn = (H - mu) / std
    t1 = Hn @ raw["We"] + raw["We_bias"]
    y = (t1 - raw["ps_min"]) / (raw["ps_max"] - raw["ps_min"])
    t2 = y @ raw["Wh"] + raw["Wh_bias"]
    l2 = raw["s"] / jnp.max(t2, axis=-1, keepdims=True)
    t2 = jnp.tanh(t2 * l2)
    return y @ raw["Wp_y"] + t2 @ raw["Wp_t2"] + raw["pb"]


def make_raw_params(key, D, N1, N2, N3, output, s=0.8):
    """Deterministic synthetic parameters with the shapes the module implies."""
    NM = N1 * N2
    ks = jax.random.split(key, 6)
    # We[i]: (D+1, N1) stacked along columns -> (D+1, NM); last row = H1 bias.
    We_full = jax.random.normal(ks[0], (D + 1, NM), jnp.float32) * 0.05
    # ps: per-group (T1_min, T1_max), expanded to per-column vectors.
    pmin_g = -1.0 - jnp.abs(jax.random.normal(ks[1], (N2,), jnp.float32))
    pmax_g = 1.0 + jnp.abs(jax.random.normal(ks[2], (N2,), jnp.float32))
    # Wh: (NM + 1, N3); last row = H2 bias.
    Wh_full = jax.random.normal(ks[3], (NM + 1, N3), jnp.float32) * 0.3
    # predict = nn.Linear(NM + N3, output), stored transposed, split by T3 part.
    Wp = jax.random.normal(ks[4], (NM + N3, output), jnp.float32) * 0.1
    pb = jax.random.normal(ks[5], (1, output), jnp.float32) * 0.01
    return {
        "We": We_full[:D, :],
        "We_bias": We_full[D:, :],                         # (1, NM)
        "ps_min": jnp.repeat(pmin_g, N1).reshape(1, NM),
        "ps_max": jnp.repeat(pmax_g, N1).reshape(1, NM),
        "Wh": Wh_full[:NM, :],
        "Wh_bias": Wh_full[NM:, :],                        # (1, N3)
        "Wp_y": Wp[:NM, :],
        "Wp_t2": Wp[NM:, :],
        "pb": pb,
        "s": jnp.float32(s),
    }


def fold_params(raw, lane=LANE):
    """Host-side, one-time folding / lane-padding of the parameters."""
    D, NM = raw["We"].shape
    N3 = raw["Wh"].shape[1]
    out_dim = raw["pb"].shape[1]
    assert NM + 1 <= lane and N3 <= lane

    inv_range = 1.0 / (raw["ps_max"] - raw["ps_min"])              # (1, NM)
    we_fold = raw["We"] * inv_range                                # (D, NM)

    # Padded feature weights: lane 0 = all-ones (row-sum tap for mean/var),
    # lanes 1..NM = folded feature weights, lanes NM+1.. = zeros.
    we_p = jnp.zeros((D, lane), jnp.float32)
    we_p = we_p.at[:, 0].set(1.0)
    we_p = we_p.at[:, 1:NM + 1].set(we_fold)
    we_bf = we_p.astype(jnp.bfloat16)
    # Column sums of the *stored* bf16 weights so the in-kernel mean correction
    # matches exactly what the MXU multiplies against.
    we_colsum = jnp.sum(we_bf.astype(jnp.float32), axis=0, keepdims=True)

    we_bias = jnp.zeros((1, lane), jnp.float32)
    we_bias = we_bias.at[:, 1:NM + 1].set(
        (raw["We_bias"] - raw["ps_min"]) * inv_range)

    # Enhancement weights padded to (lane, lane); padded output columns get a
    # -1e30 bias so they never win the per-row max and tanh saturates them.
    wh_p = jnp.zeros((lane, lane), jnp.float32).at[1:NM + 1, :N3].set(raw["Wh"])
    wh_bias = jnp.full((1, lane), -1e30, jnp.float32).at[:, :N3].set(raw["Wh_bias"])

    # predict split by T3 = [y, T2], padded with zero rows.
    wp_y = jnp.zeros((lane, out_dim), jnp.float32).at[1:NM + 1, :].set(raw["Wp_y"])
    wp_t2 = jnp.zeros((lane, out_dim), jnp.float32).at[:N3, :].set(raw["Wp_t2"])

    return {
        "We": we_bf,
        "We_colsum": we_colsum,
        "We_bias": we_bias,
        "Wh": wh_p.astype(jnp.bfloat16),
        "Wh_bias": wh_bias,
        "Wp_y": wp_y.astype(jnp.bfloat16),
        "Wp_t2": wp_t2.astype(jnp.bfloat16),
        "pb": raw["pb"].astype(jnp.float32),
        "s": float(raw["s"]),
    }


# --------------------------------------------------------------------------- #
# Demo / self-check
# --------------------------------------------------------------------------- #
if __name__ == "__main__":
    # x = (2, 4, 16, 16)  =>  D = output = product(x.size()) = 2048
    # N1=8 feature nodes/group, N2=4 groups, N3=16 enhancement nodes
    # => predict in_features = N1*N2 + N3 = 48 (the constructor's `input`).
    B, C, Himg, Wimg = 2, 4, 16, 16
    N1, N2, N3 = 8, 4, 16
    D = B * C * Himg * Wimg
    output = D

    key = jax.random.PRNGKey(0)
    kx, kp, kb = jax.random.split(key, 3)
    x = jax.random.normal(kx, (B, C, Himg, Wimg), jnp.float32)

    raw = make_raw_params(kp, D, N1, N2, N3, output, s=0.8)
    params = fold_params(raw)

    # 1) Module-semantics forward: whole x flattened to one (1, D) row.
    out = jax.block_until_ready(bls_forward(x, params))
    assert out.shape == (1, output)
    # Reference is evaluated on the same bf16-quantized input the kernel streams.
    x_q = x.reshape(1, -1).astype(jnp.bfloat16).astype(jnp.float32)
    ref = bls_forward_ref_rows(x_q, raw)
    np.testing.assert_allclose(np.asarray(out.astype(jnp.float32)),
                               np.asarray(ref), rtol=3e-2, atol=3e-2)

    # 2) Batched forward: many independent flattened samples in one pallas_call
    #    (two 128-row grid steps -> both v7x TensorCores, amortized per-step
    #    overhead, no host-side padding copy).
    xs = jax.random.normal(kb, (256, D), jnp.float32)
    out_b = jax.block_until_ready(bls_forward_rows(xs, params))
    xs_q = xs.astype(jnp.bfloat16).astype(jnp.float32)
    ref_b = bls_forward_ref_rows(xs_q, raw)
    np.testing.assert_allclose(np.asarray(out_b.astype(jnp.float32)),
                               np.asarray(ref_b), rtol=3e-2, atol=3e-2)

    print("KERNEL_OK")
</pallas_src>

<mosaic_0001>
module attributes {stable_mosaic.version = 11 : i64} {
  func.func @bls_kernel(%arg0: i32, %arg1: memref<1x2048xbf16, #tpu.memory_space<vmem>>, %arg2: memref<2048x128xbf16, #tpu.memory_space<vmem>>, %arg3: memref<1x128xf32, #tpu.memory_space<vmem>>, %arg4: memref<1x128xf32, #tpu.memory_space<vmem>>, %arg5: memref<128x128xbf16, #tpu.memory_space<vmem>>, %arg6: memref<1x128xf32, #tpu.memory_space<vmem>>, %arg7: memref<128x2048xbf16, #tpu.memory_space<vmem>>, %arg8: memref<128x2048xbf16, #tpu.memory_space<vmem>>, %arg9: memref<1x2048xf32, #tpu.memory_space<vmem>>, %arg10: memref<1x2048xbf16, #tpu.memory_space<vmem>>) attributes {dimension_semantics = [#tpu.dimension_semantics<parallel>], iteration_bounds = array<i64: 1>, scalar_prefetch = 0 : i64, scratch_operands = 0 : i64, tpu.core_type = #tpu.core_type<tc>, window_params = [{transform_indices = @transform_0, window_bounds = array<i64: 1, 2048>}, {pipeline_mode = #tpu.pipeline_mode<synchronous>, transform_indices = @transform_1, window_bounds = array<i64: 2048, 128>}, {pipeline_mode = #tpu.pipeline_mode<synchronous>, transform_indices = @transform_2, window_bounds = array<i64: 1, 128>}, {pipeline_mode = #tpu.pipeline_mode<synchronous>, transform_indices = @transform_3, window_bounds = array<i64: 1, 128>}, {pipeline_mode = #tpu.pipeline_mode<synchronous>, transform_indices = @transform_4, window_bounds = array<i64: 128, 128>}, {pipeline_mode = #tpu.pipeline_mode<synchronous>, transform_indices = @transform_5, window_bounds = array<i64: 1, 128>}, {pipeline_mode = #tpu.pipeline_mode<synchronous>, transform_indices = @transform_6, window_bounds = array<i64: 128, 2048>}, {pipeline_mode = #tpu.pipeline_mode<synchronous>, transform_indices = @transform_7, window_bounds = array<i64: 128, 2048>}, {pipeline_mode = #tpu.pipeline_mode<synchronous>, transform_indices = @transform_8, window_bounds = array<i64: 1, 2048>}, {transform_indices = @transform_9, window_bounds = array<i64: 1, 2048>}]} {
    %c0 = arith.constant 0 : index
    %c0_0 = arith.constant 0 : index
    %0 = vector.load %arg1[%c0, %c0_0] : memref<1x2048xbf16, #tpu.memory_space<vmem>>, vector<1x2048xbf16>
    %c0_1 = arith.constant 0 : index
    %c0_2 = arith.constant 0 : index
    %1 = vector.load %arg2[%c0_1, %c0_2] : memref<2048x128xbf16, #tpu.memory_space<vmem>>, vector<2048x128xbf16>
    %cst = arith.constant dense<0.000000e+00> : vector<1x128xf32>
    %2 = tpu.matmul %0, %1, %cst {dimension_numbers = #tpu.dot_dimension_numbers<[1], [0], [0], [1], [0, 0, 1, 1], [], []>} : vector<1x2048xbf16>, vector<2048x128xbf16>, vector<1x128xf32> -> vector<1x128xf32>
    %3 = arith.extf %0 : vector<1x2048xbf16> to vector<1x2048xf32>
    %4 = vector.extract_strided_slice %2 {offsets = [0, 0], sizes = [1, 1], strides = [1, 1]} : vector<1x128xf32> to vector<1x1xf32>
    %5 = arith.mulf %3, %3 : vector<1x2048xf32>
    %cst_3 = arith.constant dense<0.000000e+00> : vector<1xf32>
    %6 = vector.multi_reduction <add>, %5, %cst_3 [1] : vector<1x2048xf32> to vector<1xf32>
    %7 = vector.shape_cast %6 : vector<1xf32> to vector<1x1xf32>
    %cst_4 = arith.constant 4.8828125E-4 : f32
    %8 = vector.broadcast %cst_4 : f32 to vector<1x1xf32>
    %9 = arith.mulf %4, %8 : vector<1x1xf32>
    %10 = arith.mulf %4, %9 : vector<1x1xf32>
    %11 = arith.subf %7, %10 : vector<1x1xf32>
    %cst_5 = arith.constant 4.88519785E-4 : f32
    %12 = vector.broadcast %cst_5 : f32 to vector<1x1xf32>
    %13 = arith.mulf %11, %12 : vector<1x1xf32>
    %14 = math.rsqrt %13 : vector<1x1xf32>
    %c0_6 = arith.constant 0 : index
    %c0_7 = arith.constant 0 : index
    %15 = vector.load %arg3[%c0_6, %c0_7] : memref<1x128xf32, #tpu.memory_space<vmem>>, vector<1x128xf32>
    %16 = vector.broadcast %9 : vector<1x1xf32> to vector<1x128xf32>
    %17 = arith.mulf %16, %15 : vector<1x128xf32>
    %18 = arith.subf %2, %17 : vector<1x128xf32>
    %19 = vector.broadcast %14 : vector<1x1xf32> to vector<1x128xf32>
    %20 = arith.mulf %18, %19 : vector<1x128xf32>
    %c0_8 = arith.constant 0 : index
    %c0_9 = arith.constant 0 : index
    %21 = vector.load %arg4[%c0_8, %c0_9] : memref<1x128xf32, #tpu.memory_space<vmem>>, vector<1x128xf32>
    %22 = arith.addf %20, %21 : vector<1x128xf32>
    %23 = arith.truncf %22 : vector<1x128xf32> to vector<1x128xbf16>
    %c0_10 = arith.constant 0 : index
    %c0_11 = arith.constant 0 : index
    %24 = vector.load %arg5[%c0_10, %c0_11] : memref<128x128xbf16, #tpu.memory_space<vmem>>, vector<128x128xbf16>
    %cst_12 = arith.constant dense<0.000000e+00> : vector<1x128xf32>
    %25 = tpu.matmul %23, %24, %cst_12 {dimension_numbers = #tpu.dot_dimension_numbers<[1], [0], [0], [1], [0, 0, 1, 1], [], []>} : vector<1x128xbf16>, vector<128x128xbf16>, vector<1x128xf32> -> vector<1x128xf32>
    %c0_13 = arith.constant 0 : index
    %c0_14 = arith.constant 0 : index
    %26 = vector.load %arg6[%c0_13, %c0_14] : memref<1x128xf32, #tpu.memory_space<vmem>>, vector<1x128xf32>
    %27 = arith.addf %25, %26 : vector<1x128xf32>
    %cst_15 = arith.constant dense<0xFF800000> : vector<1xf32>
    %28 = vector.multi_reduction <maximumf>, %27, %cst_15 [1] : vector<1x128xf32> to vector<1xf32>
    %29 = vector.shape_cast %28 : vector<1xf32> to vector<1x1xf32>
    %cst_16 = arith.constant 8.000000e-01 : f32
    %30 = vector.broadcast %cst_16 : f32 to vector<1x1xf32>
    %31 = arith.divf %30, %29 : vector<1x1xf32>
    %32 = vector.broadcast %31 : vector<1x1xf32> to vector<1x128xf32>
    %33 = arith.mulf %27, %32 : vector<1x128xf32>
    %34 = math.tanh %33 : vector<1x128xf32>
    %c0_17 = arith.constant 0 : index
    %c0_18 = arith.constant 0 : index
    %35 = vector.load %arg7[%c0_17, %c0_18] : memref<128x2048xbf16, #tpu.memory_space<vmem>>, vector<128x2048xbf16>
    %cst_19 = arith.constant dense<0.000000e+00> : vector<1x2048xf32>
    %36 = tpu.matmul %23, %35, %cst_19 {dimension_numbers = #tpu.dot_dimension_numbers<[1], [0], [0], [1], [0, 0, 1, 1], [], []>} : vector<1x128xbf16>, vector<128x2048xbf16>, vector<1x2048xf32> -> vector<1x2048xf32>
    %37 = arith.truncf %34 : vector<1x128xf32> to vector<1x128xbf16>
    %c0_20 = arith.constant 0 : index
    %c0_21 = arith.constant 0 : index
    %38 = vector.load %arg8[%c0_20, %c0_21] : memref<128x2048xbf16, #tpu.memory_space<vmem>>, vector<128x2048xbf16>
    %cst_22 = arith.constant dense<0.000000e+00> : vector<1x2048xf32>
    %39 = tpu.matmul %37, %38, %cst_22 {dimension_numbers = #tpu.dot_dimension_numbers<[1], [0], [0], [1], [0, 0, 1, 1], [], []>} : vector<1x128xbf16>, vector<128x2048xbf16>, vector<1x2048xf32> -> vector<1x2048xf32>
    %40 = arith.addf %36, %39 : vector<1x2048xf32>
    %c0_23 = arith.constant 0 : index
    %c0_24 = arith.constant 0 : index
    %41 = vector.load %arg9[%c0_23, %c0_24] : memref<1x2048xf32, #tpu.memory_space<vmem>>, vector<1x2048xf32>
    %42 = arith.addf %40, %41 : vector<1x2048xf32>
    %43 = arith.truncf %42 : vector<1x2048xf32> to vector<1x2048xbf16>
    %c0_25 = arith.constant 0 : index
    %c0_26 = arith.constant 0 : index
    %44 = vector.load %arg10[%c0_25, %c0_26] : memref<1x2048xbf16, #tpu.memory_space<vmem>>, vector<1x2048xbf16>
    tpu.vector_store %arg10[%c0_25, %c0_26], %43 {strides = array<i32>} : memref<1x2048xbf16, #tpu.memory_space<vmem>>, vector<1x2048xbf16>,
    return
  }
  func.func @transform_0(%arg0: i32) -> (i32, i32) {
    %c0_i32 = arith.constant 0 : i32
    %c0_i32_0 = arith.constant 0 : i32
    return %arg0, %c0_i32 : i32, i32
  }
  func.func @transform_1(%arg0: i32) -> (i32, i32) {
    %c0_i32 = arith.constant 0 : i32
    %c0_i32_0 = arith.constant 0 : i32
    %c0_i32_1 = arith.constant 0 : i32
    return %c0_i32, %c0_i32_0 : i32, i32
  }
  func.func @transform_2(%arg0: i32) -> (i32, i32) {
    %c0_i32 = arith.constant 0 : i32
    %c0_i32_0 = arith.constant 0 : i32
    %c0_i32_1 = arith.constant 0 : i32
    return %c0_i32, %c0_i32_0 : i32, i32
  }
  func.func @transform_3(%arg0: i32) -> (i32, i32) {
    %c0_i32 = arith.constant 0 : i32
    %c0_i32_0 = arith.constant 0 : i32
    %c0_i32_1 = arith.constant 0 : i32
    return %c0_i32, %c0_i32_0 : i32, i32
  }
  func.func @transform_4(%arg0: i32) -> (i32, i32) {
    %c0_i32 = arith.constant 0 : i32
    %c0_i32_0 = arith.constant 0 : i32
    %c0_i32_1 = arith.constant 0 : i32
    return %c0_i32, %c0_i32_0 : i32, i32
  }
  func.func @transform_5(%arg0: i32) -> (i32, i32) {
    %c0_i32 = arith.constant 0 : i32
    %c0_i32_0 = arith.constant 0 : i32
    %c0_i32_1 = arith.constant 0 : i32
    return %c0_i32, %c0_i32_0 : i32, i32
  }
  func.func @transform_6(%arg0: i32) -> (i32, i32) {
    %c0_i32 = arith.constant 0 : i32
    %c0_i32_0 = arith.constant 0 : i32
    %c0_i32_1 = arith.constant 0 : i32
    return %c0_i32, %c0_i32_0 : i32, i32
  }
  func.func @transform_7(%arg0: i32) -> (i32, i32) {
    %c0_i32 = arith.constant 0 : i32
    %c0_i32_0 = arith.constant 0 : i32
    %c0_i32_1 = arith.constant 0 : i32
    return %c0_i32, %c0_i32_0 : i32, i32
  }
  func.func @transform_8(%arg0: i32) -> (i32, i32) {
    %c0_i32 = arith.constant 0 : i32
    %c0_i32_0 = arith.constant 0 : i32
    %c0_i32_1 = arith.constant 0 : i32
    return %c0_i32, %c0_i32_0 : i32, i32
  }
  func.func @transform_9(%arg0: i32) -> (i32, i32) {
    %c0_i32 = arith.constant 0 : i32
    %c0_i32_0 = arith.constant 0 : i32
    return %arg0, %c0_i32 : i32, i32
  }
}

</mosaic_0001>

<llo_original>
// kernel: tpu_custom_call.1
$region0: #{tpu_custom_call.1}
  #allocation0 [shape = 'u32[]', space=smem, size = 0x4, offset = 0x4, fixed_abs, tag = 'smem constant byte address 0x4 - core index']
  #allocation1 [shape = 'u32[144,128]{1,0:T(1,128)}', space=vmem, size = 0x12000, scoped, tag = 'internal scratch']
  %s0 = inlined_call_operand.hbm [shape: bf16[1,2048], index: 0, kind: input, shape index: {}]
  %s1 = inlined_call_operand.hbm [shape: bf16[2048,128], index: 1, kind: input, shape index: {}]
  %s2 = inlined_call_operand.vmem [shape: f32[1,128], index: 2, kind: input, shape index: {}]
  %s3 = inlined_call_operand.vmem [shape: f32[1,128], index: 3, kind: input, shape index: {}]
  %s4 = inlined_call_operand.hbm [shape: bf16[128,128], index: 4, kind: input, shape index: {}]
  %s5 = inlined_call_operand.vmem [shape: f32[1,128], index: 5, kind: input, shape index: {}]
  %s6 = inlined_call_operand.hbm [shape: bf16[128,2048], index: 6, kind: input, shape index: {}]
  %s7 = inlined_call_operand.hbm [shape: bf16[128,2048], index: 7, kind: input, shape index: {}]
  %s8 = inlined_call_operand.vmem [shape: f32[1,2048], index: 8, kind: input, shape index: {}]
  %s9 = inlined_call_operand.hbm [shape: bf16[1,2048], index: 9, kind: output, shape index: {}]
  %s10 = sld [smem:[#allocation0]]
  $region66: #{tpu_custom_call.1} parent=0
    _
  %s12 = ssub.s32 1, %s10
  %s13 = scalar_select 0, %s12, %s10
  $region1: #{tpu_custom_call.1} parent=0
    #allocation2 [shape = 'u8[8192]{0}', space=vmem, size = 0x2000, scoped, tag = 'input window, operand 0, single buffered']
    #allocation3 [shape = 's32[1]{0}', space=sflag, size = 0x4, scoped, tag = 'scoped memory for tpu_custom_call.1']
    #allocation4 [shape = 's32[1]{0}', space=sflag, size = 0x4, scoped, tag = 'scoped memory for tpu_custom_call.1']
    #allocation5 [shape = 'u8[524288]{0}', space=vmem, size = 0x80000, scoped, tag = 'input window, operand 1, single buffered']
    #allocation6 [shape = 's32[1]{0}', space=sflag, size = 0x4, scoped, tag = 'scoped memory for tpu_custom_call.1']
    #allocation7 [shape = 'u8[32768]{0}', space=vmem, size = 0x8000, scoped, tag = 'input window, operand 4, single buffered']
    #allocation8 [shape = 'u8[524288]{0}', space=vmem, size = 0x80000, scoped, tag = 'input window, operand 6, single buffered']
    #allocation9 [shape = 's32[1]{0}', space=sflag, size = 0x4, scoped, tag = 'scoped memory for tpu_custom_call.1']
    #allocation10 [shape = 'u8[524288]{0}', space=vmem, size = 0x80000, scoped, tag = 'input window, operand 7, single buffered']
    #allocation11 [shape = 'u8[8192]{0}', space=vmem, size = 0x2000, scoped, tag = 'output window, operand 0, single buffered']
    %14 = vsyncpa [#allocation3], 0
    %15 = vsyncpa [#allocation6], 0
    %16 = vsyncpa [#allocation9], 0
    %17 = vsyncpa [#allocation4], 0
    // Predicated region
    $region2: #{tpu_custom_call.1} parent=1 // pred_check
      _
    $region3: #{tpu_custom_call.1} parent=1 // pred_check_branch
      %19 = sbr.rel (0) target = $region5
    $region4: #{tpu_custom_call.1} parent=1 // pred_region
      %s21 = ssub.s32 256, 256
      %22 = vsyncadd [#allocation3], %s21
      %s24 = sshll.u32 [#allocation2], 4
      %s25 = int_to_ptr.vmem [resolvable:$true] %s24
      %27 = dma.hbm_to_vmem [thread:$0]  %s0, 256, %s25, [#allocation3]
    $region5: #{tpu_custom_call.1} parent=1 // pred_fallthru
      _
    // Predicated region
    $region6: #{tpu_custom_call.1} parent=1 // pred_check
      _
    $region7: #{tpu_custom_call.1} parent=1 // pred_check_branch
      %29 = sbr.rel (0) target = $region9
    $region8: #{tpu_custom_call.1} parent=1 // pred_region
      %s31 = ssub.s32 16384, 16384
      %32 = vsyncadd [#allocation6], %s31
      %s33 = sshll.u32 [#allocation5], 4
      %s34 = int_to_ptr.vmem [resolvable:$true] %s33
      %39 = dma.hbm_to_vmem [thread:$0]  %s1, 16384, %s34, [#allocation6], 64, 64, 4
    $region9: #{tpu_custom_call.1} parent=1 // pred_fallthru
      _
    // Predicated region
    $region10: #{tpu_custom_call.1} parent=1 // pred_check
      _
    $region11: #{tpu_custom_call.1} parent=1 // pred_check_branch
      %41 = sbr.rel (0) target = $region13
    $region12: #{tpu_custom_call.1} parent=1 // pred_region
      _
    $region13: #{tpu_custom_call.1} parent=1 // pred_fallthru
      _
    // Predicated region
    $region14: #{tpu_custom_call.1} parent=1 // pred_check
      _
    $region15: #{tpu_custom_call.1} parent=1 // pred_check_branch
      %43 = sbr.rel (0) target = $region17
    $region16: #{tpu_custom_call.1} parent=1 // pred_region
      _
    $region17: #{tpu_custom_call.1} parent=1 // pred_fallthru
      _
    // Predicated region
    $region18: #{tpu_custom_call.1} parent=1 // pred_check
      _
    $region19: #{tpu_custom_call.1} parent=1 // pred_check_branch
      %45 = sbr.rel (0) target = $region21
    $region20: #{tpu_custom_call.1} parent=1 // pred_region
      %s47 = ssub.s32 1024, 1024
      %48 = vsyncadd [#allocation6], %s47
      %s49 = sshll.u32 [#allocation7], 4
      %s50 = int_to_ptr.vmem [resolvable:$true] %s49
      %55 = dma.hbm_to_vmem [thread:$0]  %s4, 1024, %s50, [#allocation6], 64, 64, 4
    $region21: #{tpu_custom_call.1} parent=1 // pred_fallthru
      _
    // Predicated region
    $region22: #{tpu_custom_call.1} parent=1 // pred_check
      _
    $region23: #{tpu_custom_call.1} parent=1 // pred_check_branch
      %57 = sbr.rel (0) target = $region25
    $region24: #{tpu_custom_call.1} parent=1 // pred_region
      _
    $region25: #{tpu_custom_call.1} parent=1 // pred_fallthru
      _
    // Predicated region
    $region26: #{tpu_custom_call.1} parent=1 // pred_check
      _
    $region27: #{tpu_custom_call.1} parent=1 // pred_check_branch
      %59 = sbr.rel (0) target = $region29
    $region28: #{tpu_custom_call.1} parent=1 // pred_region
      %s61 = ssub.s32 16384, 16384
      %62 = vsyncadd [#allocation9], %s61
      %s63 = sshll.u32 [#allocation8], 4
      %s64 = int_to_ptr.vmem [resolvable:$true] %s63
      %69 = dma.hbm_to_vmem [thread:$0]  %s6, 16384, %s64, [#allocation9], 1024, 1024, 64
    $region29: #{tpu_custom_call.1} parent=1 // pred_fallthru
      _
    // Predicated region
    $region30: #{tpu_custom_call.1} parent=1 // pred_check
      _
    $region31: #{tpu_custom_call.1} parent=1 // pred_check_branch
      %71 = sbr.rel (0) target = $region33
    $region32: #{tpu_custom_call.1} parent=1 // pred_region
      %s73 = ssub.s32 16384, 16384
      %74 = vsyncadd [#allocation9], %s73
      %s75 = sshll.u32 [#allocation10], 4
      %s76 = int_to_ptr.vmem [resolvable:$true] %s75
      %81 = dma.hbm_to_vmem [thread:$0]  %s7, 16384, %s76, [#allocation9], 1024, 1024, 64
    $region33: #{tpu_custom_call.1} parent=1 // pred_fallthru
      _
    // Predicated region
    $region34: #{tpu_custom_call.1} parent=1 // pred_check
      _
    $region35: #{tpu_custom_call.1} parent=1 // pred_check_branch
      %83 = sbr.rel (0) target = $region37
    $region36: #{tpu_custom_call.1} parent=1 // pred_region
      _
    $region37: #{tpu_custom_call.1} parent=1 // pred_fallthru
      _
    // Predicated region
    $region38: #{tpu_custom_call.1} parent=1 // pred_check
      _
    $region39: #{tpu_custom_call.1} parent=1 // pred_check_branch
      %85 = sbr.rel (0) target = $region41
    $region40: #{tpu_custom_call.1} parent=1 // pred_region
      %86 = dma.done [#allocation3], 256
    $region41: #{tpu_custom_call.1} parent=1 // pred_fallthru
      _
    // Predicated region
    $region42: #{tpu_custom_call.1} parent=1 // pred_check
      _
    $region43: #{tpu_custom_call.1} parent=1 // pred_check_branch
      %88 = sbr.rel (0) target = $region45
    $region44: #{tpu_custom_call.1} parent=1 // pred_region
      %89 = dma.done [#allocation6], 16384
    $region45: #{tpu_custom_call.1} parent=1 // pred_fallthru
      _
    // Predicated region
    $region46: #{tpu_custom_call.1} parent=1 // pred_check
      _
    $region47: #{tpu_custom_call.1} parent=1 // pred_check_branch
      %91 = sbr.rel (0) target = $region49
    $region48: #{tpu_custom_call.1} parent=1 // pred_region
      %92 = dma.done [#allocation6], 1024
    $region49: #{tpu_custom_call.1} parent=1 // pred_fallthru
      _
    // Predicated region
    $region50: #{tpu_custom_call.1} parent=1 // pred_check
      _
    $region51: #{tpu_custom_call.1} parent=1 // pred_check_branch
      %94 = sbr.rel (0) target = $region53
    $region52: #{tpu_custom_call.1} parent=1 // pred_region
      %95 = dma.done [#allocation9], 16384
    $region53: #{tpu_custom_call.1} parent=1 // pred_fallthru
      _
    // Predicated region
    $region54: #{tpu_custom_call.1} parent=1 // pred_check
      _
    $region55: #{tpu_custom_call.1} parent=1 // pred_check_branch
      %97 = sbr.rel (0) target = $region57
    $region56: #{tpu_custom_call.1} parent=1 // pred_region
      %98 = dma.done [#allocation9], 16384
    $region57: #{tpu_custom_call.1} parent=1 // pred_fallthru
      _
    %v100 = vld [vmem:[#allocation2] sm:$0xff]
    %v101 = vld [vmem:[#allocation2 + $0x8] sm:$0xff]
    %v102 = vld [vmem:[#allocation5] sm:$0xf]
    %v103 = vld [vmem:[#allocation5 + $0x4] sm:$0xf]
    %v104 = vld [vmem:[#allocation5 + $0x8] sm:$0xf]
    %v105 = vld [vmem:[#allocation5 + $0xc] sm:$0xf]
    %v106 = vld [vmem:[#allocation5 + $0x10] sm:$0xf]
    %v107 = vld [vmem:[#allocation5 + $0x14] sm:$0xf]
    %v108 = vld [vmem:[#allocation5 + $0x18] sm:$0xf]
    %v109 = vld [vmem:[#allocation5 + $0x1c] sm:$0xf]
    %v110 = vld [vmem:[#allocation5 + $0x20] sm:$0xf]
    %v111 = vld [vmem:[#allocation5 + $0x24] sm:$0xf]
    %v112 = vld [vmem:[#allocation5 + $0x28] sm:$0xf]
    %v113 = vld [vmem:[#allocation5 + $0x2c] sm:$0xf]
    %v114 = vld [vmem:[#allocation5 + $0x30] sm:$0xf]
    %v115 = vld [vmem:[#allocation5 + $0x34] sm:$0xf]
    %v116 = vld [vmem:[#allocation5 + $0x38] sm:$0xf]
    %v117 = vld [vmem:[#allocation5 + $0x3c] sm:$0xf]
    %v118 = vld [vmem:[#allocation5 + $0x40] sm:$0xf]
    %v119 = vld [vmem:[#allocation5 + $0x44] sm:$0xf]
    %v120 = vld [vmem:[#allocation5 + $0x48] sm:$0xf]
    %v121 = vld [vmem:[#allocation5 + $0x4c] sm:$0xf]
    %v122 = vld [vmem:[#allocation5 + $0x50] sm:$0xf]
    %v123 = vld [vmem:[#allocation5 + $0x54] sm:$0xf]
    %v124 = vld [vmem:[#allocation5 + $0x58] sm:$0xf]
    %v125 = vld [vmem:[#allocation5 + $0x5c] sm:$0xf]
    %v126 = vld [vmem:[#allocation5 + $0x60] sm:$0xf]
    %v127 = vld [vmem:[#allocation5 + $0x64] sm:$0xf]
    %v128 = vld [vmem:[#allocation5 + $0x68] sm:$0xf]
    %v129 = vld [vmem:[#allocation5 + $0x6c] sm:$0xf]
    %v130 = vld [vmem:[#allocation5 + $0x70] sm:$0xf]
    %v131 = vld [vmem:[#allocation5 + $0x74] sm:$0xf]
    %v132 = vld [vmem:[#allocation5 + $0x78] sm:$0xf]
    %v133 = vld [vmem:[#allocation5 + $0x7c] sm:$0xf]
    %v134 = vld [vmem:[#allocation5 + $0x80] sm:$0xf]
    %v135 = vld [vmem:[#allocation5 + $0x84] sm:$0xf]
    %v136 = vld [vmem:[#allocation5 + $0x88] sm:$0xf]
    %v137 = vld [vmem:[#allocation5 + $0x8c] sm:$0xf]
    %v138 = vld [vmem:[#allocation5 + $0x90] sm:$0xf]
    %v139 = vld [vmem:[#allocation5 + $0x94] sm:$0xf]
    %v140 = vld [vmem:[#allocation5 + $0x98] sm:$0xf]
    %v141 = vld [vmem:[#allocation5 + $0x9c] sm:$0xf]
    %v142 = vld [vmem:[#allocation5 + $0xa0] sm:$0xf]
    %v143 = vld [vmem:[#allocation5 + $0xa4] sm:$0xf]
    %v144 = vld [vmem:[#allocation5 + $0xa8] sm:$0xf]
    %v145 = vld [vmem:[#allocation5 + $0xac] sm:$0xf]
    %v146 = vld [vmem:[#allocation5 + $0xb0] sm:$0xf]
    %v147 = vld [vmem:[#allocation5 + $0xb4] sm:$0xf]
    %v148 = vld [vmem:[#allocation5 + $0xb8] sm:$0xf]
    %v149 = vld [vmem:[#allocation5 + $0xbc] sm:$0xf]
    %v150 = vld [vmem:[#allocation5 + $0xc0] sm:$0xf]
    %v151 = vld [vmem:[#allocation5 + $0xc4] sm:$0xf]
    %v152 = vld [vmem:[#allocation5 + $0xc8] sm:$0xf]
    %v153 = vld [vmem:[#allocation5 + $0xcc] sm:$0xf]
    %v154 = vld [vmem:[#allocation5 + $0xd0] sm:$0xf]
    %v155 = vld [vmem:[#allocation5 + $0xd4] sm:$0xf]
    %v156 = vld [vmem:[#allocation5 + $0xd8] sm:$0xf]
    %v157 = vld [vmem:[#allocation5 + $0xdc] sm:$0xf]
    %v158 = vld [vmem:[#allocation5 + $0xe0] sm:$0xf]
    %v159 = vld [vmem:[#allocation5 + $0xe4] sm:$0xf]
    %v160 = vld [vmem:[#allocation5 + $0xe8] sm:$0xf]
    %v161 = vld [vmem:[#allocation5 + $0xec] sm:$0xf]
    %v162 = vld [vmem:[#allocation5 + $0xf0] sm:$0xf]
    %v163 = vld [vmem:[#allocation5 + $0xf4] sm:$0xf]
    %v164 = vld [vmem:[#allocation5 + $0xf8] sm:$0xf]
    %v165 = vld [vmem:[#allocation5 + $0xfc] sm:$0xf]
    %v166 = vld [vmem:[#allocation5 + $0x100] sm:$0xf]
    %v167 = vld [vmem:[#allocation5 + $0x104] sm:$0xf]
    %v168 = vld [vmem:[#allocation5 + $0x108] sm:$0xf]
    %v169 = vld [vmem:[#allocation5 + $0x10c] sm:$0xf]
    %v170 = vld [vmem:[#allocation5 + $0x110] sm:$0xf]
    %v171 = vld [vmem:[#allocation5 + $0x114] sm:$0xf]
    %v172 = vld [vmem:[#allocation5 + $0x118] sm:$0xf]
    %v173 = vld [vmem:[#allocation5 + $0x11c] sm:$0xf]
    %v174 = vld [vmem:[#allocation5 + $0x120] sm:$0xf]
    %v175 = vld [vmem:[#allocation5 + $0x124] sm:$0xf]
    %v176 = vld [vmem:[#allocation5 + $0x128] sm:$0xf]
    %v177 = vld [vmem:[#allocation5 + $0x12c] sm:$0xf]
    %v178 = vld [vmem:[#allocation5 + $0x130] sm:$0xf]
    %v179 = vld [vmem:[#allocation5 + $0x134] sm:$0xf]
    %v180 = vld [vmem:[#allocation5 + $0x138] sm:$0xf]
    %v181 = vld [vmem:[#allocation5 + $0x13c] sm:$0xf]
    %v182 = vld [vmem:[#allocation5 + $0x140] sm:$0xf]
    %v183 = vld [vmem:[#allocation5 + $0x144] sm:$0xf]
    %v184 = vld [vmem:[#allocation5 + $0x148] sm:$0xf]
    %v185 = vld [vmem:[#allocation5 + $0x14c] sm:$0xf]
    %v186 = vld [vmem:[#allocation5 + $0x150] sm:$0xf]
    %v187 = vld [vmem:[#allocation5 + $0x154] sm:$0xf]
    %v188 = vld [vmem:[#allocation5 + $0x158] sm:$0xf]
    %v189 = vld [vmem:[#allocation5 + $0x15c] sm:$0xf]
    %v190 = vld [vmem:[#allocation5 + $0x160] sm:$0xf]
    %v191 = vld [vmem:[#allocation5 + $0x164] sm:$0xf]
    %v192 = vld [vmem:[#allocation5 + $0x168] sm:$0xf]
    %v193 = vld [vmem:[#allocation5 + $0x16c] sm:$0xf]
    %v194 = vld [vmem:[#allocation5 + $0x170] sm:$0xf]
    %v195 = vld [vmem:[#allocation5 + $0x174] sm:$0xf]
    %v196 = vld [vmem:[#allocation5 + $0x178] sm:$0xf]
    %v197 = vld [vmem:[#allocation5 + $0x17c] sm:$0xf]
    %v198 = vld [vmem:[#allocation5 + $0x180] sm:$0xf]
    %v199 = vld [vmem:[#allocation5 + $0x184] sm:$0xf]
    %v200 = vld [vmem:[#allocation5 + $0x188] sm:$0xf]
    %v201 = vld [vmem:[#allocation5 + $0x18c] sm:$0xf]
    %v202 = vld [vmem:[#allocation5 + $0x190] sm:$0xf]
    %v203 = vld [vmem:[#allocation5 + $0x194] sm:$0xf]
    %v204 = vld [vmem:[#allocation5 + $0x198] sm:$0xf]
    %v205 = vld [vmem:[#allocation5 + $0x19c] sm:$0xf]
    %v206 = vld [vmem:[#allocation5 + $0x1a0] sm:$0xf]
    %v207 = vld [vmem:[#allocation5 + $0x1a4] sm:$0xf]
    %v208 = vld [vmem:[#allocation5 + $0x1a8] sm:$0xf]
    %v209 = vld [vmem:[#allocation5 + $0x1ac] sm:$0xf]
    %v210 = vld [vmem:[#allocation5 + $0x1b0] sm:$0xf]
    %v211 = vld [vmem:[#allocation5 + $0x1b4] sm:$0xf]
    %v212 = vld [vmem:[#allocation5 + $0x1b8] sm:$0xf]
    %v213 = vld [vmem:[#allocation5 + $0x1bc] sm:$0xf]
    %v214 = vld [vmem:[#allocation5 + $0x1c0] sm:$0xf]
    %v215 = vld [vmem:[#allocation5 + $0x1c4] sm:$0xf]
    %v216 = vld [vmem:[#allocation5 + $0x1c8] sm:$0xf]
    %v217 = vld [vmem:[#allocation5 + $0x1cc] sm:$0xf]
    %v218 = vld [vmem:[#allocation5 + $0x1d0] sm:$0xf]
    %v219 = vld [vmem:[#allocation5 + $0x1d4] sm:$0xf]
    %v220 = vld [vmem:[#allocation5 + $0x1d8] sm:$0xf]
    %v221 = vld [vmem:[#allocation5 + $0x1dc] sm:$0xf]
    %v222 = vld [vmem:[#allocation5 + $0x1e0] sm:$0xf]
    %v223 = vld [vmem:[#allocation5 + $0x1e4] sm:$0xf]
    %v224 = vld [vmem:[#allocation5 + $0x1e8] sm:$0xf]
    %v225 = vld [vmem:[#allocation5 + $0x1ec] sm:$0xf]
    %v226 = vld [vmem:[#allocation5 + $0x1f0] sm:$0xf]
    %v227 = vld [vmem:[#allocation5 + $0x1f4] sm:$0xf]
    %v228 = vld [vmem:[#allocation5 + $0x1f8] sm:$0xf]
    %v229 = vld [vmem:[#allocation5 + $0x1fc] sm:$0xf]
    %v230 = vld [vmem:[#allocation5 + $0x200] sm:$0xf]
    %v231 = vld [vmem:[#allocation5 + $0x204] sm:$0xf]
    %v232 = vld [vmem:[#allocation5 + $0x208] sm:$0xf]
    %v233 = vld [vmem:[#allocation5 + $0x20c] sm:$0xf]
    %v234 = vld [vmem:[#allocation5 + $0x210] sm:$0xf]
    %v235 = vld [vmem:[#allocation5 + $0x214] sm:$0xf]
    %v236 = vld [vmem:[#allocation5 + $0x218] sm:$0xf]
    %v237 = vld [vmem:[#allocation5 + $0x21c] sm:$0xf]
    %v238 = vld [vmem:[#allocation5 + $0x220] sm:$0xf]
    %v239 = vld [vmem:[#allocation5 + $0x224] sm:$0xf]
    %v240 = vld [vmem:[#allocation5 + $0x228] sm:$0xf]
    %v241 = vld [vmem:[#allocation5 + $0x22c] sm:$0xf]
    %v242 = vld [vmem:[#allocation5 + $0x230] sm:$0xf]
    %v243 = vld [vmem:[#allocation5 + $0x234] sm:$0xf]
    %v244 = vld [vmem:[#allocation5 + $0x238] sm:$0xf]
    %v245 = vld [vmem:[#allocation5 + $0x23c] sm:$0xf]
    %v246 = vld [vmem:[#allocation5 + $0x240] sm:$0xf]
    %v247 = vld [vmem:[#allocation5 + $0x244] sm:$0xf]
    %v248 = vld [vmem:[#allocation5 + $0x248] sm:$0xf]
    %v249 = vld [vmem:[#allocation5 + $0x24c] sm:$0xf]
    %v250 = vld [vmem:[#allocation5 + $0x250] sm:$0xf]
    %v251 = vld [vmem:[#allocation5 + $0x254] sm:$0xf]
    %v252 = vld [vmem:[#allocation5 + $0x258] sm:$0xf]
    %v253 = vld [vmem:[#allocation5 + $0x25c] sm:$0xf]
    %v254 = vld [vmem:[#allocation5 + $0x260] sm:$0xf]
    %v255 = vld [vmem:[#allocation5 + $0x264] sm:$0xf]
    %v256 = vld [vmem:[#allocation5 + $0x268] sm:$0xf]
    %v257 = vld [vmem:[#allocation5 + $0x26c] sm:$0xf]
    %v258 = vld [vmem:[#allocation5 + $0x270] sm:$0xf]
    %v259 = vld [vmem:[#allocation5 + $0x274] sm:$0xf]
    %v260 = vld [vmem:[#allocation5 + $0x278] sm:$0xf]
    %v261 = vld [vmem:[#allocation5 + $0x27c] sm:$0xf]
    %v262 = vld [vmem:[#allocation5 + $0x280] sm:$0xf]
    %v263 = vld [vmem:[#allocation5 + $0x284] sm:$0xf]
    %v264 = vld [vmem:[#allocation5 + $0x288] sm:$0xf]
    %v265 = vld [vmem:[#allocation5 + $0x28c] sm:$0xf]
    %v266 = vld [vmem:[#allocation5 + $0x290] sm:$0xf]
    %v267 = vld [vmem:[#allocation5 + $0x294] sm:$0xf]
    %v268 = vld [vmem:[#allocation5 + $0x298] sm:$0xf]
    %v269 = vld [vmem:[#allocation5 + $0x29c] sm:$0xf]
    %v270 = vld [vmem:[#allocation5 + $0x2a0] sm:$0xf]
    %v271 = vld [vmem:[#allocation5 + $0x2a4] sm:$0xf]
    %v272 = vld [vmem:[#allocation5 + $0x2a8] sm:$0xf]
    %v273 = vld [vmem:[#allocation5 + $0x2ac] sm:$0xf]
    %v274 = vld [vmem:[#allocation5 + $0x2b0] sm:$0xf]
    %v275 = vld [vmem:[#allocation5 + $0x2b4] sm:$0xf]
    %v276 = vld [vmem:[#allocation5 + $0x2b8] sm:$0xf]
    %v277 = vld [vmem:[#allocation5 + $0x2bc] sm:$0xf]
    %v278 = vld [vmem:[#allocation5 + $0x2c0] sm:$0xf]
    %v279 = vld [vmem:[#allocation5 + $0x2c4] sm:$0xf]
    %v280 = vld [vmem:[#allocation5 + $0x2c8] sm:$0xf]
    %v281 = vld [vmem:[#allocation5 + $0x2cc] sm:$0xf]
    %v282 = vld [vmem:[#allocation5 + $0x2d0] sm:$0xf]
    %v283 = vld [vmem:[#allocation5 + $0x2d4] sm:$0xf]
    %v284 = vld [vmem:[#allocation5 + $0x2d8] sm:$0xf]
    %v285 = vld [vmem:[#allocation5 + $0x2dc] sm:$0xf]
    %v286 = vld [vmem:[#allocation5 + $0x2e0] sm:$0xf]
    %v287 = vld [vmem:[#allocation5 + $0x2e4] sm:$0xf]
    %v288 = vld [vmem:[#allocation5 + $0x2e8] sm:$0xf]
    %v289 = vld [vmem:[#allocation5 + $0x2ec] sm:$0xf]
    %v290 = vld [vmem:[#allocation5 + $0x2f0] sm:$0xf]
    %v291 = vld [vmem:[#allocation5 + $0x2f4] sm:$0xf]
    %v292 = vld [vmem:[#allocation5 + $0x2f8] sm:$0xf]
    %v293 = vld [vmem:[#allocation5 + $0x2fc] sm:$0xf]
    %v294 = vld [vmem:[#allocation5 + $0x300] sm:$0xf]
    %v295 = vld [vmem:[#allocation5 + $0x304] sm:$0xf]
    %v296 = vld [vmem:[#allocation5 + $0x308] sm:$0xf]
    %v297 = vld [vmem:[#allocation5 + $0x30c] sm:$0xf]
    %v298 = vld [vmem:[#allocation5 + $0x310] sm:$0xf]
    %v299 = vld [vmem:[#allocation5 + $0x314] sm:$0xf]
    %v300 = vld [vmem:[#allocation5 + $0x318] sm:$0xf]
    %v301 = vld [vmem:[#allocation5 + $0x31c] sm:$0xf]
    %v302 = vld [vmem:[#allocation5 + $0x320] sm:$0xf]
    %v303 = vld [vmem:[#allocation5 + $0x324] sm:$0xf]
    %v304 = vld [vmem:[#allocation5 + $0x328] sm:$0xf]
    %v305 = vld [vmem:[#allocation5 + $0x32c] sm:$0xf]
    %v306 = vld [vmem:[#allocation5 + $0x330] sm:$0xf]
    %v307 = vld [vmem:[#allocation5 + $0x334] sm:$0xf]
    %v308 = vld [vmem:[#allocation5 + $0x338] sm:$0xf]
    %v309 = vld [vmem:[#allocation5 + $0x33c] sm:$0xf]
    %v310 = vld [vmem:[#allocation5 + $0x340] sm:$0xf]
    %v311 = vld [vmem:[#allocation5 + $0x344] sm:$0xf]
    %v312 = vld [vmem:[#allocation5 + $0x348] sm:$0xf]
    %v313 = vld [vmem:[#allocation5 + $0x34c] sm:$0xf]
    %v314 = vld [vmem:[#allocation5 + $0x350] sm:$0xf]
    %v315 = vld [vmem:[#allocation5 + $0x354] sm:$0xf]
    %v316 = vld [vmem:[#allocation5 + $0x358] sm:$0xf]
    %v317 = vld [vmem:[#allocation5 + $0x35c] sm:$0xf]
    %v318 = vld [vmem:[#allocation5 + $0x360] sm:$0xf]
    %v319 = vld [vmem:[#allocation5 + $0x364] sm:$0xf]
    %v320 = vld [vmem:[#allocation5 + $0x368] sm:$0xf]
    %v321 = vld [vmem:[#allocation5 + $0x36c] sm:$0xf]
    %v322 = vld [vmem:[#allocation5 + $0x370] sm:$0xf]
    %v323 = vld [vmem:[#allocation5 + $0x374] sm:$0xf]
    %v324 = vld [vmem:[#allocation5 + $0x378] sm:$0xf]
    %v325 = vld [vmem:[#allocation5 + $0x37c] sm:$0xf]
    %v326 = vld [vmem:[#allocation5 + $0x380] sm:$0xf]
    %v327 = vld [vmem:[#allocation5 + $0x384] sm:$0xf]
    %v328 = vld [vmem:[#allocation5 + $0x388] sm:$0xf]
    %v329 = vld [vmem:[#allocation5 + $0x38c] sm:$0xf]
    %v330 = vld [vmem:[#allocation5 + $0x390] sm:$0xf]
    %v331 = vld [vmem:[#allocation5 + $0x394] sm:$0xf]
    %v332 = vld [vmem:[#allocation5 + $0x398] sm:$0xf]
    %v333 = vld [vmem:[#allocation5 + $0x39c] sm:$0xf]
    %v334 = vld [vmem:[#allocation5 + $0x3a0] sm:$0xf]
    %v335 = vld [vmem:[#allocation5 + $0x3a4] sm:$0xf]
    %v336 = vld [vmem:[#allocation5 + $0x3a8] sm:$0xf]
    %v337 = vld [vmem:[#allocation5 + $0x3ac] sm:$0xf]
    %v338 = vld [vmem:[#allocation5 + $0x3b0] sm:$0xf]
    %v339 = vld [vmem:[#allocation5 + $0x3b4] sm:$0xf]
    %v340 = vld [vmem:[#allocation5 + $0x3b8] sm:$0xf]
    %v341 = vld [vmem:[#allocation5 + $0x3bc] sm:$0xf]
    %v342 = vld [vmem:[#allocation5 + $0x3c0] sm:$0xf]
    %v343 = vld [vmem:[#allocation5 + $0x3c4] sm:$0xf]
    %v344 = vld [vmem:[#allocation5 + $0x3c8] sm:$0xf]
    %v345 = vld [vmem:[#allocation5 + $0x3cc] sm:$0xf]
    %v346 = vld [vmem:[#allocation5 + $0x3d0] sm:$0xf]
    %v347 = vld [vmem:[#allocation5 + $0x3d4] sm:$0xf]
    %v348 = vld [vmem:[#allocation5 + $0x3d8] sm:$0xf]
    %v349 = vld [vmem:[#allocation5 + $0x3dc] sm:$0xf]
    %v350 = vld [vmem:[#allocation5 + $0x3e0] sm:$0xf]
    %v351 = vld [vmem:[#allocation5 + $0x3e4] sm:$0xf]
    %v352 = vld [vmem:[#allocation5 + $0x3e8] sm:$0xf]
    %v353 = vld [vmem:[#allocation5 + $0x3ec] sm:$0xf]
    %v354 = vld [vmem:[#allocation5 + $0x3f0] sm:$0xf]
    %v355 = vld [vmem:[#allocation5 + $0x3f4] sm:$0xf]
    %v356 = vld [vmem:[#allocation5 + $0x3f8] sm:$0xf]
    %v357 = vld [vmem:[#allocation5 + $0x3fc] sm:$0xf]
    %v360 = vcombine.high %v100, %v100
    %v362 = vunpack.c.l.s4 1966171168
    %v363 = vunpack.c.0.s8 %v362
    %v364 = vlaneseq
    %v365 = vshrl.u32 %v364, 7
    %v366 = vsub.s32 %v363, %v365
    %v367 = vrot.slane %v100, %v366
    %v369 = vunpack.c.l.s4 1966171168
    %v370 = vunpack.c.0.s8 %v369
    %v371 = vlaneseq
    %v372 = vshrl.u32 %v371, 7
    %v373 = vsub.s32 %v370, %v372
    %v374 = vrot.slane %v360, %v373
    %v375 = vcombine.high %v367, %v367
    %v376 = vcombine.high %v374, %v374
    %v378 = vunpack.c.l.s4 1966171168
    %v379 = vunpack.c.0.s8 %v378
    %v380 = vlaneseq
    %v381 = vshrl.u32 %v380, 7
    %v382 = vsub.s32 %v379, %v381
    %v383 = vrot.slane %v367, %v382
    %v385 = vunpack.c.l.s4 1966171168
    %v386 = vunpack.c.0.s8 %v385
    %v387 = vlaneseq
    %v388 = vshrl.u32 %v387, 7
    %v389 = vsub.s32 %v386, %v388
    %v390 = vrot.slane %v374, %v389
    %v392 = vunpack.c.l.s4 1966171168
    %v393 = vunpack.c.0.s8 %v392
    %v394 = vlaneseq
    %v395 = vshrl.u32 %v394, 7
    %v396 = vsub.s32 %v393, %v395
    %v397 = vrot.slane %v375, %v396
    %v399 = vunpack.c.l.s4 1966171168
    %v400 = vunpack.c.0.s8 %v399
    %v401 = vlaneseq
    %v402 = vshrl.u32 %v401, 7
    %v403 = vsub.s32 %v400, %v402
    %v404 = vrot.slane %v376, %v403
    %v405 = vcombine.high %v383, %v383
    %v406 = vcombine.high %v390, %v390
    %v407 = vcombine.high %v397, %v397
    %v408 = vcombine.high %v404, %v404
    %v409 = vcombine.high %v101, %v101
    %v411 = vunpack.c.l.s4 1966171168
    %v412 = vunpack.c.0.s8 %v411
    %v413 = vlaneseq
    %v414 = vshrl.u32 %v413, 7
    %v415 = vsub.s32 %v412, %v414
    %v416 = vrot.slane %v101, %v415
    %v418 = vunpack.c.l.s4 1966171168
    %v419 = vunpack.c.0.s8 %v418
    %v420 = vlaneseq
    %v421 = vshrl.u32 %v420, 7
    %v422 = vsub.s32 %v419, %v421
    %v423 = vrot.slane %v409, %v422
    %v424 = vcombine.high %v416, %v416
    %v425 = vcombine.high %v423, %v423
    %v427 = vunpack.c.l.s4 1966171168
    %v428 = vunpack.c.0.s8 %v427
    %v429 = vlaneseq
    %v430 = vshrl.u32 %v429, 7
    %v431 = vsub.s32 %v428, %v430
    %v432 = vrot.slane %v416, %v431
    %v434 = vunpack.c.l.s4 1966171168
    %v435 = vunpack.c.0.s8 %v434
    %v436 = vlaneseq
    %v437 = vshrl.u32 %v436, 7
    %v438 = vsub.s32 %v435, %v437
    %v439 = vrot.slane %v423, %v438
    %v441 = vunpack.c.l.s4 1966171168
    %v442 = vunpack.c.0.s8 %v441
    %v443 = vlaneseq
    %v444 = vshrl.u32 %v443, 7
    %v445 = vsub.s32 %v442, %v444
    %v446 = vrot.slane %v424, %v445
    %v448 = vunpack.c.l.s4 1966171168
    %v449 = vunpack.c.0.s8 %v448
    %v450 = vlaneseq
    %v451 = vshrl.u32 %v450, 7
    %v452 = vsub.s32 %v449, %v451
    %v453 = vrot.slane %v425, %v452
    %v454 = vcombine.high %v432, %v432
    %v455 = vcombine.high %v439, %v439
    %v456 = vcombine.high %v446, %v446
    %v457 = vcombine.high %v453, %v453
    %v730 = vunpack.c.l.b16 %v102
    %v731 = vunpack.c.l.b16 %v103
    %v732 = vunpack.c.l.b16 %v104
    %v733 = vunpack.c.l.b16 %v105
    %v734 = vunpack.c.l.b16 %v106
    %v735 = vunpack.c.l.b16 %v107
    %v736 = vunpack.c.l.b16 %v108
    %v737 = vunpack.c.l.b16 %v109
    %v738 = vunpack.c.l.b16 %v110
    %v739 = vunpack.c.l.b16 %v111
    %v740 = vunpack.c.l.b16 %v112
    %v741 = vunpack.c.l.b16 %v113
    %v742 = vunpack.c.l.b16 %v114
    %v743 = vunpack.c.l.b16 %v115
    %v744 = vunpack.c.l.b16 %v116
    %v745 = vunpack.c.l.b16 %v117
    %v746 = vunpack.c.l.b16 %v118
    %v747 = vunpack.c.l.b16 %v119
    %v748 = vunpack.c.l.b16 %v120
    %v749 = vunpack.c.l.b16 %v121
    %v750 = vunpack.c.l.b16 %v122
    %v751 = vunpack.c.l.b16 %v123
    %v752 = vunpack.c.l.b16 %v124
    %v753 = vunpack.c.l.b16 %v125
    %v754 = vunpack.c.l.b16 %v126
    %v755 = vunpack.c.l.b16 %v127
    %v756 = vunpack.c.l.b16 %v128
    %v757 = vunpack.c.l.b16 %v129
    %v758 = vunpack.c.l.b16 %v130
    %v759 = vunpack.c.l.b16 %v131
    %v760 = vunpack.c.l.b16 %v132
    %v761 = vunpack.c.l.b16 %v133
    %v762 = vunpack.c.l.b16 %v134
    %v763 = vunpack.c.l.b16 %v135
    %v764 = vunpack.c.l.b16 %v136
    %v765 = vunpack.c.l.b16 %v137
    %v766 = vunpack.c.l.b16 %v138
    %v767 = vunpack.c.l.b16 %v139
    %v768 = vunpack.c.l.b16 %v140
    %v769 = vunpack.c.l.b16 %v141
    %v770 = vunpack.c.l.b16 %v142
    %v771 = vunpack.c.l.b16 %v143
    %v772 = vunpack.c.l.b16 %v144
    %v773 = vunpack.c.l.b16 %v145
    %v774 = vunpack.c.l.b16 %v146
    %v775 = vunpack.c.l.b16 %v147
    %v776 = vunpack.c.l.b16 %v148
    %v777 = vunpack.c.l.b16 %v149
    %v778 = vunpack.c.l.b16 %v150
    %v779 = vunpack.c.l.b16 %v151
    %v780 = vunpack.c.l.b16 %v152
    %v781 = vunpack.c.l.b16 %v153
    %v782 = vunpack.c.l.b16 %v154
    %v783 = vunpack.c.l.b16 %v155
    %v784 = vunpack.c.l.b16 %v156
    %v785 = vunpack.c.l.b16 %v157
    %v786 = vunpack.c.l.b16 %v158
    %v787 = vunpack.c.l.b16 %v159
    %v788 = vunpack.c.l.b16 %v160
    %v789 = vunpack.c.l.b16 %v161
    %v790 = vunpack.c.l.b16 %v162
    %v791 = vunpack.c.l.b16 %v163
    %v792 = vunpack.c.l.b16 %v164
    %v793 = vunpack.c.l.b16 %v165
    %v794 = vunpack.c.l.b16 %v166
    %v795 = vunpack.c.l.b16 %v167
    %v796 = vunpack.c.l.b16 %v168
    %v797 = vunpack.c.l.b16 %v169
    %v798 = vunpack.c.l.b16 %v170
    %v799 = vunpack.c.l.b16 %v171
    %v800 = vunpack.c.l.b16 %v172
    %v801 = vunpack.c.l.b16 %v173
    %v802 = vunpack.c.l.b16 %v174
    %v803 = vunpack.c.l.b16 %v175
    %v804 = vunpack.c.l.b16 %v176
    %v805 = vunpack.c.l.b16 %v177
    %v806 = vunpack.c.l.b16 %v178
    %v807 = vunpack.c.l.b16 %v179
    %v808 = vunpack.c.l.b16 %v180
    %v809 = vunpack.c.l.b16 %v181
    %v810 = vunpack.c.l.b16 %v182
    %v811 = vunpack.c.l.b16 %v183
    %v812 = vunpack.c.l.b16 %v184
    %v813 = vunpack.c.l.b16 %v185
    %v814 = vunpack.c.l.b16 %v186
    %v815 = vunpack.c.l.b16 %v187
    %v816 = vunpack.c.l.b16 %v188
    %v817 = vunpack.c.l.b16 %v189
    %v818 = vunpack.c.l.b16 %v190
    %v819 = vunpack.c.l.b16 %v191
    %v820 = vunpack.c.l.b16 %v192
    %v821 = vunpack.c.l.b16 %v193
    %v822 = vunpack.c.l.b16 %v194
    %v823 = vunpack.c.l.b16 %v195
    %v824 = vunpack.c.l.b16 %v196
    %v825 = vunpack.c.l.b16 %v197
    %v826 = vunpack.c.l.b16 %v198
    %v827 = vunpack.c.l.b16 %v199
    %v828 = vunpack.c.l.b16 %v200
    %v829 = vunpack.c.l.b16 %v201
    %v830 = vunpack.c.l.b16 %v202
    %v831 = vunpack.c.l.b16 %v203
    %v832 = vunpack.c.l.b16 %v204
    %v833 = vunpack.c.l.b16 %v205
    %v834 = vunpack.c.l.b16 %v206
    %v835 = vunpack.c.l.b16 %v207
    %v836 = vunpack.c.l.b16 %v208
    %v837 = vunpack.c.l.b16 %v209
    %v838 = vunpack.c.l.b16 %v210
    %v839 = vunpack.c.l.b16 %v211
    %v840 = vunpack.c.l.b16 %v212
    %v841 = vunpack.c.l.b16 %v213
    %v842 = vunpack.c.l.b16 %v214
    %v843 = vunpack.c.l.b16 %v215
    %v844 = vunpack.c.l.b16 %v216
    %v845 = vunpack.c.l.b16 %v217
    %v846 = vunpack.c.l.b16 %v218
    %v847 = vunpack.c.l.b16 %v219
    %v848 = vunpack.c.l.b16 %v220
    %v849 = vunpack.c.l.b16 %v221
    %v850 = vunpack.c.l.b16 %v222
    %v851 = vunpack.c.l.b16 %v223
    %v852 = vunpack.c.l.b16 %v224
    %v853 = vunpack.c.l.b16 %v225
    %v854 = vunpack.c.l.b16 %v226
    %v855 = vunpack.c.l.b16 %v227
    %v856 = vunpack.c.l.b16 %v228
    %v857 = vunpack.c.l.b16 %v229
    %v858 = vunpack.c.l.b16 %v230
    %v859 = vunpack.c.l.b16 %v231
    %v860 = vunpack.c.l.b16 %v232
    %v861 = vunpack.c.l.b16 %v233
    %v862 = vunpack.c.l.b16 %v234
    %v863 = vunpack.c.l.b16 %v235
    %v864 = vunpack.c.l.b16 %v236
    %v865 = vunpack.c.l.b16 %v237
    %v866 = vunpack.c.l.b16 %v238
    %v867 = vunpack.c.l.b16 %v239
    %v868 = vunpack.c.l.b16 %v240
    %v869 = vunpack.c.l.b16 %v241
    %v870 = vunpack.c.l.b16 %v242
    %v871 = vunpack.c.l.b16 %v243
    %v872 = vunpack.c.l.b16 %v244
    %v873 = vunpack.c.l.b16 %v245
    %v874 = vunpack.c.l.b16 %v246
    %v875 = vunpack.c.l.b16 %v247
    %v876 = vunpack.c.l.b16 %v248
    %v877 = vunpack.c.l.b16 %v249
    %v878 = vunpack.c.l.b16 %v250
    %v879 = vunpack.c.l.b16 %v251
    %v880 = vunpack.c.l.b16 %v252
    %v881 = vunpack.c.l.b16 %v253
    %v882 = vunpack.c.l.b16 %v254
    %v883 = vunpack.c.l.b16 %v255
    %v884 = vunpack.c.l.b16 %v256
    %v885 = vunpack.c.l.b16 %v257
    %v886 = vunpack.c.l.b16 %v258
    %v887 = vunpack.c.l.b16 %v259
    %v888 = vunpack.c.l.b16 %v260
    %v889 = vunpack.c.l.b16 %v261
    %v890 = vunpack.c.l.b16 %v262
    %v891 = vunpack.c.l.b16 %v263
    %v892 = vunpack.c.l.b16 %v264
    %v893 = vunpack.c.l.b16 %v265
    %v894 = vunpack.c.l.b16 %v266
    %v895 = vunpack.c.l.b16 %v267
    %v896 = vunpack.c.l.b16 %v268
    %v897 = vunpack.c.l.b16 %v269
    %v898 = vunpack.c.l.b16 %v270
    %v899 = vunpack.c.l.b16 %v271
    %v900 = vunpack.c.l.b16 %v272
    %v901 = vunpack.c.l.b16 %v273
    %v902 = vunpack.c.l.b16 %v274
    %v903 = vunpack.c.l.b16 %v275
    %v904 = vunpack.c.l.b16 %v276
    %v905 = vunpack.c.l.b16 %v277
    %v906 = vunpack.c.l.b16 %v278
    %v907 = vunpack.c.l.b16 %v279
    %v908 = vunpack.c.l.b16 %v280
    %v909 = vunpack.c.l.b16 %v281
    %v910 = vunpack.c.l.b16 %v282
    %v911 = vunpack.c.l.b16 %v283
    %v912 = vunpack.c.l.b16 %v284
    %v913 = vunpack.c.l.b16 %v285
    %v914 = vunpack.c.l.b16 %v286
    %v915 = vunpack.c.l.b16 %v287
    %v916 = vunpack.c.l.b16 %v288
    %v917 = vunpack.c.l.b16 %v289
    %v918 = vunpack.c.l.b16 %v290
    %v919 = vunpack.c.l.b16 %v291
    %v920 = vunpack.c.l.b16 %v292
    %v921 = vunpack.c.l.b16 %v293
    %v922 = vunpack.c.l.b16 %v294
    %v923 = vunpack.c.l.b16 %v295
    %v924 = vunpack.c.l.b16 %v296
    %v925 = vunpack.c.l.b16 %v297
    %v926 = vunpack.c.l.b16 %v298
    %v927 = vunpack.c.l.b16 %v299
    %v928 = vunpack.c.l.b16 %v300
    %v929 = vunpack.c.l.b16 %v301
    %v930 = vunpack.c.l.b16 %v302
    %v931 = vunpack.c.l.b16 %v303
    %v932 = vunpack.c.l.b16 %v304
    %v933 = vunpack.c.l.b16 %v305
    %v934 = vunpack.c.l.b16 %v306
    %v935 = vunpack.c.l.b16 %v307
    %v936 = vunpack.c.l.b16 %v308
    %v937 = vunpack.c.l.b16 %v309
    %v938 = vunpack.c.l.b16 %v310
    %v939 = vunpack.c.l.b16 %v311
    %v940 = vunpack.c.l.b16 %v312
    %v941 = vunpack.c.l.b16 %v313
    %v942 = vunpack.c.l.b16 %v314
    %v943 = vunpack.c.l.b16 %v315
    %v944 = vunpack.c.l.b16 %v316
    %v945 = vunpack.c.l.b16 %v317
    %v946 = vunpack.c.l.b16 %v318
    %v947 = vunpack.c.l.b16 %v319
    %v948 = vunpack.c.l.b16 %v320
    %v949 = vunpack.c.l.b16 %v321
    %v950 = vunpack.c.l.b16 %v322
    %v951 = vunpack.c.l.b16 %v323
    %v952 = vunpack.c.l.b16 %v324
    %v953 = vunpack.c.l.b16 %v325
    %v954 = vunpack.c.l.b16 %v326
    %v955 = vunpack.c.l.b16 %v327
    %v956 = vunpack.c.l.b16 %v328
    %v957 = vunpack.c.l.b16 %v329
    %v958 = vunpack.c.l.b16 %v330
    %v959 = vunpack.c.l.b16 %v331
    %v960 = vunpack.c.l.b16 %v332
    %v961 = vunpack.c.l.b16 %v333
    %v962 = vunpack.c.l.b16 %v334
    %v963 = vunpack.c.l.b16 %v335
    %v964 = vunpack.c.l.b16 %v336
    %v965 = vunpack.c.l.b16 %v337
    %v966 = vunpack.c.l.b16 %v338
    %v967 = vunpack.c.l.b16 %v339
    %v968 = vunpack.c.l.b16 %v340
    %v969 = vunpack.c.l.b16 %v341
    %v970 = vunpack.c.l.b16 %v342
    %v971 = vunpack.c.l.b16 %v343
    %v972 = vunpack.c.l.b16 %v344
    %v973 = vunpack.c.l.b16 %v345
    %v974 = vunpack.c.l.b16 %v346
    %v975 = vunpack.c.l.b16 %v347
    %v976 = vunpack.c.l.b16 %v348
    %v977 = vunpack.c.l.b16 %v349
    %v978 = vunpack.c.l.b16 %v350
    %v979 = vunpack.c.l.b16 %v351
    %v980 = vunpack.c.l.b16 %v352
    %v981 = vunpack.c.l.b16 %v353
    %v982 = vunpack.c.l.b16 %v354
    %v983 = vunpack.c.l.b16 %v355
    %v984 = vunpack.c.l.b16 %v356
    %v985 = vunpack.c.l.b16 %v357
    %v986 = vpack.c.b16 %v731, %v730
    %v987 = vpack.c.b16 %v733, %v732
    %v988 = vpack.c.b16 %v735, %v734
    %v989 = vpack.c.b16 %v737, %v736
    %v990 = vpack.c.b16 %v739, %v738
    %v991 = vpack.c.b16 %v741, %v740
    %v992 = vpack.c.b16 %v743, %v742
    %v993 = vpack.c.b16 %v745, %v744
    %v994 = vpack.c.b16 %v747, %v746
    %v995 = vpack.c.b16 %v749, %v748
    %v996 = vpack.c.b16 %v751, %v750
    %v997 = vpack.c.b16 %v753, %v752
    %v998 = vpack.c.b16 %v755, %v754
    %v999 = vpack.c.b16 %v757, %v756
    %v1000 = vpack.c.b16 %v759, %v758
    %v1001 = vpack.c.b16 %v761, %v760
    %v1002 = vpack.c.b16 %v763, %v762
    %v1003 = vpack.c.b16 %v765, %v764
    %v1004 = vpack.c.b16 %v767, %v766
    %v1005 = vpack.c.b16 %v769, %v768
    %v1006 = vpack.c.b16 %v771, %v770
    %v1007 = vpack.c.b16 %v773, %v772
    %v1008 = vpack.c.b16 %v775, %v774
    %v1009 = vpack.c.b16 %v777, %v776
    %v1010 = vpack.c.b16 %v779, %v778
    %v1011 = vpack.c.b16 %v781, %v780
    %v1012 = vpack.c.b16 %v783, %v782
    %v1013 = vpack.c.b16 %v785, %v784
    %v1014 = vpack.c.b16 %v787, %v786
    %v1015 = vpack.c.b16 %v789, %v788
    %v1016 = vpack.c.b16 %v791, %v790
    %v1017 = vpack.c.b16 %v793, %v792
    %v1018 = vpack.c.b16 %v795, %v794
    %v1019 = vpack.c.b16 %v797, %v796
    %v1020 = vpack.c.b16 %v799, %v798
    %v1021 = vpack.c.b16 %v801, %v800
    %v1022 = vpack.c.b16 %v803, %v802
    %v1023 = vpack.c.b16 %v805, %v804
    %v1024 = vpack.c.b16 %v807, %v806
    %v1025 = vpack.c.b16 %v809, %v808
    %v1026 = vpack.c.b16 %v811, %v810
    %v1027 = vpack.c.b16 %v813, %v812
    %v1028 = vpack.c.b16 %v815, %v814
    %v1029 = vpack.c.b16 %v817, %v816
    %v1030 = vpack.c.b16 %v819, %v818
    %v1031 = vpack.c.b16 %v821, %v820
    %v1032 = vpack.c.b16 %v823, %v822
    %v1033 = vpack.c.b16 %v825, %v824
    %v1034 = vpack.c.b16 %v827, %v826
    %v1035 = vpack.c.b16 %v829, %v828
    %v1036 = vpack.c.b16 %v831, %v830
    %v1037 = vpack.c.b16 %v833, %v832
    %v1038 = vpack.c.b16 %v835, %v834
    %v1039 = vpack.c.b16 %v837, %v836
    %v1040 = vpack.c.b16 %v839, %v838
    %v1041 = vpack.c.b16 %v841, %v840
    %v1042 = vpack.c.b16 %v843, %v842
    %v1043 = vpack.c.b16 %v845, %v844
    %v1044 = vpack.c.b16 %v847, %v846
    %v1045 = vpack.c.b16 %v849, %v848
    %v1046 = vpack.c.b16 %v851, %v850
    %v1047 = vpack.c.b16 %v853, %v852
    %v1048 = vpack.c.b16 %v855, %v854
    %v1049 = vpack.c.b16 %v857, %v856
    %v1050 = vpack.c.b16 %v859, %v858
    %v1051 = vpack.c.b16 %v861, %v860
    %v1052 = vpack.c.b16 %v863, %v862
    %v1053 = vpack.c.b16 %v865, %v864
    %v1054 = vpack.c.b16 %v867, %v866
    %v1055 = vpack.c.b16 %v869, %v868
    %v1056 = vpack.c.b16 %v871, %v870
    %v1057 = vpack.c.b16 %v873, %v872
    %v1058 = vpack.c.b16 %v875, %v874
    %v1059 = vpack.c.b16 %v877, %v876
    %v1060 = vpack.c.b16 %v879, %v878
    %v1061 = vpack.c.b16 %v881, %v880
    %v1062 = vpack.c.b16 %v883, %v882
    %v1063 = vpack.c.b16 %v885, %v884
    %v1064 = vpack.c.b16 %v887, %v886
    %v1065 = vpack.c.b16 %v889, %v888
    %v1066 = vpack.c.b16 %v891, %v890
    %v1067 = vpack.c.b16 %v893, %v892
    %v1068 = vpack.c.b16 %v895, %v894
    %v1069 = vpack.c.b16 %v897, %v896
    %v1070 = vpack.c.b16 %v899, %v898
    %v1071 = vpack.c.b16 %v901, %v900
    %v1072 = vpack.c.b16 %v903, %v902
    %v1073 = vpack.c.b16 %v905, %v904
    %v1074 = vpack.c.b16 %v907, %v906
    %v1075 = vpack.c.b16 %v909, %v908
    %v1076 = vpack.c.b16 %v911, %v910
    %v1077 = vpack.c.b16 %v913, %v912
    %v1078 = vpack.c.b16 %v915, %v914
    %v1079 = vpack.c.b16 %v917, %v916
    %v1080 = vpack.c.b16 %v919, %v918
    %v1081 = vpack.c.b16 %v921, %v920
    %v1082 = vpack.c.b16 %v923, %v922
    %v1083 = vpack.c.b16 %v925, %v924
    %v1084 = vpack.c.b16 %v927, %v926
    %v1085 = vpack.c.b16 %v929, %v928
    %v1086 = vpack.c.b16 %v931, %v930
    %v1087 = vpack.c.b16 %v933, %v932
    %v1088 = vpack.c.b16 %v935, %v934
    %v1089 = vpack.c.b16 %v937, %v936
    %v1090 = vpack.c.b16 %v939, %v938
    %v1091 = vpack.c.b16 %v941, %v940
    %v1092 = vpack.c.b16 %v943, %v942
    %v1093 = vpack.c.b16 %v945, %v944
    %v1094 = vpack.c.b16 %v947, %v946
    %v1095 = vpack.c.b16 %v949, %v948
    %v1096 = vpack.c.b16 %v951, %v950
    %v1097 = vpack.c.b16 %v953, %v952
    %v1098 = vpack.c.b16 %v955, %v954
    %v1099 = vpack.c.b16 %v957, %v956
    %v1100 = vpack.c.b16 %v959, %v958
    %v1101 = vpack.c.b16 %v961, %v960
    %v1102 = vpack.c.b16 %v963, %v962
    %v1103 = vpack.c.b16 %v965, %v964
    %v1104 = vpack.c.b16 %v967, %v966
    %v1105 = vpack.c.b16 %v969, %v968
    %v1106 = vpack.c.b16 %v971, %v970
    %v1107 = vpack.c.b16 %v973, %v972
    %v1108 = vpack.c.b16 %v975, %v974
    %v1109 = vpack.c.b16 %v977, %v976
    %v1110 = vpack.c.b16 %v979, %v978
    %v1111 = vpack.c.b16 %v981, %v980
    %v1112 = vpack.c.b16 %v983, %v982
    %v1113 = vpack.c.b16 %v985, %v984
    %1242 = vmatprep.subr.bf16.mxu0 0
    %1243 = vmatpush1.bf16.msra.mxu0 %v986
    %1244 = vmatprep.subr.bf16.mxu0 0
    %1245 = vmatpush1.bf16.msra.mxu0 %v987
    %1246 = vmatprep.subr.bf16.mxu0 0
    %1247 = vmatpush1.bf16.msra.mxu0 %v988
    %1248 = vmatprep.subr.bf16.mxu0 0
    %1249 = vmatpush1.bf16.msra.mxu0 %v989
    %1250 = vmatprep.subr.bf16.mxu0 0
    %1251 = vmatpush1.bf16.msra.mxu0 %v990
    %1252 = vmatprep.subr.bf16.mxu0 0
    %1253 = vmatpush1.bf16.msra.mxu0 %v991
    %1254 = vmatprep.subr.bf16.mxu0 0
    %1255 = vmatpush1.bf16.msra.mxu0 %v992
    %1256 = vmatprep.subr.bf16.mxu0 0
    %1257 = vmatpush1.bf16.msra.mxu0 %v993
    %1258 = vmatprep.subr.bf16.mxu0 0
    %1259 = vmatpush1.bf16.msra.mxu0 %v994
    %1260 = vmatprep.subr.bf16.mxu0 0
    %1261 = vmatpush1.bf16.msra.mxu0 %v995
    %1262 = vmatprep.subr.bf16.mxu0 0
    %1263 = vmatpush1.bf16.msra.mxu0 %v996
    %1264 = vmatprep.subr.bf16.mxu0 0
    %1265 = vmatpush1.bf16.msra.mxu0 %v997
    %1266 = vmatprep.subr.bf16.mxu0 0
    %1267 = vmatpush1.bf16.msra.mxu0 %v998
    %1268 = vmatprep.subr.bf16.mxu0 0
    %1269 = vmatpush1.bf16.msra.mxu0 %v999
    %1270 = vmatprep.subr.bf16.mxu0 0
    %1271 = vmatpush1.bf16.msra.mxu0 %v1000
    %1272 = vmatprep.subr.bf16.mxu0 0
    %1273 = vmatpush1.bf16.msra.mxu0 %v1001
    %1274 = vmatprep.mubr.bf16.mxu0 %v397
    %1275 = vmatmul.mubr.bf16.gmra.mrb[0].mxu0 %v383
    %v1276 = vpop.f32.mrb[0].mxu0
    %v1277 = vadd.f32 0.0, %v1276
    %v1278 = vpop.f32.mrb[0].mxu0
    %v1279 = vpop.f32.mrb[0].mxu0
    %v1280 = vpop.f32.mrb[0].mxu0
    %1281 = vdwg.mxu0
    %1282 = vmatprep.subr.bf16.mxu0 0
    %1283 = vmatpush1.bf16.msra.mxu0 %v1002
    %1284 = vmatprep.subr.bf16.mxu0 0
    %1285 = vmatpush1.bf16.msra.mxu0 %v1003
    %1286 = vmatprep.subr.bf16.mxu0 0
    %1287 = vmatpush1.bf16.msra.mxu0 %v1004
    %1288 = vmatprep.subr.bf16.mxu0 0
    %1289 = vmatpush1.bf16.msra.mxu0 %v1005
    %1290 = vmatprep.subr.bf16.mxu0 0
    %1291 = vmatpush1.bf16.msra.mxu0 %v1006
    %1292 = vmatprep.subr.bf16.mxu0 0
    %1293 = vmatpush1.bf16.msra.mxu0 %v1007
    %1294 = vmatprep.subr.bf16.mxu0 0
    %1295 = vmatpush1.bf16.msra.mxu0 %v1008
    %1296 = vmatprep.subr.bf16.mxu0 0
    %1297 = vmatpush1.bf16.msra.mxu0 %v1009
    %1298 = vmatprep.subr.bf16.mxu0 0
    %1299 = vmatpush1.bf16.msra.mxu0 %v1010
    %1300 = vmatprep.subr.bf16.mxu0 0
    %1301 = vmatpush1.bf16.msra.mxu0 %v1011
    %1302 = vmatprep.subr.bf16.mxu0 0
    %1303 = vmatpush1.bf16.msra.mxu0 %v1012
    %1304 = vmatprep.subr.bf16.mxu0 0
    %1305 = vmatpush1.bf16.msra.mxu0 %v1013
    %1306 = vmatprep.subr.bf16.mxu0 0
    %1307 = vmatpush1.bf16.msra.mxu0 %v1014
    %1308 = vmatprep.subr.bf16.mxu0 0
    %1309 = vmatpush1.bf16.msra.mxu0 %v1015
    %1310 = vmatprep.subr.bf16.mxu0 0
    %1311 = vmatpush1.bf16.msra.mxu0 %v1016
    %1312 = vmatprep.subr.bf16.mxu0 0
    %1313 = vmatpush1.bf16.msra.mxu0 %v1017
    %1314 = vmatprep.mubr.bf16.mxu0 %v407
    %1315 = vmatmul.mubr.bf16.gmra.mrb[0].mxu0 %v405
    %v1316 = vpop.f32.mrb[0].mxu0
    %v1317 = vadd.f32 %v1277, %v1316
    %v1318 = vpop.f32.mrb[0].mxu0
    %v1319 = vpop.f32.mrb[0].mxu0
    %v1320 = vpop.f32.mrb[0].mxu0
    %1321 = vdwg.mxu0
    %1322 = vmatprep.subr.bf16.mxu0 0
    %1323 = vmatpush1.bf16.msra.mxu0 %v1018
    %1324 = vmatprep.subr.bf16.mxu0 0
    %1325 = vmatpush1.bf16.msra.mxu0 %v1019
    %1326 = vmatprep.subr.bf16.mxu0 0
    %1327 = vmatpush1.bf16.msra.mxu0 %v1020
    %1328 = vmatprep.subr.bf16.mxu0 0
    %1329 = vmatpush1.bf16.msra.mxu0 %v1021
    %1330 = vmatprep.subr.bf16.mxu0 0
    %1331 = vmatpush1.bf16.msra.mxu0 %v1022
    %1332 = vmatprep.subr.bf16.mxu0 0
    %1333 = vmatpush1.bf16.msra.mxu0 %v1023
    %1334 = vmatprep.subr.bf16.mxu0 0
    %1335 = vmatpush1.bf16.msra.mxu0 %v1024
    %1336 = vmatprep.subr.bf16.mxu0 0
    %1337 = vmatpush1.bf16.msra.mxu0 %v1025
    %1338 = vmatprep.subr.bf16.mxu0 0
    %1339 = vmatpush1.bf16.msra.mxu0 %v1026
    %1340 = vmatprep.subr.bf16.mxu0 0
    %1341 = vmatpush1.bf16.msra.mxu0 %v1027
    %1342 = vmatprep.subr.bf16.mxu0 0
    %1343 = vmatpush1.bf16.msra.mxu0 %v1028
    %1344 = vmatprep.subr.bf16.mxu0 0
    %1345 = vmatpush1.bf16.msra.mxu0 %v1029
    %1346 = vmatprep.subr.bf16.mxu0 0
    %1347 = vmatpush1.bf16.msra.mxu0 %v1030
    %1348 = vmatprep.subr.bf16.mxu0 0
    %1349 = vmatpush1.bf16.msra.mxu0 %v1031
    %1350 = vmatprep.subr.bf16.mxu0 0
    %1351 = vmatpush1.bf16.msra.mxu0 %v1032
    %1352 = vmatprep.subr.bf16.mxu0 0
    %1353 = vmatpush1.bf16.msra.mxu0 %v1033
    %1354 = vmatprep.mubr.bf16.mxu0 %v404
    %1355 = vmatmul.mubr.bf16.gmra.mrb[0].mxu0 %v390
    %v1356 = vpop.f32.mrb[0].mxu0
    %v1357 = vadd.f32 %v1317, %v1356
    %v1358 = vpop.f32.mrb[0].mxu0
    %v1359 = vpop.f32.mrb[0].mxu0
    %v1360 = vpop.f32.mrb[0].mxu0
    %1361 = vdwg.mxu0
    %1362 = vmatprep.subr.bf16.mxu0 0
    %1363 = vmatpush1.bf16.msra.mxu0 %v1034
    %1364 = vmatprep.subr.bf16.mxu0 0
    %1365 = vmatpush1.bf16.msra.mxu0 %v1035
    %1366 = vmatprep.subr.bf16.mxu0 0
    %1367 = vmatpush1.bf16.msra.mxu0 %v1036
    %1368 = vmatprep.subr.bf16.mxu0 0
    %1369 = vmatpush1.bf16.msra.mxu0 %v1037
    %1370 = vmatprep.subr.bf16.mxu0 0
    %1371 = vmatpush1.bf16.msra.mxu0 %v1038
    %1372 = vmatprep.subr.bf16.mxu0 0
    %1373 = vmatpush1.bf16.msra.mxu0 %v1039
    %1374 = vmatprep.subr.bf16.mxu0 0
    %1375 = vmatpush1.bf16.msra.mxu0 %v1040
    %1376 = vmatprep.subr.bf16.mxu0 0
    %1377 = vmatpush1.bf16.msra.mxu0 %v1041
    %1378 = vmatprep.subr.bf16.mxu0 0
    %1379 = vmatpush1.bf16.msra.mxu0 %v1042
    %1380 = vmatprep.subr.bf16.mxu0 0
    %1381 = vmatpush1.bf16.msra.mxu0 %v1043
    %1382 = vmatprep.subr.bf16.mxu0 0
    %1383 = vmatpush1.bf16.msra.mxu0 %v1044
    %1384 = vmatprep.subr.bf16.mxu0 0
    %1385 = vmatpush1.bf16.msra.mxu0 %v1045
    %1386 = vmatprep.subr.bf16.mxu0 0
    %1387 = vmatpush1.bf16.msra.mxu0 %v1046
    %1388 = vmatprep.subr.bf16.mxu0 0
    %1389 = vmatpush1.bf16.msra.mxu0 %v1047
    %1390 = vmatprep.subr.bf16.mxu0 0
    %1391 = vmatpush1.bf16.msra.mxu0 %v1048
    %1392 = vmatprep.subr.bf16.mxu0 0
    %1393 = vmatpush1.bf16.msra.mxu0 %v1049
    %1394 = vmatprep.mubr.bf16.mxu0 %v408
    %1395 = vmatmul.mubr.bf16.gmra.mrb[0].mxu0 %v406
    %v1396 = vpop.f32.mrb[0].mxu0
    %v1397 = vadd.f32 %v1357, %v1396
    %v1398 = vpop.f32.mrb[0].mxu0
    %v1399 = vpop.f32.mrb[0].mxu0
    %v1400 = vpop.f32.mrb[0].mxu0
    %1401 = vdwg.mxu0
    %1402 = vmatprep.subr.bf16.mxu0 0
    %1403 = vmatpush1.bf16.msra.mxu0 %v1050
    %1404 = vmatprep.subr.bf16.mxu0 0
    %1405 = vmatpush1.bf16.msra.mxu0 %v1051
    %1406 = vmatprep.subr.bf16.mxu0 0
    %1407 = vmatpush1.bf16.msra.mxu0 %v1052
    %1408 = vmatprep.subr.bf16.mxu0 0
    %1409 = vmatpush1.bf16.msra.mxu0 %v1053
    %1410 = vmatprep.subr.bf16.mxu0 0
    %1411 = vmatpush1.bf16.msra.mxu0 %v1054
    %1412 = vmatprep.subr.bf16.mxu0 0
    %1413 = vmatpush1.bf16.msra.mxu0 %v1055
    %1414 = vmatprep.subr.bf16.mxu0 0
    %1415 = vmatpush1.bf16.msra.mxu0 %v1056
    %1416 = vmatprep.subr.bf16.mxu0 0
    %1417 = vmatpush1.bf16.msra.mxu0 %v1057
    %1418 = vmatprep.subr.bf16.mxu0 0
    %1419 = vmatpush1.bf16.msra.mxu0 %v1058
    %1420 = vmatprep.subr.bf16.mxu0 0
    %1421 = vmatpush1.bf16.msra.mxu0 %v1059
    %1422 = vmatprep.subr.bf16.mxu0 0
    %1423 = vmatpush1.bf16.msra.mxu0 %v1060
    %1424 = vmatprep.subr.bf16.mxu0 0
    %1425 = vmatpush1.bf16.msra.mxu0 %v1061
    %1426 = vmatprep.subr.bf16.mxu0 0
    %1427 = vmatpush1.bf16.msra.mxu0 %v1062
    %1428 = vmatprep.subr.bf16.mxu0 0
    %1429 = vmatpush1.bf16.msra.mxu0 %v1063
    %1430 = vmatprep.subr.bf16.mxu0 0
    %1431 = vmatpush1.bf16.msra.mxu0 %v1064
    %1432 = vmatprep.subr.bf16.mxu0 0
    %1433 = vmatpush1.bf16.msra.mxu0 %v1065
    %1434 = vmatprep.mubr.bf16.mxu0 %v446
    %1435 = vmatmul.mubr.bf16.gmra.mrb[0].mxu0 %v432
    %v1436 = vpop.f32.mrb[0].mxu0
    %v1437 = vadd.f32 %v1397, %v1436
    %v1438 = vpop.f32.mrb[0].mxu0
    %v1439 = vpop.f32.mrb[0].mxu0
    %v1440 = vpop.f32.mrb[0].mxu0
    %1441 = vdwg.mxu0
    %1442 = vmatprep.subr.bf16.mxu0 0
    %1443 = vmatpush1.bf16.msra.mxu0 %v1066
    %1444 = vmatprep.subr.bf16.mxu0 0
    %1445 = vmatpush1.bf16.msra.mxu0 %v1067
    %1446 = vmatprep.subr.bf16.mxu0 0
    %1447 = vmatpush1.bf16.msra.mxu0 %v1068
    %1448 = vmatprep.subr.bf16.mxu0 0
    %1449 = vmatpush1.bf16.msra.mxu0 %v1069
    %1450 = vmatprep.subr.bf16.mxu0 0
    %1451 = vmatpush1.bf16.msra.mxu0 %v1070
    %1452 = vmatprep.subr.bf16.mxu0 0
    %1453 = vmatpush1.bf16.msra.mxu0 %v1071
    %1454 = vmatprep.subr.bf16.mxu0 0
    %1455 = vmatpush1.bf16.msra.mxu0 %v1072
    %1456 = vmatprep.subr.bf16.mxu0 0
    %1457 = vmatpush1.bf16.msra.mxu0 %v1073
    %1458 = vmatprep.subr.bf16.mxu0 0
    %1459 = vmatpush1.bf16.msra.mxu0 %v1074
    %1460 = vmatprep.subr.bf16.mxu0 0
    %1461 = vmatpush1.bf16.msra.mxu0 %v1075
    %1462 = vmatprep.subr.bf16.mxu0 0
    %1463 = vmatpush1.bf16.msra.mxu0 %v1076
    %1464 = vmatprep.subr.bf16.mxu0 0
    %1465 = vmatpush1.bf16.msra.mxu0 %v1077
    %1466 = vmatprep.subr.bf16.mxu0 0
    %1467 = vmatpush1.bf16.msra.mxu0 %v1078
    %1468 = vmatprep.subr.bf16.mxu0 0
    %1469 = vmatpush1.bf16.msra.mxu0 %v1079
    %1470 = vmatprep.subr.bf16.mxu0 0
    %1471 = vmatpush1.bf16.msra.mxu0 %v1080
    %1472 = vmatprep.subr.bf16.mxu0 0
    %1473 = vmatpush1.bf16.msra.mxu0 %v1081
    %1474 = vmatprep.mubr.bf16.mxu0 %v456
    %1475 = vmatmul.mubr.bf16.gmra.mrb[0].mxu0 %v454
    %v1476 = vpop.f32.mrb[0].mxu0
    %v1477 = vadd.f32 %v1437, %v1476
    %v1478 = vpop.f32.mrb[0].mxu0
    %v1479 = vpop.f32.mrb[0].mxu0
    %v1480 = vpop.f32.mrb[0].mxu0
    %1481 = vdwg.mxu0
    %1482 = vmatprep.subr.bf16.mxu0 0
    %1483 = vmatpush1.bf16.msra.mxu0 %v1082
    %1484 = vmatprep.subr.bf16.mxu0 0
    %1485 = vmatpush1.bf16.msra.mxu0 %v1083
    %1486 = vmatprep.subr.bf16.mxu0 0
    %1487 = vmatpush1.bf16.msra.mxu0 %v1084
    %1488 = vmatprep.subr.bf16.mxu0 0
    %1489 = vmatpush1.bf16.msra.mxu0 %v1085
    %1490 = vmatprep.subr.bf16.mxu0 0
    %1491 = vmatpush1.bf16.msra.mxu0 %v1086
    %1492 = vmatprep.subr.bf16.mxu0 0
    %1493 = vmatpush1.bf16.msra.mxu0 %v1087
    %1494 = vmatprep.subr.bf16.mxu0 0
    %1495 = vmatpush1.bf16.msra.mxu0 %v1088
    %1496 = vmatprep.subr.bf16.mxu0 0
    %1497 = vmatpush1.bf16.msra.mxu0 %v1089
    %1498 = vmatprep.subr.bf16.mxu0 0
    %1499 = vmatpush1.bf16.msra.mxu0 %v1090
    %1500 = vmatprep.subr.bf16.mxu0 0
    %1501 = vmatpush1.bf16.msra.mxu0 %v1091
    %1502 = vmatprep.subr.bf16.mxu0 0
    %1503 = vmatpush1.bf16.msra.mxu0 %v1092
    %1504 = vmatprep.subr.bf16.mxu0 0
    %1505 = vmatpush1.bf16.msra.mxu0 %v1093
    %1506 = vmatprep.subr.bf16.mxu0 0
    %1507 = vmatpush1.bf16.msra.mxu0 %v1094
    %1508 = vmatprep.subr.bf16.mxu0 0
    %1509 = vmatpush1.bf16.msra.mxu0 %v1095
    %1510 = vmatprep.subr.bf16.mxu0 0
    %1511 = vmatpush1.bf16.msra.mxu0 %v1096
    %1512 = vmatprep.subr.bf16.mxu0 0
    %1513 = vmatpush1.bf16.msra.mxu0 %v1097
    %1514 = vmatprep.mubr.bf16.mxu0 %v453
    %1515 = vmatmul.mubr.bf16.gmra.mrb[0].mxu0 %v439
    %v1516 = vpop.f32.mrb[0].mxu0
    %v1517 = vadd.f32 %v1477, %v1516
    %v1518 = vpop.f32.mrb[0].mxu0
    %v1519 = vpop.f32.mrb[0].mxu0
    %v1520 = vpop.f32.mrb[0].mxu0
    %1521 = vdwg.mxu0
    %1522 = vmatprep.subr.bf16.mxu0 0
    %1523 = vmatpush1.bf16.msra.mxu0 %v1098
    %1524 = vmatprep.subr.bf16.mxu0 0
    %1525 = vmatpush1.bf16.msra.mxu0 %v1099
    %1526 = vmatprep.subr.bf16.mxu0 0
    %1527 = vmatpush1.bf16.msra.mxu0 %v1100
    %1528 = vmatprep.subr.bf16.mxu0 0
    %1529 = vmatpush1.bf16.msra.mxu0 %v1101
    %1530 = vmatprep.subr.bf16.mxu0 0
    %1531 = vmatpush1.bf16.msra.mxu0 %v1102
    %1532 = vmatprep.subr.bf16.mxu0 0
    %1533 = vmatpush1.bf16.msra.mxu0 %v1103
    %1534 = vmatprep.subr.bf16.mxu0 0
    %1535 = vmatpush1.bf16.msra.mxu0 %v1104
    %1536 = vmatprep.subr.bf16.mxu0 0
    %1537 = vmatpush1.bf16.msra.mxu0 %v1105
    %1538 = vmatprep.subr.bf16.mxu0 0
    %1539 = vmatpush1.bf16.msra.mxu0 %v1106
    %1540 = vmatprep.subr.bf16.mxu0 0
    %1541 = vmatpush1.bf16.msra.mxu0 %v1107
    %1542 = vmatprep.subr.bf16.mxu0 0
    %1543 = vmatpush1.bf16.msra.mxu0 %v1108
    %1544 = vmatprep.subr.bf16.mxu0 0
    %1545 = vmatpush1.bf16.msra.mxu0 %v1109
    %1546 = vmatprep.subr.bf16.mxu0 0
    %1547 = vmatpush1.bf16.msra.mxu0 %v1110
    %1548 = vmatprep.subr.bf16.mxu0 0
    %1549 = vmatpush1.bf16.msra.mxu0 %v1111
    %1550 = vmatprep.subr.bf16.mxu0 0
    %1551 = vmatpush1.bf16.msra.mxu0 %v1112
    %1552 = vmatprep.subr.bf16.mxu0 0
    %1553 = vmatpush1.bf16.msra.mxu0 %v1113
    %1554 = vmatprep.mubr.bf16.mxu0 %v457
    %1555 = vmatmul.mubr.bf16.gmra.mrb[0].mxu0 %v455
    %v1556 = vpop.f32.mrb[0].mxu0
    %v1557 = vadd.f32 %v1517, %v1556
    %v1558 = vpop.f32.mrb[0].mxu0
    %v1559 = vpop.f32.mrb[0].mxu0
    %v1560 = vpop.f32.mrb[0].mxu0
    %1561 = vdwg.mxu0
    %v1562 = vunpack.c.l.bf16 %v100
    %v1563 = vunpack.c.h.bf16 %v100
    %v1564 = vunpack.c.l.bf16 %v101
    %v1565 = vunpack.c.h.bf16 %v101
    %v1566 = vmul.f32 %v1562, %v1562
    %v1567 = vmul.f32 %v1563, %v1563
    %v1568 = vmul.f32 %v1564, %v1564
    %v1569 = vmul.f32 %v1565, %v1565
    %v1574 = vlaneseq
    %v1575 = vshrl.u32 %v1574, 7
    %v1576 = vsub.s32 0, %v1575
    %v1577 = vrot.slane %v1566, %v1576
    %v1578 = vlaneseq
    %v1579 = vshrl.u32 %v1578, 7
    %v1580 = vsub.s32 2, %v1579
    %v1581 = vrot.slane %v1566, %v1580
    %v1582 = vlaneseq
    %v1583 = vshrl.u32 %v1582, 7
    %v1584 = vsub.s32 4, %v1583
    %v1585 = vrot.slane %v1566, %v1584
    %v1586 = vlaneseq
    %v1587 = vshrl.u32 %v1586, 7
    %v1588 = vsub.s32 6, %v1587
    %v1589 = vrot.slane %v1566, %v1588
    %v1590 = vlaneseq
    %v1591 = vshrl.u32 %v1590, 7
    %v1592 = vsub.s32 0, %v1591
    %v1593 = vrot.slane %v1567, %v1592
    %v1594 = vlaneseq
    %v1595 = vshrl.u32 %v1594, 7
    %v1596 = vsub.s32 2, %v1595
    %v1597 = vrot.slane %v1567, %v1596
    %v1598 = vlaneseq
    %v1599 = vshrl.u32 %v1598, 7
    %v1600 = vsub.s32 4, %v1599
    %v1601 = vrot.slane %v1567, %v1600
    %v1602 = vlaneseq
    %v1603 = vshrl.u32 %v1602, 7
    %v1604 = vsub.s32 6, %v1603
    %v1605 = vrot.slane %v1567, %v1604
    %v1606 = vlaneseq
    %v1607 = vshrl.u32 %v1606, 7
    %v1608 = vsub.s32 0, %v1607
    %v1609 = vrot.slane %v1568, %v1608
    %v1610 = vlaneseq
    %v1611 = vshrl.u32 %v1610, 7
    %v1612 = vsub.s32 2, %v1611
    %v1613 = vrot.slane %v1568, %v1612
    %v1614 = vlaneseq
    %v1615 = vshrl.u32 %v1614, 7
    %v1616 = vsub.s32 4, %v1615
    %v1617 = vrot.slane %v1568, %v1616
    %v1618 = vlaneseq
    %v1619 = vshrl.u32 %v1618, 7
    %v1620 = vsub.s32 6, %v1619
    %v1621 = vrot.slane %v1568, %v1620
    %v1622 = vlaneseq
    %v1623 = vshrl.u32 %v1622, 7
    %v1624 = vsub.s32 0, %v1623
    %v1625 = vrot.slane %v1569, %v1624
    %v1626 = vlaneseq
    %v1627 = vshrl.u32 %v1626, 7
    %v1628 = vsub.s32 2, %v1627
    %v1629 = vrot.slane %v1569, %v1628
    %v1630 = vlaneseq
    %v1631 = vshrl.u32 %v1630, 7
    %v1632 = vsub.s32 4, %v1631
    %v1633 = vrot.slane %v1569, %v1632
    %v1634 = vlaneseq
    %v1635 = vshrl.u32 %v1634, 7
    %v1636 = vsub.s32 6, %v1635
    %v1637 = vrot.slane %v1569, %v1636
    %vm1654 = vcmask 1040384
    %v1655 = vsel %vm1654, %v1577, 0.0
    %v1656 = vsel %vm1654, %v1581, 0.0
    %v1657 = vadd.f32 %v1655, %v1656
    %v1658 = vsel %vm1654, %v1585, 0.0
    %v1659 = vadd.f32 %v1657, %v1658
    %v1660 = vsel %vm1654, %v1589, 0.0
    %v1661 = vadd.f32 %v1659, %v1660
    %v1662 = vsel %vm1654, %v1593, 0.0
    %v1663 = vadd.f32 %v1661, %v1662
    %v1664 = vsel %vm1654, %v1597, 0.0
    %v1665 = vadd.f32 %v1663, %v1664
    %v1666 = vsel %vm1654, %v1601, 0.0
    %v1667 = vadd.f32 %v1665, %v1666
    %v1668 = vsel %vm1654, %v1605, 0.0
    %v1669 = vadd.f32 %v1667, %v1668
    %v1670 = vsel %vm1654, %v1609, 0.0
    %v1671 = vadd.f32 %v1669, %v1670
    %v1672 = vsel %vm1654, %v1613, 0.0
    %v1673 = vadd.f32 %v1671, %v1672
    %v1674 = vsel %vm1654, %v1617, 0.0
    %v1675 = vadd.f32 %v1673, %v1674
    %v1676 = vsel %vm1654, %v1621, 0.0
    %v1677 = vadd.f32 %v1675, %v1676
    %v1678 = vsel %vm1654, %v1625, 0.0
    %v1679 = vadd.f32 %v1677, %v1678
    %v1680 = vsel %vm1654, %v1629, 0.0
    %v1681 = vadd.f32 %v1679, %v1680
    %v1682 = vsel %vm1654, %v1633, 0.0
    %v1683 = vadd.f32 %v1681, %v1682
    %v1684 = vsel %vm1654, %v1637, 0.0
    %v1685 = vadd.f32 %v1683, %v1684
    %1686 = vadd.xlane.f32.xlu0 %v1685
    %v1687 = vpop.xlane.xlu0 %1686
    %v1688 = vmul.f32 %v1557, 0.00048828125
    %v1689 = vmul.f32 %v1557, %v1688
    %v1690 = vsub.f32 %v1687, %v1689
    %v1691 = vmul.f32 %v1690, 0.0004885198
    %v1692 = vrsqrt.pop %v1691
    %v1693 = vld [vmem:[%s2] sm:$0x1]
    %1695 = vset.pattern.permute.xlu0 0
    %1696 = vperm.xlu0 %1695, %v1688
    %v1697 = vpop.permute.xlu0 %1696
    %v1699 = vmul.f32 %v1697, %v1693
    %v1700 = vsub.f32 %v1557, %v1699
    %1702 = vset.pattern.permute.xlu0 0
    %1703 = vperm.xlu0 %1702, %v1692
    %v1704 = vpop.permute.xlu0 %1703
    %v1706 = vmul.f32 %v1700, %v1704
    %v1707 = vld [vmem:[%s3] sm:$0x1]
    %v1708 = vadd.f32 %v1706, %v1707
    %v1709 = vpack.c.bf16 %v1708, %v1708
    %v1710 = vld [vmem:[#allocation7] sm:$0xf]
    %v1711 = vld [vmem:[#allocation7 + $0x4] sm:$0xf]
    %v1712 = vld [vmem:[#allocation7 + $0x8] sm:$0xf]
    %v1713 = vld [vmem:[#allocation7 + $0xc] sm:$0xf]
    %v1714 = vld [vmem:[#allocation7 + $0x10] sm:$0xf]
    %v1715 = vld [vmem:[#allocation7 + $0x14] sm:$0xf]
    %v1716 = vld [vmem:[#allocation7 + $0x18] sm:$0xf]
    %v1717 = vld [vmem:[#allocation7 + $0x1c] sm:$0xf]
    %v1718 = vld [vmem:[#allocation7 + $0x20] sm:$0xf]
    %v1719 = vld [vmem:[#allocation7 + $0x24] sm:$0xf]
    %v1720 = vld [vmem:[#allocation7 + $0x28] sm:$0xf]
    %v1721 = vld [vmem:[#allocation7 + $0x2c] sm:$0xf]
    %v1722 = vld [vmem:[#allocation7 + $0x30] sm:$0xf]
    %v1723 = vld [vmem:[#allocation7 + $0x34] sm:$0xf]
    %v1724 = vld [vmem:[#allocation7 + $0x38] sm:$0xf]
    %v1725 = vld [vmem:[#allocation7 + $0x3c] sm:$0xf]
    %v1726 = vld [vmem:[%s5] sm:$0x1]
    %v1743 = vunpack.c.l.b16 %v1710
    %v1744 = vunpack.c.l.b16 %v1711
    %v1745 = vunpack.c.l.b16 %v1712
    %v1746 = vunpack.c.l.b16 %v1713
    %v1747 = vunpack.c.l.b16 %v1714
    %v1748 = vunpack.c.l.b16 %v1715
    %v1749 = vunpack.c.l.b16 %v1716
    %v1750 = vunpack.c.l.b16 %v1717
    %v1751 = vunpack.c.l.b16 %v1718
    %v1752 = vunpack.c.l.b16 %v1719
    %v1753 = vunpack.c.l.b16 %v1720
    %v1754 = vunpack.c.l.b16 %v1721
    %v1755 = vunpack.c.l.b16 %v1722
    %v1756 = vunpack.c.l.b16 %v1723
    %v1757 = vunpack.c.l.b16 %v1724
    %v1758 = vunpack.c.l.b16 %v1725
    %v1759 = vpack.c.b16 %v1744, %v1743
    %v1760 = vpack.c.b16 %v1746, %v1745
    %v1761 = vpack.c.b16 %v1748, %v1747
    %v1762 = vpack.c.b16 %v1750, %v1749
    %v1763 = vpack.c.b16 %v1752, %v1751
    %v1764 = vpack.c.b16 %v1754, %v1753
    %v1765 = vpack.c.b16 %v1756, %v1755
    %v1766 = vpack.c.b16 %v1758, %v1757
    %1775 = vmatprep.subr.bf16.mxu0 0
    %1776 = vmatpush1.bf16.msra.mxu0 %v1759
    %1777 = vmatprep.subr.bf16.mxu0 0
    %1778 = vmatpush1.bf16.msra.mxu0 %v1760
    %1779 = vmatprep.subr.bf16.mxu0 0
    %1780 = vmatpush1.bf16.msra.mxu0 %v1761
    %1781 = vmatprep.subr.bf16.mxu0 0
    %1782 = vmatpush1.bf16.msra.mxu0 %v1762
    %1783 = vmatprep.subr.bf16.mxu0 0
    %1784 = vmatpush1.bf16.msra.mxu0 %v1763
    %1785 = vmatprep.subr.bf16.mxu0 0
    %1786 = vmatpush1.bf16.msra.mxu0 %v1764
    %1787 = vmatprep.subr.bf16.mxu0 0
    %1788 = vmatpush1.bf16.msra.mxu0 %v1765
    %1789 = vmatprep.subr.bf16.mxu0 0
    %1790 = vmatpush1.bf16.msra.mxu0 %v1766
    %1791 = vmatprep.subr.bf16.mxu0 0
    %1792 = vmatpush1.bf16.msra.mxu0 0
    %1793 = vmatprep.subr.bf16.mxu0 0
    %1794 = vmatpush1.bf16.msra.mxu0 0
    %1795 = vmatprep.subr.bf16.mxu0 0
    %1796 = vmatpush1.bf16.msra.mxu0 0
    %1797 = vmatprep.subr.bf16.mxu0 0
    %1798 = vmatpush1.bf16.msra.mxu0 0
    %1799 = vmatprep.subr.bf16.mxu0 0
    %1800 = vmatpush1.bf16.msra.mxu0 0
    %1801 = vmatprep.subr.bf16.mxu0 0
    %1802 = vmatpush1.bf16.msra.mxu0 0
    %1803 = vmatprep.subr.bf16.mxu0 0
    %1804 = vmatpush1.bf16.msra.mxu0 0
    %1805 = vmatprep.subr.bf16.mxu0 0
    %1806 = vmatpush1.bf16.msra.mxu0 0
    %1807 = vmatprep.mubr.bf16.mxu0 0
    %1808 = vmatmul.mubr.bf16.gmra.mrb[0].mxu0 %v1709
    %v1809 = vpop.f32.mrb[0].mxu0
    %v1810 = vadd.f32 %v1726, %v1809
    %v1811 = vpop.f32.mrb[0].mxu0
    %v1812 = vpop.f32.mrb[0].mxu0
    %v1813 = vpop.f32.mrb[0].mxu0
    %1814 = vdwg.mxu0
    %v1815 = vsel %vm1654, %v1810, -inf
    %1816 = vmax.xlane.f32.xlu0 %v1815
    %v1817 = vpop.xlane.xlu0 %1816
    %v1818 = vrcp.pop %v1817
    %v1819 = vmul.f32 0.8, %v1818
    %v1820 = vmul.f32 %v1810, %v1819
    %v1821 = vtanh.pop %v1820
    %v1822 = vld [vmem:[#allocation8] sm:$0xff]
    %v1823 = vld [vmem:[#allocation8 + $0x8] sm:$0xff]
    %v1824 = vld [vmem:[#allocation8 + $0x10] sm:$0xff]
    %v1825 = vld [vmem:[#allocation8 + $0x18] sm:$0xff]
    %v1826 = vld [vmem:[#allocation8 + $0x20] sm:$0xff]
    %v1827 = vld [vmem:[#allocation8 + $0x28] sm:$0xff]
    %v1828 = vld [vmem:[#allocation8 + $0x30] sm:$0xff]
    %v1829 = vld [vmem:[#allocation8 + $0x38] sm:$0xff]
    %v1830 = vld [vmem:[#allocation8 + $0x40] sm:$0xff]
    %v1831 = vld [vmem:[#allocation8 + $0x48] sm:$0xff]
    %v1832 = vld [vmem:[#allocation8 + $0x50] sm:$0xff]
    %v1833 = vld [vmem:[#allocation8 + $0x58] sm:$0xff]
    %v1834 = vld [vmem:[#allocation8 + $0x60] sm:$0xff]
    %v1835 = vld [vmem:[#allocation8 + $0x68] sm:$0xff]
    %v1836 = vld [vmem:[#allocation8 + $0x70] sm:$0xff]
    %v1837 = vld [vmem:[#allocation8 + $0x78] sm:$0xff]
    %v1838 = vld [vmem:[#allocation8 + $0x80] sm:$0xff]
    %v1839 = vld [vmem:[#allocation8 + $0x88] sm:$0xff]
    %v1840 = vld [vmem:[#allocation8 + $0x90] sm:$0xff]
    %v1841 = vld [vmem:[#allocation8 + $0x98] sm:$0xff]
    %v1842 = vld [vmem:[#allocation8 + $0xa0] sm:$0xff]
    %v1843 = vld [vmem:[#allocation8 + $0xa8] sm:$0xff]
    %v1844 = vld [vmem:[#allocation8 + $0xb0] sm:$0xff]
    %v1845 = vld [vmem:[#allocation8 + $0xb8] sm:$0xff]
    %v1846 = vld [vmem:[#allocation8 + $0xc0] sm:$0xff]
    %v1847 = vld [vmem:[#allocation8 + $0xc8] sm:$0xff]
    %v1848 = vld [vmem:[#allocation8 + $0xd0] sm:$0xff]
    %v1849 = vld [vmem:[#allocation8 + $0xd8] sm:$0xff]
    %v1850 = vld [vmem:[#allocation8 + $0xe0] sm:$0xff]
    %v1851 = vld [vmem:[#allocation8 + $0xe8] sm:$0xff]
    %v1852 = vld [vmem:[#allocation8 + $0xf0] sm:$0xff]
    %v1853 = vld [vmem:[#allocation8 + $0xf8] sm:$0xff]
    %v1854 = vld [vmem:[#allocation8 + $0x100] sm:$0xff]
    %v1855 = vld [vmem:[#allocation8 + $0x108] sm:$0xff]
    %v1856 = vld [vmem:[#allocation8 + $0x110] sm:$0xff]
    %v1857 = vld [vmem:[#allocation8 + $0x118] sm:$0xff]
    %v1858 = vld [vmem:[#allocation8 + $0x120] sm:$0xff]
    %v1859 = vld [vmem:[#allocation8 + $0x128] sm:$0xff]
    %v1860 = vld [vmem:[#allocation8 + $0x130] sm:$0xff]
    %v1861 = vld [vmem:[#allocation8 + $0x138] sm:$0xff]
    %v1862 = vld [vmem:[#allocation8 + $0x140] sm:$0xff]
    %v1863 = vld [vmem:[#allocation8 + $0x148] sm:$0xff]
    %v1864 = vld [vmem:[#allocation8 + $0x150] sm:$0xff]
    %v1865 = vld [vmem:[#allocation8 + $0x158] sm:$0xff]
    %v1866 = vld [vmem:[#allocation8 + $0x160] sm:$0xff]
    %v1867 = vld [vmem:[#allocation8 + $0x168] sm:$0xff]
    %v1868 = vld [vmem:[#allocation8 + $0x170] sm:$0xff]
    %v1869 = vld [vmem:[#allocation8 + $0x178] sm:$0xff]
    %v1870 = vld [vmem:[#allocation8 + $0x180] sm:$0xff]
    %v1871 = vld [vmem:[#allocation8 + $0x188] sm:$0xff]
    %v1872 = vld [vmem:[#allocation8 + $0x190] sm:$0xff]
    %v1873 = vld [vmem:[#allocation8 + $0x198] sm:$0xff]
    %v1874 = vld [vmem:[#allocation8 + $0x1a0] sm:$0xff]
    %v1875 = vld [vmem:[#allocation8 + $0x1a8] sm:$0xff]
    %v1876 = vld [vmem:[#allocation8 + $0x1b0] sm:$0xff]
    %v1877 = vld [vmem:[#allocation8 + $0x1b8] sm:$0xff]
    %v1878 = vld [vmem:[#allocation8 + $0x1c0] sm:$0xff]
    %v1879 = vld [vmem:[#allocation8 + $0x1c8] sm:$0xff]
    %v1880 = vld [vmem:[#allocation8 + $0x1d0] sm:$0xff]
    %v1881 = vld [vmem:[#allocation8 + $0x1d8] sm:$0xff]
    %v1882 = vld [vmem:[#allocation8 + $0x1e0] sm:$0xff]
    %v1883 = vld [vmem:[#allocation8 + $0x1e8] sm:$0xff]
    %v1884 = vld [vmem:[#allocation8 + $0x1f0] sm:$0xff]
    %v1885 = vld [vmem:[#allocation8 + $0x1f8] sm:$0xff]
    %v1886 = vld [vmem:[#allocation8 + $0x200] sm:$0xff]
    %v1887 = vld [vmem:[#allocation8 + $0x208] sm:$0xff]
    %v1888 = vld [vmem:[#allocation8 + $0x210] sm:$0xff]
    %v1889 = vld [vmem:[#allocation8 + $0x218] sm:$0xff]
    %v1890 = vld [vmem:[#allocation8 + $0x220] sm:$0xff]
    %v1891 = vld [vmem:[#allocation8 + $0x228] sm:$0xff]
    %v1892 = vld [vmem:[#allocation8 + $0x230] sm:$0xff]
    %v1893 = vld [vmem:[#allocation8 + $0x238] sm:$0xff]
    %v1894 = vld [vmem:[#allocation8 + $0x240] sm:$0xff]
    %v1895 = vld [vmem:[#allocation8 + $0x248] sm:$0xff]
    %v1896 = vld [vmem:[#allocation8 + $0x250] sm:$0xff]
    %v1897 = vld [vmem:[#allocation8 + $0x258] sm:$0xff]
    %v1898 = vld [vmem:[#allocation8 + $0x260] sm:$0xff]
    %v1899 = vld [vmem:[#allocation8 + $0x268] sm:$0xff]
    %v1900 = vld [vmem:[#allocation8 + $0x270] sm:$0xff]
    %v1901 = vld [vmem:[#allocation8 + $0x278] sm:$0xff]
    %v1902 = vld [vmem:[#allocation8 + $0x280] sm:$0xff]
    %v1903 = vld [vmem:[#allocation8 + $0x288] sm:$0xff]
    %v1904 = vld [vmem:[#allocation8 + $0x290] sm:$0xff]
    %v1905 = vld [vmem:[#allocation8 + $0x298] sm:$0xff]
    %v1906 = vld [vmem:[#allocation8 + $0x2a0] sm:$0xff]
    %v1907 = vld [vmem:[#allocation8 + $0x2a8] sm:$0xff]
    %v1908 = vld [vmem:[#allocation8 + $0x2b0] sm:$0xff]
    %v1909 = vld [vmem:[#allocation8 + $0x2b8] sm:$0xff]
    %v1910 = vld [vmem:[#allocation8 + $0x2c0] sm:$0xff]
    %v1911 = vld [vmem:[#allocation8 + $0x2c8] sm:$0xff]
    %v1912 = vld [vmem:[#allocation8 + $0x2d0] sm:$0xff]
    %v1913 = vld [vmem:[#allocation8 + $0x2d8] sm:$0xff]
    %v1914 = vld [vmem:[#allocation8 + $0x2e0] sm:$0xff]
    %v1915 = vld [vmem:[#allocation8 + $0x2e8] sm:$0xff]
    %v1916 = vld [vmem:[#allocation8 + $0x2f0] sm:$0xff]
    %v1917 = vld [vmem:[#allocation8 + $0x2f8] sm:$0xff]
    %v1918 = vld [vmem:[#allocation8 + $0x300] sm:$0xff]
    %v1919 = vld [vmem:[#allocation8 + $0x308] sm:$0xff]
    %v1920 = vld [vmem:[#allocation8 + $0x310] sm:$0xff]
    %v1921 = vld [vmem:[#allocation8 + $0x318] sm:$0xff]
    %v1922 = vld [vmem:[#allocation8 + $0x320] sm:$0xff]
    %v1923 = vld [vmem:[#allocation8 + $0x328] sm:$0xff]
    %v1924 = vld [vmem:[#allocation8 + $0x330] sm:$0xff]
    %v1925 = vld [vmem:[#allocation8 + $0x338] sm:$0xff]
    %v1926 = vld [vmem:[#allocation8 + $0x340] sm:$0xff]
    %v1927 = vld [vmem:[#allocation8 + $0x348] sm:$0xff]
    %v1928 = vld [vmem:[#allocation8 + $0x350] sm:$0xff]
    %v1929 = vld [vmem:[#allocation8 + $0x358] sm:$0xff]
    %v1930 = vld [vmem:[#allocation8 + $0x360] sm:$0xff]
    %v1931 = vld [vmem:[#allocation8 + $0x368] sm:$0xff]
    %v1932 = vld [vmem:[#allocation8 + $0x370] sm:$0xff]
    %v1933 = vld [vmem:[#allocation8 + $0x378] sm:$0xff]
    %v1934 = vld [vmem:[#allocation8 + $0x380] sm:$0xff]
    %v1935 = vld [vmem:[#allocation8 + $0x388] sm:$0xff]
    %v1936 = vld [vmem:[#allocation8 + $0x390] sm:$0xff]
    %v1937 = vld [vmem:[#allocation8 + $0x398] sm:$0xff]
    %v1938 = vld [vmem:[#allocation8 + $0x3a0] sm:$0xff]
    %v1939 = vld [vmem:[#allocation8 + $0x3a8] sm:$0xff]
    %v1940 = vld [vmem:[#allocation8 + $0x3b0] sm:$0xff]
    %v1941 = vld [vmem:[#allocation8 + $0x3b8] sm:$0xff]
    %v1942 = vld [vmem:[#allocation8 + $0x3c0] sm:$0xff]
    %v1943 = vld [vmem:[#allocation8 + $0x3c8] sm:$0xff]
    %v1944 = vld [vmem:[#allocation8 + $0x3d0] sm:$0xff]
    %v1945 = vld [vmem:[#allocation8 + $0x3d8] sm:$0xff]
    %v1946 = vld [vmem:[#allocation8 + $0x3e0] sm:$0xff]
    %v1947 = vld [vmem:[#allocation8 + $0x3e8] sm:$0xff]
    %v1948 = vld [vmem:[#allocation8 + $0x3f0] sm:$0xff]
    %v1949 = vld [vmem:[#allocation8 + $0x3f8] sm:$0xff]
    %v1950 = vpack.c.bf16 %v1821, %v1821
    %v1951 = vld [vmem:[#allocation10] sm:$0xff]
    %v1952 = vld [vmem:[#allocation10 + $0x8] sm:$0xff]
    %v1953 = vld [vmem:[#allocation10 + $0x10] sm:$0xff]
    %v1954 = vld [vmem:[#allocation10 + $0x18] sm:$0xff]
    %v1955 = vld [vmem:[#allocation10 + $0x20] sm:$0xff]
    %v1956 = vld [vmem:[#allocation10 + $0x28] sm:$0xff]
    %v1957 = vld [vmem:[#allocation10 + $0x30] sm:$0xff]
    %v1958 = vld [vmem:[#allocation10 + $0x38] sm:$0xff]
    %v1959 = vld [vmem:[#allocation10 + $0x40] sm:$0xff]
    %v1960 = vld [vmem:[#allocation10 + $0x48] sm:$0xff]
    %v1961 = vld [vmem:[#allocation10 + $0x50] sm:$0xff]
    %v1962 = vld [vmem:[#allocation10 + $0x58] sm:$0xff]
    %v1963 = vld [vmem:[#allocation10 + $0x60] sm:$0xff]
    %v1964 = vld [vmem:[#allocation10 + $0x68] sm:$0xff]
    %v1965 = vld [vmem:[#allocation10 + $0x70] sm:$0xff]
    %v1966 = vld [vmem:[#allocation10 + $0x78] sm:$0xff]
    %v1967 = vld [vmem:[#allocation10 + $0x80] sm:$0xff]
    %v1968 = vld [vmem:[#allocation10 + $0x88] sm:$0xff]
    %v1969 = vld [vmem:[#allocation10 + $0x90] sm:$0xff]
    %v1970 = vld [vmem:[#allocation10 + $0x98] sm:$0xff]
    %v1971 = vld [vmem:[#allocation10 + $0xa0] sm:$0xff]
    %v1972 = vld [vmem:[#allocation10 + $0xa8] sm:$0xff]
    %v1973 = vld [vmem:[#allocation10 + $0xb0] sm:$0xff]
    %v1974 = vld [vmem:[#allocation10 + $0xb8] sm:$0xff]
    %v1975 = vld [vmem:[#allocation10 + $0xc0] sm:$0xff]
    %v1976 = vld [vmem:[#allocation10 + $0xc8] sm:$0xff]
    %v1977 = vld [vmem:[#allocation10 + $0xd0] sm:$0xff]
    %v1978 = vld [vmem:[#allocation10 + $0xd8] sm:$0xff]
    %v1979 = vld [vmem:[#allocation10 + $0xe0] sm:$0xff]
    %v1980 = vld [vmem:[#allocation10 + $0xe8] sm:$0xff]
    %v1981 = vld [vmem:[#allocation10 + $0xf0] sm:$0xff]
    %v1982 = vld [vmem:[#allocation10 + $0xf8] sm:$0xff]
    %v1983 = vld [vmem:[#allocation10 + $0x100] sm:$0xff]
    %v1984 = vld [vmem:[#allocation10 + $0x108] sm:$0xff]
    %v1985 = vld [vmem:[#allocation10 + $0x110] sm:$0xff]
    %v1986 = vld [vmem:[#allocation10 + $0x118] sm:$0xff]
    %v1987 = vld [vmem:[#allocation10 + $0x120] sm:$0xff]
    %v1988 = vld [vmem:[#allocation10 + $0x128] sm:$0xff]
    %v1989 = vld [vmem:[#allocation10 + $0x130] sm:$0xff]
    %v1990 = vld [vmem:[#allocation10 + $0x138] sm:$0xff]
    %v1991 = vld [vmem:[#allocation10 + $0x140] sm:$0xff]
    %v1992 = vld [vmem:[#allocation10 + $0x148] sm:$0xff]
    %v1993 = vld [vmem:[#allocation10 + $0x150] sm:$0xff]
    %v1994 = vld [vmem:[#allocation10 + $0x158] sm:$0xff]
    %v1995 = vld [vmem:[#allocation10 + $0x160] sm:$0xff]
    %v1996 = vld [vmem:[#allocation10 + $0x168] sm:$0xff]
    %v1997 = vld [vmem:[#allocation10 + $0x170] sm:$0xff]
    %v1998 = vld [vmem:[#allocation10 + $0x178] sm:$0xff]
    %v1999 = vld [vmem:[#allocation10 + $0x180] sm:$0xff]
    %v2000 = vld [vmem:[#allocation10 + $0x188] sm:$0xff]
    %v2001 = vld [vmem:[#allocation10 + $0x190] sm:$0xff]
    %v2002 = vld [vmem:[#allocation10 + $0x198] sm:$0xff]
    %v2003 = vld [vmem:[#allocation10 + $0x1a0] sm:$0xff]
    %v2004 = vld [vmem:[#allocation10 + $0x1a8] sm:$0xff]
    %v2005 = vld [vmem:[#allocation10 + $0x1b0] sm:$0xff]
    %v2006 = vld [vmem:[#allocation10 + $0x1b8] sm:$0xff]
    %v2007 = vld [vmem:[#allocation10 + $0x1c0] sm:$0xff]
    %v2008 = vld [vmem:[#allocation10 + $0x1c8] sm:$0xff]
    %v2009 = vld [vmem:[#allocation10 + $0x1d0] sm:$0xff]
    %v2010 = vld [vmem:[#allocation10 + $0x1d8] sm:$0xff]
    %v2011 = vld [vmem:[#allocation10 + $0x1e0] sm:$0xff]
    %v2012 = vld [vmem:[#allocation10 + $0x1e8] sm:$0xff]
    %v2013 = vld [vmem:[#allocation10 + $0x1f0] sm:$0xff]
    %v2014 = vld [vmem:[#allocation10 + $0x1f8] sm:$0xff]
    %v2015 = vld [vmem:[#allocation10 + $0x200] sm:$0xff]
    %v2016 = vld [vmem:[#allocation10 + $0x208] sm:$0xff]
    %v2017 = vld [vmem:[#allocation10 + $0x210] sm:$0xff]
    %v2018 = vld [vmem:[#allocation10 + $0x218] sm:$0xff]
    %v2019 = vld [vmem:[#allocation10 + $0x220] sm:$0xff]
    %v2020 = vld [vmem:[#allocation10 + $0x228] sm:$0xff]
    %v2021 = vld [vmem:[#allocation10 + $0x230] sm:$0xff]
    %v2022 = vld [vmem:[#allocation10 + $0x238] sm:$0xff]
    %v2023 = vld [vmem:[#allocation10 + $0x240] sm:$0xff]
    %v2024 = vld [vmem:[#allocation10 + $0x248] sm:$0xff]
    %v2025 = vld [vmem:[#allocation10 + $0x250] sm:$0xff]
    %v2026 = vld [vmem:[#allocation10 + $0x258] sm:$0xff]
    %v2027 = vld [vmem:[#allocation10 + $0x260] sm:$0xff]
    %v2028 = vld [vmem:[#allocation10 + $0x268] sm:$0xff]
    %v2029 = vld [vmem:[#allocation10 + $0x270] sm:$0xff]
    %v2030 = vld [vmem:[#allocation10 + $0x278] sm:$0xff]
    %v2031 = vld [vmem:[#allocation10 + $0x280] sm:$0xff]
    %v2032 = vld [vmem:[#allocation10 + $0x288] sm:$0xff]
    %v2033 = vld [vmem:[#allocation10 + $0x290] sm:$0xff]
    %v2034 = vld [vmem:[#allocation10 + $0x298] sm:$0xff]
    %v2035 = vld [vmem:[#allocation10 + $0x2a0] sm:$0xff]
    %v2036 = vld [vmem:[#allocation10 + $0x2a8] sm:$0xff]
    %v2037 = vld [vmem:[#allocation10 + $0x2b0] sm:$0xff]
    %v2038 = vld [vmem:[#allocation10 + $0x2b8] sm:$0xff]
    %v2039 = vld [vmem:[#allocation10 + $0x2c0] sm:$0xff]
    %v2040 = vld [vmem:[#allocation10 + $0x2c8] sm:$0xff]
    %v2041 = vld [vmem:[#allocation10 + $0x2d0] sm:$0xff]
    %v2042 = vld [vmem:[#allocation10 + $0x2d8] sm:$0xff]
    %v2043 = vld [vmem:[#allocation10 + $0x2e0] sm:$0xff]
    %v2044 = vld [vmem:[#allocation10 + $0x2e8] sm:$0xff]
    %v2045 = vld [vmem:[#allocation10 + $0x2f0] sm:$0xff]
    %v2046 = vld [vmem:[#allocation10 + $0x2f8] sm:$0xff]
    %v2047 = vld [vmem:[#allocation10 + $0x300] sm:$0xff]
    %v2048 = vld [vmem:[#allocation10 + $0x308] sm:$0xff]
    %v2049 = vld [vmem:[#allocation10 + $0x310] sm:$0xff]
    %v2050 = vld [vmem:[#allocation10 + $0x318] sm:$0xff]
    %v2051 = vld [vmem:[#allocation10 + $0x320] sm:$0xff]
    %v2052 = vld [vmem:[#allocation10 + $0x328] sm:$0xff]
    %v2053 = vld [vmem:[#allocation10 + $0x330] sm:$0xff]
    %v2054 = vld [vmem:[#allocation10 + $0x338] sm:$0xff]
    %v2055 = vld [vmem:[#allocation10 + $0x340] sm:$0xff]
    %v2056 = vld [vmem:[#allocation10 + $0x348] sm:$0xff]
    %v2057 = vld [vmem:[#allocation10 + $0x350] sm:$0xff]
    %v2058 = vld [vmem:[#allocation10 + $0x358] sm:$0xff]
    %v2059 = vld [vmem:[#allocation10 + $0x360] sm:$0xff]
    %v2060 = vld [vmem:[#allocation10 + $0x368] sm:$0xff]
    %v2061 = vld [vmem:[#allocation10 + $0x370] sm:$0xff]
    %v2062 = vld [vmem:[#allocation10 + $0x378] sm:$0xff]
    %v2063 = vld [vmem:[#allocation10 + $0x380] sm:$0xff]
    %v2064 = vld [vmem:[#allocation10 + $0x388] sm:$0xff]
    %v2065 = vld [vmem:[#allocation10 + $0x390] sm:$0xff]
    %v2066 = vld [vmem:[#allocation10 + $0x398] sm:$0xff]
    %v2067 = vld [vmem:[#allocation10 + $0x3a0] sm:$0xff]
    %v2068 = vld [vmem:[#allocation10 + $0x3a8] sm:$0xff]
    %v2069 = vld [vmem:[#allocation10 + $0x3b0] sm:$0xff]
    %v2070 = vld [vmem:[#allocation10 + $0x3b8] sm:$0xff]
    %v2071 = vld [vmem:[#allocation10 + $0x3c0] sm:$0xff]
    %v2072 = vld [vmem:[#allocation10 + $0x3c8] sm:$0xff]
    %v2073 = vld [vmem:[#allocation10 + $0x3d0] sm:$0xff]
    %v2074 = vld [vmem:[#allocation10 + $0x3d8] sm:$0xff]
    %v2075 = vld [vmem:[#allocation10 + $0x3e0] sm:$0xff]
    %v2076 = vld [vmem:[#allocation10 + $0x3e8] sm:$0xff]
    %v2077 = vld [vmem:[#allocation10 + $0x3f0] sm:$0xff]
    %v2078 = vld [vmem:[#allocation10 + $0x3f8] sm:$0xff]
    %v2207 = vunpack.c.l.b16 %v1951
    %v2208 = vunpack.c.h.b16 %v1951
    %v2209 = vunpack.c.l.b16 %v1952
    %v2210 = vunpack.c.h.b16 %v1952
    %v2211 = vunpack.c.l.b16 %v1953
    %v2212 = vunpack.c.h.b16 %v1953
    %v2213 = vunpack.c.l.b16 %v1954
    %v2214 = vunpack.c.h.b16 %v1954
    %v2215 = vunpack.c.l.b16 %v1955
    %v2216 = vunpack.c.h.b16 %v1955
    %v2217 = vunpack.c.l.b16 %v1956
    %v2218 = vunpack.c.h.b16 %v1956
    %v2219 = vunpack.c.l.b16 %v1957
    %v2220 = vunpack.c.h.b16 %v1957
    %v2221 = vunpack.c.l.b16 %v1958
    %v2222 = vunpack.c.h.b16 %v1958
    %v2223 = vunpack.c.l.b16 %v1959
    %v2224 = vunpack.c.h.b16 %v1959
    %v2225 = vunpack.c.l.b16 %v1960
    %v2226 = vunpack.c.h.b16 %v1960
    %v2227 = vunpack.c.l.b16 %v1961
    %v2228 = vunpack.c.h.b16 %v1961
    %v2229 = vunpack.c.l.b16 %v1962
    %v2230 = vunpack.c.h.b16 %v1962
    %v2231 = vunpack.c.l.b16 %v1963
    %v2232 = vunpack.c.h.b16 %v1963
    %v2233 = vunpack.c.l.b16 %v1964
    %v2234 = vunpack.c.h.b16 %v1964
    %v2235 = vunpack.c.l.b16 %v1965
    %v2236 = vunpack.c.h.b16 %v1965
    %v2237 = vunpack.c.l.b16 %v1966
    %v2238 = vunpack.c.h.b16 %v1966
    %v2239 = vunpack.c.l.b16 %v1967
    %v2240 = vunpack.c.h.b16 %v1967
    %v2241 = vunpack.c.l.b16 %v1968
    %v2242 = vunpack.c.h.b16 %v1968
    %v2243 = vunpack.c.l.b16 %v1969
    %v2244 = vunpack.c.h.b16 %v1969
    %v2245 = vunpack.c.l.b16 %v1970
    %v2246 = vunpack.c.h.b16 %v1970
    %v2247 = vunpack.c.l.b16 %v1971
    %v2248 = vunpack.c.h.b16 %v1971
    %v2249 = vunpack.c.l.b16 %v1972
    %v2250 = vunpack.c.h.b16 %v1972
    %v2251 = vunpack.c.l.b16 %v1973
    %v2252 = vunpack.c.h.b16 %v1973
    %v2253 = vunpack.c.l.b16 %v1974
    %v2254 = vunpack.c.h.b16 %v1974
    %v2255 = vunpack.c.l.b16 %v1975
    %v2256 = vunpack.c.h.b16 %v1975
    %v2257 = vunpack.c.l.b16 %v1976
    %v2258 = vunpack.c.h.b16 %v1976
    %v2259 = vunpack.c.l.b16 %v1977
    %v2260 = vunpack.c.h.b16 %v1977
    %v2261 = vunpack.c.l.b16 %v1978
    %v2262 = vunpack.c.h.b16 %v1978
    %v2263 = vunpack.c.l.b16 %v1979
    %v2264 = vunpack.c.h.b16 %v1979
    %v2265 = vunpack.c.l.b16 %v1980
    %v2266 = vunpack.c.h.b16 %v1980
    %v2267 = vunpack.c.l.b16 %v1981
    %v2268 = vunpack.c.h.b16 %v1981
    %v2269 = vunpack.c.l.b16 %v1982
    %v2270 = vunpack.c.h.b16 %v1982
    %v2271 = vunpack.c.l.b16 %v1983
    %v2272 = vunpack.c.h.b16 %v1983
    %v2273 = vunpack.c.l.b16 %v1984
    %v2274 = vunpack.c.h.b16 %v1984
    %v2275 = vunpack.c.l.b16 %v1985
    %v2276 = vunpack.c.h.b16 %v1985
    %v2277 = vunpack.c.l.b16 %v1986
    %v2278 = vunpack.c.h.b16 %v1986
    %v2279 = vunpack.c.l.b16 %v1987
    %v2280 = vunpack.c.h.b16 %v1987
    %v2281 = vunpack.c.l.b16 %v1988
    %v2282 = vunpack.c.h.b16 %v1988
    %v2283 = vunpack.c.l.b16 %v1989
    %v2284 = vunpack.c.h.b16 %v1989
    %v2285 = vunpack.c.l.b16 %v1990
    %v2286 = vunpack.c.h.b16 %v1990
    %v2287 = vunpack.c.l.b16 %v1991
    %v2288 = vunpack.c.h.b16 %v1991
    %v2289 = vunpack.c.l.b16 %v1992
    %v2290 = vunpack.c.h.b16 %v1992
    %v2291 = vunpack.c.l.b16 %v1993
    %v2292 = vunpack.c.h.b16 %v1993
    %v2293 = vunpack.c.l.b16 %v1994
    %v2294 = vunpack.c.h.b16 %v1994
    %v2295 = vunpack.c.l.b16 %v1995
    %v2296 = vunpack.c.h.b16 %v1995
    %v2297 = vunpack.c.l.b16 %v1996
    %v2298 = vunpack.c.h.b16 %v1996
    %v2299 = vunpack.c.l.b16 %v1997
    %v2300 = vunpack.c.h.b16 %v1997
    %v2301 = vunpack.c.l.b16 %v1998
    %v2302 = vunpack.c.h.b16 %v1998
    %v2303 = vunpack.c.l.b16 %v1999
    %v2304 = vunpack.c.h.b16 %v1999
    %v2305 = vunpack.c.l.b16 %v2000
    %v2306 = vunpack.c.h.b16 %v2000
    %v2307 = vunpack.c.l.b16 %v2001
    %v2308 = vunpack.c.h.b16 %v2001
    %v2309 = vunpack.c.l.b16 %v2002
    %v2310 = vunpack.c.h.b16 %v2002
    %v2311 = vunpack.c.l.b16 %v2003
    %v2312 = vunpack.c.h.b16 %v2003
    %v2313 = vunpack.c.l.b16 %v2004
    %v2314 = vunpack.c.h.b16 %v2004
    %v2315 = vunpack.c.l.b16 %v2005
    %v2316 = vunpack.c.h.b16 %v2005
    %v2317 = vunpack.c.l.b16 %v2006
    %v2318 = vunpack.c.h.b16 %v2006
    %v2319 = vunpack.c.l.b16 %v2007
    %v2320 = vunpack.c.h.b16 %v2007
    %v2321 = vunpack.c.l.b16 %v2008
    %v2322 = vunpack.c.h.b16 %v2008
    %v2323 = vunpack.c.l.b16 %v2009
    %v2324 = vunpack.c.h.b16 %v2009
    %v2325 = vunpack.c.l.b16 %v2010
    %v2326 = vunpack.c.h.b16 %v2010
    %v2327 = vunpack.c.l.b16 %v2011
    %v2328 = vunpack.c.h.b16 %v2011
    %v2329 = vunpack.c.l.b16 %v2012
    %v2330 = vunpack.c.h.b16 %v2012
    %v2331 = vunpack.c.l.b16 %v2013
    %v2332 = vunpack.c.h.b16 %v2013
    %v2333 = vunpack.c.l.b16 %v2014
    %v2334 = vunpack.c.h.b16 %v2014
    %v2335 = vunpack.c.l.b16 %v2015
    %v2336 = vunpack.c.h.b16 %v2015
    %v2337 = vunpack.c.l.b16 %v2016
    %v2338 = vunpack.c.h.b16 %v2016
    %v2339 = vunpack.c.l.b16 %v2017
    %v2340 = vunpack.c.h.b16 %v2017
    %v2341 = vunpack.c.l.b16 %v2018
    %v2342 = vunpack.c.h.b16 %v2018
    %v2343 = vunpack.c.l.b16 %v2019
    %v2344 = vunpack.c.h.b16 %v2019
    %v2345 = vunpack.c.l.b16 %v2020
    %v2346 = vunpack.c.h.b16 %v2020
    %v2347 = vunpack.c.l.b16 %v2021
    %v2348 = vunpack.c.h.b16 %v2021
    %v2349 = vunpack.c.l.b16 %v2022
    %v2350 = vunpack.c.h.b16 %v2022
    %v2351 = vunpack.c.l.b16 %v2023
    %v2352 = vunpack.c.h.b16 %v2023
    %v2353 = vunpack.c.l.b16 %v2024
    %v2354 = vunpack.c.h.b16 %v2024
    %v2355 = vunpack.c.l.b16 %v2025
    %v2356 = vunpack.c.h.b16 %v2025
    %v2357 = vunpack.c.l.b16 %v2026
    %v2358 = vunpack.c.h.b16 %v2026
    %v2359 = vunpack.c.l.b16 %v2027
    %v2360 = vunpack.c.h.b16 %v2027
    %v2361 = vunpack.c.l.b16 %v2028
    %v2362 = vunpack.c.h.b16 %v2028
    %v2363 = vunpack.c.l.b16 %v2029
    %v2364 = vunpack.c.h.b16 %v2029
    %v2365 = vunpack.c.l.b16 %v2030
    %v2366 = vunpack.c.h.b16 %v2030
    %v2367 = vunpack.c.l.b16 %v2031
    %v2368 = vunpack.c.h.b16 %v2031
    %v2369 = vunpack.c.l.b16 %v2032
    %v2370 = vunpack.c.h.b16 %v2032
    %v2371 = vunpack.c.l.b16 %v2033
    %v2372 = vunpack.c.h.b16 %v2033
    %v2373 = vunpack.c.l.b16 %v2034
    %v2374 = vunpack.c.h.b16 %v2034
    %v2375 = vunpack.c.l.b16 %v2035
    %v2376 = vunpack.c.h.b16 %v2035
    %v2377 = vunpack.c.l.b16 %v2036
    %v2378 = vunpack.c.h.b16 %v2036
    %v2379 = vunpack.c.l.b16 %v2037
    %v2380 = vunpack.c.h.b16 %v2037
    %v2381 = vunpack.c.l.b16 %v2038
    %v2382 = vunpack.c.h.b16 %v2038
    %v2383 = vunpack.c.l.b16 %v2039
    %v2384 = vunpack.c.h.b16 %v2039
    %v2385 = vunpack.c.l.b16 %v2040
    %v2386 = vunpack.c.h.b16 %v2040
    %v2387 = vunpack.c.l.b16 %v2041
    %v2388 = vunpack.c.h.b16 %v2041
    %v2389 = vunpack.c.l.b16 %v2042
    %v2390 = vunpack.c.h.b16 %v2042
    %v2391 = vunpack.c.l.b16 %v2043
    %v2392 = vunpack.c.h.b16 %v2043
    %v2393 = vunpack.c.l.b16 %v2044
    %v2394 = vunpack.c.h.b16 %v2044
    %v2395 = vunpack.c.l.b16 %v2045
    %v2396 = vunpack.c.h.b16 %v2045
    %v2397 = vunpack.c.l.b16 %v2046
    %v2398 = vunpack.c.h.b16 %v2046
    %v2399 = vunpack.c.l.b16 %v2047
    %v2400 = vunpack.c.h.b16 %v2047
    %v2401 = vunpack.c.l.b16 %v2048
    %v2402 = vunpack.c.h.b16 %v2048
    %v2403 = vunpack.c.l.b16 %v2049
    %v2404 = vunpack.c.h.b16 %v2049
    %v2405 = vunpack.c.l.b16 %v2050
    %v2406 = vunpack.c.h.b16 %v2050
    %v2407 = vunpack.c.l.b16 %v2051
    %v2408 = vunpack.c.h.b16 %v2051
    %v2409 = vunpack.c.l.b16 %v2052
    %v2410 = vunpack.c.h.b16 %v2052
    %v2411 = vunpack.c.l.b16 %v2053
    %v2412 = vunpack.c.h.b16 %v2053
    %v2413 = vunpack.c.l.b16 %v2054
    %v2414 = vunpack.c.h.b16 %v2054
    %v2415 = vunpack.c.l.b16 %v2055
    %v2416 = vunpack.c.h.b16 %v2055
    %v2417 = vunpack.c.l.b16 %v2056
    %v2418 = vunpack.c.h.b16 %v2056
    %v2419 = vunpack.c.l.b16 %v2057
    %v2420 = vunpack.c.h.b16 %v2057
    %v2421 = vunpack.c.l.b16 %v2058
    %v2422 = vunpack.c.h.b16 %v2058
    %v2423 = vunpack.c.l.b16 %v2059
    %v2424 = vunpack.c.h.b16 %v2059
    %v2425 = vunpack.c.l.b16 %v2060
    %v2426 = vunpack.c.h.b16 %v2060
    %v2427 = vunpack.c.l.b16 %v2061
    %v2428 = vunpack.c.h.b16 %v2061
    %v2429 = vunpack.c.l.b16 %v2062
    %v2430 = vunpack.c.h.b16 %v2062
    %v2431 = vunpack.c.l.b16 %v2063
    %v2432 = vunpack.c.h.b16 %v2063
    %v2433 = vunpack.c.l.b16 %v2064
    %v2434 = vunpack.c.h.b16 %v2064
    %v2435 = vunpack.c.l.b16 %v2065
    %v2436 = vunpack.c.h.b16 %v2065
    %v2437 = vunpack.c.l.b16 %v2066
    %v2438 = vunpack.c.h.b16 %v2066
    %v2439 = vunpack.c.l.b16 %v2067
    %v2440 = vunpack.c.h.b16 %v2067
    %v2441 = vunpack.c.l.b16 %v2068
    %v2442 = vunpack.c.h.b16 %v2068
    %v2443 = vunpack.c.l.b16 %v2069
    %v2444 = vunpack.c.h.b16 %v2069
    %v2445 = vunpack.c.l.b16 %v2070
    %v2446 = vunpack.c.h.b16 %v2070
    %v2447 = vunpack.c.l.b16 %v2071
    %v2448 = vunpack.c.h.b16 %v2071
    %v2449 = vunpack.c.l.b16 %v2072
    %v2450 = vunpack.c.h.b16 %v2072
    %v2451 = vunpack.c.l.b16 %v2073
    %v2452 = vunpack.c.h.b16 %v2073
    %v2453 = vunpack.c.l.b16 %v2074
    %v2454 = vunpack.c.h.b16 %v2074
    %v2455 = vunpack.c.l.b16 %v2075
    %v2456 = vunpack.c.h.b16 %v2075
    %v2457 = vunpack.c.l.b16 %v2076
    %v2458 = vunpack.c.h.b16 %v2076
    %v2459 = vunpack.c.l.b16 %v2077
    %v2460 = vunpack.c.h.b16 %v2077
    %v2461 = vunpack.c.l.b16 %v2078
    %v2462 = vunpack.c.h.b16 %v2078
    %v2463 = vpack.c.b16 %v2223, %v2207
    %v2464 = vpack.c.b16 %v2224, %v2208
    %v2465 = vpack.c.b16 %v2225, %v2209
    %v2466 = vpack.c.b16 %v2226, %v2210
    %v2467 = vpack.c.b16 %v2227, %v2211
    %v2468 = vpack.c.b16 %v2228, %v2212
    %v2469 = vpack.c.b16 %v2229, %v2213
    %v2470 = vpack.c.b16 %v2230, %v2214
    %v2471 = vpack.c.b16 %v2231, %v2215
    %v2472 = vpack.c.b16 %v2232, %v2216
    %v2473 = vpack.c.b16 %v2233, %v2217
    %v2474 = vpack.c.b16 %v2234, %v2218
    %v2475 = vpack.c.b16 %v2235, %v2219
    %v2476 = vpack.c.b16 %v2236, %v2220
    %v2477 = vpack.c.b16 %v2237, %v2221
    %v2478 = vpack.c.b16 %v2238, %v2222
    %v2479 = vpack.c.b16 %v2255, %v2239
    %v2480 = vpack.c.b16 %v2256, %v2240
    %v2481 = vpack.c.b16 %v2257, %v2241
    %v2482 = vpack.c.b16 %v2258, %v2242
    %v2483 = vpack.c.b16 %v2259, %v2243
    %v2484 = vpack.c.b16 %v2260, %v2244
    %v2485 = vpack.c.b16 %v2261, %v2245
    %v2486 = vpack.c.b16 %v2262, %v2246
    %v2487 = vpack.c.b16 %v2263, %v2247
    %v2488 = vpack.c.b16 %v2264, %v2248
    %v2489 = vpack.c.b16 %v2265, %v2249
    %v2490 = vpack.c.b16 %v2266, %v2250
    %v2491 = vpack.c.b16 %v2267, %v2251
    %v2492 = vpack.c.b16 %v2268, %v2252
    %v2493 = vpack.c.b16 %v2269, %v2253
    %v2494 = vpack.c.b16 %v2270, %v2254
    %v2495 = vpack.c.b16 %v2287, %v2271
    %v2496 = vpack.c.b16 %v2288, %v2272
    %v2497 = vpack.c.b16 %v2289, %v2273
    %v2498 = vpack.c.b16 %v2290, %v2274
    %v2499 = vpack.c.b16 %v2291, %v2275
    %v2500 = vpack.c.b16 %v2292, %v2276
    %v2501 = vpack.c.b16 %v2293, %v2277
    %v2502 = vpack.c.b16 %v2294, %v2278
    %v2503 = vpack.c.b16 %v2295, %v2279
    %v2504 = vpack.c.b16 %v2296, %v2280
    %v2505 = vpack.c.b16 %v2297, %v2281
    %v2506 = vpack.c.b16 %v2298, %v2282
    %v2507 = vpack.c.b16 %v2299, %v2283
    %v2508 = vpack.c.b16 %v2300, %v2284
    %v2509 = vpack.c.b16 %v2301, %v2285
    %v2510 = vpack.c.b16 %v2302, %v2286
    %v2511 = vpack.c.b16 %v2319, %v2303
    %v2512 = vpack.c.b16 %v2320, %v2304
    %v2513 = vpack.c.b16 %v2321, %v2305
    %v2514 = vpack.c.b16 %v2322, %v2306
    %v2515 = vpack.c.b16 %v2323, %v2307
    %v2516 = vpack.c.b16 %v2324, %v2308
    %v2517 = vpack.c.b16 %v2325, %v2309
    %v2518 = vpack.c.b16 %v2326, %v2310
    %v2519 = vpack.c.b16 %v2327, %v2311
    %v2520 = vpack.c.b16 %v2328, %v2312
    %v2521 = vpack.c.b16 %v2329, %v2313
    %v2522 = vpack.c.b16 %v2330, %v2314
    %v2523 = vpack.c.b16 %v2331, %v2315
    %v2524 = vpack.c.b16 %v2332, %v2316
    %v2525 = vpack.c.b16 %v2333, %v2317
    %v2526 = vpack.c.b16 %v2334, %v2318
    %v2527 = vpack.c.b16 %v2351, %v2335
    %v2528 = vpack.c.b16 %v2352, %v2336
    %v2529 = vpack.c.b16 %v2353, %v2337
    %v2530 = vpack.c.b16 %v2354, %v2338
    %v2531 = vpack.c.b16 %v2355, %v2339
    %v2532 = vpack.c.b16 %v2356, %v2340
    %v2533 = vpack.c.b16 %v2357, %v2341
    %v2534 = vpack.c.b16 %v2358, %v2342
    %v2535 = vpack.c.b16 %v2359, %v2343
    %v2536 = vpack.c.b16 %v2360, %v2344
    %v2537 = vpack.c.b16 %v2361, %v2345
    %v2538 = vpack.c.b16 %v2362, %v2346
    %v2539 = vpack.c.b16 %v2363, %v2347
    %v2540 = vpack.c.b16 %v2364, %v2348
    %v2541 = vpack.c.b16 %v2365, %v2349
    %v2542 = vpack.c.b16 %v2366, %v2350
    %v2543 = vpack.c.b16 %v2383, %v2367
    %v2544 = vpack.c.b16 %v2384, %v2368
    %v2545 = vpack.c.b16 %v2385, %v2369
    %v2546 = vpack.c.b16 %v2386, %v2370
    %v2547 = vpack.c.b16 %v2387, %v2371
    %v2548 = vpack.c.b16 %v2388, %v2372
    %v2549 = vpack.c.b16 %v2389, %v2373
    %v2550 = vpack.c.b16 %v2390, %v2374
    %v2551 = vpack.c.b16 %v2391, %v2375
    %v2552 = vpack.c.b16 %v2392, %v2376
    %v2553 = vpack.c.b16 %v2393, %v2377
    %v2554 = vpack.c.b16 %v2394, %v2378
    %v2555 = vpack.c.b16 %v2395, %v2379
    %v2556 = vpack.c.b16 %v2396, %v2380
    %v2557 = vpack.c.b16 %v2397, %v2381
    %v2558 = vpack.c.b16 %v2398, %v2382
    %v2559 = vpack.c.b16 %v2415, %v2399
    %v2560 = vpack.c.b16 %v2416, %v2400
    %v2561 = vpack.c.b16 %v2417, %v2401
    %v2562 = vpack.c.b16 %v2418, %v2402
    %v2563 = vpack.c.b16 %v2419, %v2403
    %v2564 = vpack.c.b16 %v2420, %v2404
    %v2565 = vpack.c.b16 %v2421, %v2405
    %v2566 = vpack.c.b16 %v2422, %v2406
    %v2567 = vpack.c.b16 %v2423, %v2407
    %v2568 = vpack.c.b16 %v2424, %v2408
    %v2569 = vpack.c.b16 %v2425, %v2409
    %v2570 = vpack.c.b16 %v2426, %v2410
    %v2571 = vpack.c.b16 %v2427, %v2411
    %v2572 = vpack.c.b16 %v2428, %v2412
    %v2573 = vpack.c.b16 %v2429, %v2413
    %v2574 = vpack.c.b16 %v2430, %v2414
    %v2575 = vpack.c.b16 %v2447, %v2431
    %v2576 = vpack.c.b16 %v2448, %v2432
    %v2577 = vpack.c.b16 %v2449, %v2433
    %v2578 = vpack.c.b16 %v2450, %v2434
    %v2579 = vpack.c.b16 %v2451, %v2435
    %v2580 = vpack.c.b16 %v2452, %v2436
    %v2581 = vpack.c.b16 %v2453, %v2437
    %v2582 = vpack.c.b16 %v2454, %v2438
    %v2583 = vpack.c.b16 %v2455, %v2439
    %v2584 = vpack.c.b16 %v2456, %v2440
    %v2585 = vpack.c.b16 %v2457, %v2441
    %v2586 = vpack.c.b16 %v2458, %v2442
    %v2587 = vpack.c.b16 %v2459, %v2443
    %v2588 = vpack.c.b16 %v2460, %v2444
    %v2589 = vpack.c.b16 %v2461, %v2445
    %v2590 = vpack.c.b16 %v2462, %v2446
    %2719 = vmatprep.subr.bf16.mxu0 %v2464
    %2720 = vmatpush1.bf16.msra.mxu0 %v2463
    %2721 = vmatprep.subr.bf16.mxu0 %v2480
    %2722 = vmatpush1.bf16.msra.mxu0 %v2479
    %2723 = vmatprep.subr.bf16.mxu0 %v2496
    %2724 = vmatpush1.bf16.msra.mxu0 %v2495
    %2725 = vmatprep.subr.bf16.mxu0 %v2512
    %2726 = vmatpush1.bf16.msra.mxu0 %v2511
    %2727 = vmatprep.subr.bf16.mxu0 %v2528
    %2728 = vmatpush1.bf16.msra.mxu0 %v2527
    %2729 = vmatprep.subr.bf16.mxu0 %v2544
    %2730 = vmatpush1.bf16.msra.mxu0 %v2543
    %2731 = vmatprep.subr.bf16.mxu0 %v2560
    %2732 = vmatpush1.bf16.msra.mxu0 %v2559
    %2733 = vmatprep.subr.bf16.mxu0 %v2576
    %2734 = vmatpush1.bf16.msra.mxu0 %v2575
    %2735 = vmatprep.subr.bf16.mxu0 0
    %2736 = vmatpush1.bf16.msra.mxu0 0
    %2737 = vmatprep.subr.bf16.mxu0 0
    %2738 = vmatpush1.bf16.msra.mxu0 0
    %2739 = vmatprep.subr.bf16.mxu0 0
    %2740 = vmatpush1.bf16.msra.mxu0 0
    %2741 = vmatprep.subr.bf16.mxu0 0
    %2742 = vmatpush1.bf16.msra.mxu0 0
    %2743 = vmatprep.subr.bf16.mxu0 0
    %2744 = vmatpush1.bf16.msra.mxu0 0
    %2745 = vmatprep.subr.bf16.mxu0 0
    %2746 = vmatpush1.bf16.msra.mxu0 0
    %2747 = vmatprep.subr.bf16.mxu0 0
    %2748 = vmatpush1.bf16.msra.mxu0 0
    %2749 = vmatprep.subr.bf16.mxu0 0
    %2750 = vmatpush1.bf16.msra.mxu0 0
    %2751 = vmatprep.mubr.bf16.mxu0 0
    %2752 = vmatmul.mubr.bf16.gmra.mrb[0].mxu0 %v1950
    %v2753 = vpop.f32.mrb[0].mxu0
    %v2754 = vadd.f32 0.0, %v2753
    %v2755 = vpop.f32.mrb[0].mxu0
    %v2756 = vadd.f32 0.0, %v2755
    %v2757 = vpop.f32.mrb[0].mxu0
    %v2758 = vpop.f32.mrb[0].mxu0
    %2759 = vdwg.mxu0
    %2760 = vmatprep.subr.bf16.mxu0 %v2466
    %2761 = vmatpush1.bf16.msra.mxu0 %v2465
    %2762 = vmatprep.subr.bf16.mxu0 %v2482
    %2763 = vmatpush1.bf16.msra.mxu0 %v2481
    %2764 = vmatprep.subr.bf16.mxu0 %v2498
    %2765 = vmatpush1.bf16.msra.mxu0 %v2497
    %2766 = vmatprep.subr.bf16.mxu0 %v2514
    %2767 = vmatpush1.bf16.msra.mxu0 %v2513
    %2768 = vmatprep.subr.bf16.mxu0 %v2530
    %2769 = vmatpush1.bf16.msra.mxu0 %v2529
    %2770 = vmatprep.subr.bf16.mxu0 %v2546
    %2771 = vmatpush1.bf16.msra.mxu0 %v2545
    %2772 = vmatprep.subr.bf16.mxu0 %v2562
    %2773 = vmatpush1.bf16.msra.mxu0 %v2561
    %2774 = vmatprep.subr.bf16.mxu0 %v2578
    %2775 = vmatpush1.bf16.msra.mxu0 %v2577
    %2776 = vmatprep.subr.bf16.mxu0 0
    %2777 = vmatpush1.bf16.msra.mxu0 0
    %2778 = vmatprep.subr.bf16.mxu0 0
    %2779 = vmatpush1.bf16.msra.mxu0 0
    %2780 = vmatprep.subr.bf16.mxu0 0
    %2781 = vmatpush1.bf16.msra.mxu0 0
    %2782 = vmatprep.subr.bf16.mxu0 0
    %2783 = vmatpush1.bf16.msra.mxu0 0
    %2784 = vmatprep.subr.bf16.mxu0 0
    %2785 = vmatpush1.bf16.msra.mxu0 0
    %2786 = vmatprep.subr.bf16.mxu0 0
    %2787 = vmatpush1.bf16.msra.mxu0 0
    %2788 = vmatprep.subr.bf16.mxu0 0
    %2789 = vmatpush1.bf16.msra.mxu0 0
    %2790 = vmatprep.subr.bf16.mxu0 0
    %2791 = vmatpush1.bf16.msra.mxu0 0
    %2792 = vmatprep.mubr.bf16.mxu0 0
    %2793 = vmatmul.mubr.bf16.gmra.mrb[0].mxu0 %v1950
    %v2794 = vpop.f32.mrb[0].mxu0
    %v2795 = vadd.f32 0.0, %v2794
    %v2796 = vpop.f32.mrb[0].mxu0
    %v2797 = vadd.f32 0.0, %v2796
    %v2798 = vpop.f32.mrb[0].mxu0
    %v2799 = vpop.f32.mrb[0].mxu0
    %2800 = vdwg.mxu0
    %2801 = vmatprep.subr.bf16.mxu0 %v2468
    %2802 = vmatpush1.bf16.msra.mxu0 %v2467
    %2803 = vmatprep.subr.bf16.mxu0 %v2484
    %2804 = vmatpush1.bf16.msra.mxu0 %v2483
    %2805 = vmatprep.subr.bf16.mxu0 %v2500
    %2806 = vmatpush1.bf16.msra.mxu0 %v2499
    %2807 = vmatprep.subr.bf16.mxu0 %v2516
    %2808 = vmatpush1.bf16.msra.mxu0 %v2515
    %2809 = vmatprep.subr.bf16.mxu0 %v2532
    %2810 = vmatpush1.bf16.msra.mxu0 %v2531
    %2811 = vmatprep.subr.bf16.mxu0 %v2548
    %2812 = vmatpush1.bf16.msra.mxu0 %v2547
    %2813 = vmatprep.subr.bf16.mxu0 %v2564
    %2814 = vmatpush1.bf16.msra.mxu0 %v2563
    %2815 = vmatprep.subr.bf16.mxu0 %v2580
    %2816 = vmatpush1.bf16.msra.mxu0 %v2579
    %2817 = vmatprep.subr.bf16.mxu0 0
    %2818 = vmatpush1.bf16.msra.mxu0 0
    %2819 = vmatprep.subr.bf16.mxu0 0
    %2820 = vmatpush1.bf16.msra.mxu0 0
    %2821 = vmatprep.subr.bf16.mxu0 0
    %2822 = vmatpush1.bf16.msra.mxu0 0
    %2823 = vmatprep.subr.bf16.mxu0 0
    %2824 = vmatpush1.bf16.msra.mxu0 0
    %2825 = vmatprep.subr.bf16.mxu0 0
    %2826 = vmatpush1.bf16.msra.mxu0 0
    %2827 = vmatprep.subr.bf16.mxu0 0
    %2828 = vmatpush1.bf16.msra.mxu0 0
    %2829 = vmatprep.subr.bf16.mxu0 0
    %2830 = vmatpush1.bf16.msra.mxu0 0
    %2831 = vmatprep.subr.bf16.mxu0 0
    %2832 = vmatpush1.bf16.msra.mxu0 0
    %2833 = vmatprep.mubr.bf16.mxu0 0
    %2834 = vmatmul.mubr.bf16.gmra.mrb[0].mxu0 %v1950
    %v2835 = vpop.f32.mrb[0].mxu0
    %v2836 = vadd.f32 0.0, %v2835
    %v2837 = vpop.f32.mrb[0].mxu0
    %v2838 = vadd.f32 0.0, %v2837
    %v2839 = vpop.f32.mrb[0].mxu0
    %v2840 = vpop.f32.mrb[0].mxu0
    %2841 = vdwg.mxu0
    %2842 = vmatprep.subr.bf16.mxu0 %v2470
    %2843 = vmatpush1.bf16.msra.mxu0 %v2469
    %2844 = vmatprep.subr.bf16.mxu0 %v2486
    %2845 = vmatpush1.bf16.msra.mxu0 %v2485
    %2846 = vmatprep.subr.bf16.mxu0 %v2502
    %2847 = vmatpush1.bf16.msra.mxu0 %v2501
    %2848 = vmatprep.subr.bf16.mxu0 %v2518
    %2849 = vmatpush1.bf16.msra.mxu0 %v2517
    %2850 = vmatprep.subr.bf16.mxu0 %v2534
    %2851 = vmatpush1.bf16.msra.mxu0 %v2533
    %2852 = vmatprep.subr.bf16.mxu0 %v2550
    %2853 = vmatpush1.bf16.msra.mxu0 %v2549
    %2854 = vmatprep.subr.bf16.mxu0 %v2566
    %2855 = vmatpush1.bf16.msra.mxu0 %v2565
    %2856 = vmatprep.subr.bf16.mxu0 %v2582
    %2857 = vmatpush1.bf16.msra.mxu0 %v2581
    %2858 = vmatprep.subr.bf16.mxu0 0
    %2859 = vmatpush1.bf16.msra.mxu0 0
    %2860 = vmatprep.subr.bf16.mxu0 0
    %2861 = vmatpush1.bf16.msra.mxu0 0
    %2862 = vmatprep.subr.bf16.mxu0 0
    %2863 = vmatpush1.bf16.msra.mxu0 0
    %2864 = vmatprep.subr.bf16.mxu0 0
    %2865 = vmatpush1.bf16.msra.mxu0 0
    %2866 = vmatprep.subr.bf16.mxu0 0
    %2867 = vmatpush1.bf16.msra.mxu0 0
    %2868 = vmatprep.subr.bf16.mxu0 0
    %2869 = vmatpush1.bf16.msra.mxu0 0
    %2870 = vmatprep.subr.bf16.mxu0 0
    %2871 = vmatpush1.bf16.msra.mxu0 0
    %2872 = vmatprep.subr.bf16.mxu0 0
    %2873 = vmatpush1.bf16.msra.mxu0 0
    %2874 = vmatprep.mubr.bf16.mxu0 0
    %2875 = vmatmul.mubr.bf16.gmra.mrb[0].mxu0 %v1950
    %v2876 = vpop.f32.mrb[0].mxu0
    %v2877 = vadd.f32 0.0, %v2876
    %v2878 = vpop.f32.mrb[0].mxu0
    %v2879 = vadd.f32 0.0, %v2878
    %v2880 = vpop.f32.mrb[0].mxu0
    %v2881 = vpop.f32.mrb[0].mxu0
    %2882 = vdwg.mxu0
    %2883 = vmatprep.subr.bf16.mxu0 %v2472
    %2884 = vmatpush1.bf16.msra.mxu0 %v2471
    %2885 = vmatprep.subr.bf16.mxu0 %v2488
    %2886 = vmatpush1.bf16.msra.mxu0 %v2487
    %2887 = vmatprep.subr.bf16.mxu0 %v2504
    %2888 = vmatpush1.bf16.msra.mxu0 %v2503
    %2889 = vmatprep.subr.bf16.mxu0 %v2520
    %2890 = vmatpush1.bf16.msra.mxu0 %v2519
    %2891 = vmatprep.subr.bf16.mxu0 %v2536
    %2892 = vmatpush1.bf16.msra.mxu0 %v2535
    %2893 = vmatprep.subr.bf16.mxu0 %v2552
    %2894 = vmatpush1.bf16.msra.mxu0 %v2551
    %2895 = vmatprep.subr.bf16.mxu0 %v2568
    %2896 = vmatpush1.bf16.msra.mxu0 %v2567
    %2897 = vmatprep.subr.bf16.mxu0 %v2584
    %2898 = vmatpush1.bf16.msra.mxu0 %v2583
    %2899 = vmatprep.subr.bf16.mxu0 0
    %2900 = vmatpush1.bf16.msra.mxu0 0
    %2901 = vmatprep.subr.bf16.mxu0 0
    %2902 = vmatpush1.bf16.msra.mxu0 0
    %2903 = vmatprep.subr.bf16.mxu0 0
    %2904 = vmatpush1.bf16.msra.mxu0 0
    %2905 = vmatprep.subr.bf16.mxu0 0
    %2906 = vmatpush1.bf16.msra.mxu0 0
    %2907 = vmatprep.subr.bf16.mxu0 0
    %2908 = vmatpush1.bf16.msra.mxu0 0
    %2909 = vmatprep.subr.bf16.mxu0 0
    %2910 = vmatpush1.bf16.msra.mxu0 0
    %2911 = vmatprep.subr.bf16.mxu0 0
    %2912 = vmatpush1.bf16.msra.mxu0 0
    %2913 = vmatprep.subr.bf16.mxu0 0
    %2914 = vmatpush1.bf16.msra.mxu0 0
    %2915 = vmatprep.mubr.bf16.mxu0 0
    %2916 = vmatmul.mubr.bf16.gmra.mrb[0].mxu0 %v1950
    %v2917 = vpop.f32.mrb[0].mxu0
    %v2918 = vadd.f32 0.0, %v2917
    %v2919 = vpop.f32.mrb[0].mxu0
    %v2920 = vadd.f32 0.0, %v2919
    %v2921 = vpop.f32.mrb[0].mxu0
    %v2922 = vpop.f32.mrb[0].mxu0
    %2923 = vdwg.mxu0
    %2924 = vmatprep.subr.bf16.mxu0 %v2474
    %2925 = vmatpush1.bf16.msra.mxu0 %v2473
    %2926 = vmatprep.subr.bf16.mxu0 %v2490
    %2927 = vmatpush1.bf16.msra.mxu0 %v2489
    %2928 = vmatprep.subr.bf16.mxu0 %v2506
    %2929 = vmatpush1.bf16.msra.mxu0 %v2505
    %2930 = vmatprep.subr.bf16.mxu0 %v2522
    %2931 = vmatpush1.bf16.msra.mxu0 %v2521
    %2932 = vmatprep.subr.bf16.mxu0 %v2538
    %2933 = vmatpush1.bf16.msra.mxu0 %v2537
    %2934 = vmatprep.subr.bf16.mxu0 %v2554
    %2935 = vmatpush1.bf16.msra.mxu0 %v2553
    %2936 = vmatprep.subr.bf16.mxu0 %v2570
    %2937 = vmatpush1.bf16.msra.mxu0 %v2569
    %2938 = vmatprep.subr.bf16.mxu0 %v2586
    %2939 = vmatpush1.bf16.msra.mxu0 %v2585
    %2940 = vmatprep.subr.bf16.mxu0 0
    %2941 = vmatpush1.bf16.msra.mxu0 0
    %2942 = vmatprep.subr.bf16.mxu0 0
    %2943 = vmatpush1.bf16.msra.mxu0 0
    %2944 = vmatprep.subr.bf16.mxu0 0
    %2945 = vmatpush1.bf16.msra.mxu0 0
    %2946 = vmatprep.subr.bf16.mxu0 0
    %2947 = vmatpush1.bf16.msra.mxu0 0
    %2948 = vmatprep.subr.bf16.mxu0 0
    %2949 = vmatpush1.bf16.msra.mxu0 0
    %2950 = vmatprep.subr.bf16.mxu0 0
    %2951 = vmatpush1.bf16.msra.mxu0 0
    %2952 = vmatprep.subr.bf16.mxu0 0
    %2953 = vmatpush1.bf16.msra.mxu0 0
    %2954 = vmatprep.subr.bf16.mxu0 0
    %2955 = vmatpush1.bf16.msra.mxu0 0
    %2956 = vmatprep.mubr.bf16.mxu0 0
    %2957 = vmatmul.mubr.bf16.gmra.mrb[0].mxu0 %v1950
    %v2958 = vpop.f32.mrb[0].mxu0
    %v2959 = vadd.f32 0.0, %v2958
    %v2960 = vpop.f32.mrb[0].mxu0
    %v2961 = vadd.f32 0.0, %v2960
    %v2962 = vpop.f32.mrb[0].mxu0
    %v2963 = vpop.f32.mrb[0].mxu0
    %2964 = vdwg.mxu0
    %2965 = vmatprep.subr.bf16.mxu0 %v2476
    %2966 = vmatpush1.bf16.msra.mxu0 %v2475
    %2967 = vmatprep.subr.bf16.mxu0 %v2492
    %2968 = vmatpush1.bf16.msra.mxu0 %v2491
    %2969 = vmatprep.subr.bf16.mxu0 %v2508
    %2970 = vmatpush1.bf16.msra.mxu0 %v2507
    %2971 = vmatprep.subr.bf16.mxu0 %v2524
    %2972 = vmatpush1.bf16.msra.mxu0 %v2523
    %2973 = vmatprep.subr.bf16.mxu0 %v2540
    %2974 = vmatpush1.bf16.msra.mxu0 %v2539
    %2975 = vmatprep.subr.bf16.mxu0 %v2556
    %2976 = vmatpush1.bf16.msra.mxu0 %v2555
    %2977 = vmatprep.subr.bf16.mxu0 %v2572
    %2978 = vmatpush1.bf16.msra.mxu0 %v2571
    %2979 = vmatprep.subr.bf16.mxu0 %v2588
    %2980 = vmatpush1.bf16.msra.mxu0 %v2587
    %2981 = vmatprep.subr.bf16.mxu0 0
    %2982 = vmatpush1.bf16.msra.mxu0 0
    %2983 = vmatprep.subr.bf16.mxu0 0
    %2984 = vmatpush1.bf16.msra.mxu0 0
    %2985 = vmatprep.subr.bf16.mxu0 0
    %2986 = vmatpush1.bf16.msra.mxu0 0
    %2987 = vmatprep.subr.bf16.mxu0 0
    %2988 = vmatpush1.bf16.msra.mxu0 0
    %2989 = vmatprep.subr.bf16.mxu0 0
    %2990 = vmatpush1.bf16.msra.mxu0 0
    %2991 = vmatprep.subr.bf16.mxu0 0
    %2992 = vmatpush1.bf16.msra.mxu0 0
    %2993 = vmatprep.subr.bf16.mxu0 0
    %2994 = vmatpush1.bf16.msra.mxu0 0
    %2995 = vmatprep.subr.bf16.mxu0 0
    %2996 = vmatpush1.bf16.msra.mxu0 0
    %2997 = vmatprep.mubr.bf16.mxu0 0
    %2998 = vmatmul.mubr.bf16.gmra.mrb[0].mxu0 %v1950
    %v2999 = vpop.f32.mrb[0].mxu0
    %v3000 = vadd.f32 0.0, %v2999
    %v3001 = vpop.f32.mrb[0].mxu0
    %v3002 = vadd.f32 0.0, %v3001
    %v3003 = vpop.f32.mrb[0].mxu0
    %v3004 = vpop.f32.mrb[0].mxu0
    %3005 = vdwg.mxu0
    %3006 = vmatprep.subr.bf16.mxu0 %v2478
    %3007 = vmatpush1.bf16.msra.mxu0 %v2477
    %3008 = vmatprep.subr.bf16.mxu0 %v2494
    %3009 = vmatpush1.bf16.msra.mxu0 %v2493
    %3010 = vmatprep.subr.bf16.mxu0 %v2510
    %3011 = vmatpush1.bf16.msra.mxu0 %v2509
    %3012 = vmatprep.subr.bf16.mxu0 %v2526
    %3013 = vmatpush1.bf16.msra.mxu0 %v2525
    %3014 = vmatprep.subr.bf16.mxu0 %v2542
    %3015 = vmatpush1.bf16.msra.mxu0 %v2541
    %3016 = vmatprep.subr.bf16.mxu0 %v2558
    %3017 = vmatpush1.bf16.msra.mxu0 %v2557
    %3018 = vmatprep.subr.bf16.mxu0 %v2574
    %3019 = vmatpush1.bf16.msra.mxu0 %v2573
    %3020 = vmatprep.subr.bf16.mxu0 %v2590
    %3021 = vmatpush1.bf16.msra.mxu0 %v2589
    %3022 = vmatprep.subr.bf16.mxu0 0
    %3023 = vmatpush1.bf16.msra.mxu0 0
    %3024 = vmatprep.subr.bf16.mxu0 0
    %3025 = vmatpush1.bf16.msra.mxu0 0
    %3026 = vmatprep.subr.bf16.mxu0 0
    %3027 = vmatpush1.bf16.msra.mxu0 0
    %3028 = vmatprep.subr.bf16.mxu0 0
    %3029 = vmatpush1.bf16.msra.mxu0 0
    %3030 = vmatprep.subr.bf16.mxu0 0
    %3031 = vmatpush1.bf16.msra.mxu0 0
    %3032 = vmatprep.subr.bf16.mxu0 0
    %3033 = vmatpush1.bf16.msra.mxu0 0
    %3034 = vmatprep.subr.bf16.mxu0 0
    %3035 = vmatpush1.bf16.msra.mxu0 0
    %3036 = vmatprep.subr.bf16.mxu0 0
    %3037 = vmatpush1.bf16.msra.mxu0 0
    %3038 = vmatprep.mubr.bf16.mxu0 0
    %3039 = vmatmul.mubr.bf16.gmra.mrb[0].mxu0 %v1950
    %v3040 = vpop.f32.mrb[0].mxu0
    %v3041 = vadd.f32 0.0, %v3040
    %v3042 = vpop.f32.mrb[0].mxu0
    %v3043 = vadd.f32 0.0, %v3042
    %v3044 = vpop.f32.mrb[0].mxu0
    %v3045 = vpop.f32.mrb[0].mxu0
    %3046 = vdwg.mxu0
    %v3175 = vunpack.c.l.b16 %v1822
    %v3176 = vunpack.c.h.b16 %v1822
    %v3177 = vunpack.c.l.b16 %v1823
    %v3178 = vunpack.c.h.b16 %v1823
    %v3179 = vunpack.c.l.b16 %v1824
    %v3180 = vunpack.c.h.b16 %v1824
    %v3181 = vunpack.c.l.b16 %v1825
    %v3182 = vunpack.c.h.b16 %v1825
    %v3183 = vunpack.c.l.b16 %v1826
    %v3184 = vunpack.c.h.b16 %v1826
    %v3185 = vunpack.c.l.b16 %v1827
    %v3186 = vunpack.c.h.b16 %v1827
    %v3187 = vunpack.c.l.b16 %v1828
    %v3188 = vunpack.c.h.b16 %v1828
    %v3189 = vunpack.c.l.b16 %v1829
    %v3190 = vunpack.c.h.b16 %v1829
    %v3191 = vunpack.c.l.b16 %v1830
    %v3192 = vunpack.c.h.b16 %v1830
    %v3193 = vunpack.c.l.b16 %v1831
    %v3194 = vunpack.c.h.b16 %v1831
    %v3195 = vunpack.c.l.b16 %v1832
    %v3196 = vunpack.c.h.b16 %v1832
    %v3197 = vunpack.c.l.b16 %v1833
    %v3198 = vunpack.c.h.b16 %v1833
    %v3199 = vunpack.c.l.b16 %v1834
    %v3200 = vunpack.c.h.b16 %v1834
    %v3201 = vunpack.c.l.b16 %v1835
    %v3202 = vunpack.c.h.b16 %v1835
    %v3203 = vunpack.c.l.b16 %v1836
    %v3204 = vunpack.c.h.b16 %v1836
    %v3205 = vunpack.c.l.b16 %v1837
    %v3206 = vunpack.c.h.b16 %v1837
    %v3207 = vunpack.c.l.b16 %v1838
    %v3208 = vunpack.c.h.b16 %v1838
    %v3209 = vunpack.c.l.b16 %v1839
    %v3210 = vunpack.c.h.b16 %v1839
    %v3211 = vunpack.c.l.b16 %v1840
    %v3212 = vunpack.c.h.b16 %v1840
    %v3213 = vunpack.c.l.b16 %v1841
    %v3214 = vunpack.c.h.b16 %v1841
    %v3215 = vunpack.c.l.b16 %v1842
    %v3216 = vunpack.c.h.b16 %v1842
    %v3217 = vunpack.c.l.b16 %v1843
    %v3218 = vunpack.c.h.b16 %v1843
    %v3219 = vunpack.c.l.b16 %v1844
    %v3220 = vunpack.c.h.b16 %v1844
    %v3221 = vunpack.c.l.b16 %v1845
    %v3222 = vunpack.c.h.b16 %v1845
    %v3223 = vunpack.c.l.b16 %v1846
    %v3224 = vunpack.c.h.b16 %v1846
    %v3225 = vunpack.c.l.b16 %v1847
    %v3226 = vunpack.c.h.b16 %v1847
    %v3227 = vunpack.c.l.b16 %v1848
    %v3228 = vunpack.c.h.b16 %v1848
    %v3229 = vunpack.c.l.b16 %v1849
    %v3230 = vunpack.c.h.b16 %v1849
    %v3231 = vunpack.c.l.b16 %v1850
    %v3232 = vunpack.c.h.b16 %v1850
    %v3233 = vunpack.c.l.b16 %v1851
    %v3234 = vunpack.c.h.b16 %v1851
    %v3235 = vunpack.c.l.b16 %v1852
    %v3236 = vunpack.c.h.b16 %v1852
    %v3237 = vunpack.c.l.b16 %v1853
    %v3238 = vunpack.c.h.b16 %v1853
    %v3239 = vunpack.c.l.b16 %v1854
    %v3240 = vunpack.c.h.b16 %v1854
    %v3241 = vunpack.c.l.b16 %v1855
    %v3242 = vunpack.c.h.b16 %v1855
    %v3243 = vunpack.c.l.b16 %v1856
    %v3244 = vunpack.c.h.b16 %v1856
    %v3245 = vunpack.c.l.b16 %v1857
    %v3246 = vunpack.c.h.b16 %v1857
    %v3247 = vunpack.c.l.b16 %v1858
    %v3248 = vunpack.c.h.b16 %v1858
    %v3249 = vunpack.c.l.b16 %v1859
    %v3250 = vunpack.c.h.b16 %v1859
    %v3251 = vunpack.c.l.b16 %v1860
    %v3252 = vunpack.c.h.b16 %v1860
    %v3253 = vunpack.c.l.b16 %v1861
    %v3254 = vunpack.c.h.b16 %v1861
    %v3255 = vunpack.c.l.b16 %v1862
    %v3256 = vunpack.c.h.b16 %v1862
    %v3257 = vunpack.c.l.b16 %v1863
    %v3258 = vunpack.c.h.b16 %v1863
    %v3259 = vunpack.c.l.b16 %v1864
    %v3260 = vunpack.c.h.b16 %v1864
    %v3261 = vunpack.c.l.b16 %v1865
    %v3262 = vunpack.c.h.b16 %v1865
    %v3263 = vunpack.c.l.b16 %v1866
    %v3264 = vunpack.c.h.b16 %v1866
    %v3265 = vunpack.c.l.b16 %v1867
    %v3266 = vunpack.c.h.b16 %v1867
    %v3267 = vunpack.c.l.b16 %v1868
    %v3268 = vunpack.c.h.b16 %v1868
    %v3269 = vunpack.c.l.b16 %v1869
    %v3270 = vunpack.c.h.b16 %v1869
    %v3271 = vunpack.c.l.b16 %v1870
    %v3272 = vunpack.c.h.b16 %v1870
    %v3273 = vunpack.c.l.b16 %v1871
    %v3274 = vunpack.c.h.b16 %v1871
    %v3275 = vunpack.c.l.b16 %v1872
    %v3276 = vunpack.c.h.b16 %v1872
    %v3277 = vunpack.c.l.b16 %v1873
    %v3278 = vunpack.c.h.b16 %v1873
    %v3279 = vunpack.c.l.b16 %v1874
    %v3280 = vunpack.c.h.b16 %v1874
    %v3281 = vunpack.c.l.b16 %v1875
    %v3282 = vunpack.c.h.b16 %v1875
    %v3283 = vunpack.c.l.b16 %v1876
    %v3284 = vunpack.c.h.b16 %v1876
    %v3285 = vunpack.c.l.b16 %v1877
    %v3286 = vunpack.c.h.b16 %v1877
    %v3287 = vunpack.c.l.b16 %v1878
    %v3288 = vunpack.c.h.b16 %v1878
    %v3289 = vunpack.c.l.b16 %v1879
    %v3290 = vunpack.c.h.b16 %v1879
    %v3291 = vunpack.c.l.b16 %v1880
    %v3292 = vunpack.c.h.b16 %v1880
    %v3293 = vunpack.c.l.b16 %v1881
    %v3294 = vunpack.c.h.b16 %v1881
    %v3295 = vunpack.c.l.b16 %v1882
    %v3296 = vunpack.c.h.b16 %v1882
    %v3297 = vunpack.c.l.b16 %v1883
    %v3298 = vunpack.c.h.b16 %v1883
    %v3299 = vunpack.c.l.b16 %v1884
    %v3300 = vunpack.c.h.b16 %v1884
    %v3301 = vunpack.c.l.b16 %v1885
    %v3302 = vunpack.c.h.b16 %v1885
    %v3303 = vunpack.c.l.b16 %v1886
    %v3304 = vunpack.c.h.b16 %v1886
    %v3305 = vunpack.c.l.b16 %v1887
    %v3306 = vunpack.c.h.b16 %v1887
    %v3307 = vunpack.c.l.b16 %v1888
    %v3308 = vunpack.c.h.b16 %v1888
    %v3309 = vunpack.c.l.b16 %v1889
    %v3310 = vunpack.c.h.b16 %v1889
    %v3311 = vunpack.c.l.b16 %v1890
    %v3312 = vunpack.c.h.b16 %v1890
    %v3313 = vunpack.c.l.b16 %v1891
    %v3314 = vunpack.c.h.b16 %v1891
    %v3315 = vunpack.c.l.b16 %v1892
    %v3316 = vunpack.c.h.b16 %v1892
    %v3317 = vunpack.c.l.b16 %v1893
    %v3318 = vunpack.c.h.b16 %v1893
    %v3319 = vunpack.c.l.b16 %v1894
    %v3320 = vunpack.c.h.b16 %v1894
    %v3321 = vunpack.c.l.b16 %v1895
    %v3322 = vunpack.c.h.b16 %v1895
    %v3323 = vunpack.c.l.b16 %v1896
    %v3324 = vunpack.c.h.b16 %v1896
    %v3325 = vunpack.c.l.b16 %v1897
    %v3326 = vunpack.c.h.b16 %v1897
    %v3327 = vunpack.c.l.b16 %v1898
    %v3328 = vunpack.c.h.b16 %v1898
    %v3329 = vunpack.c.l.b16 %v1899
    %v3330 = vunpack.c.h.b16 %v1899
    %v3331 = vunpack.c.l.b16 %v1900
    %v3332 = vunpack.c.h.b16 %v1900
    %v3333 = vunpack.c.l.b16 %v1901
    %v3334 = vunpack.c.h.b16 %v1901
    %v3335 = vunpack.c.l.b16 %v1902
    %v3336 = vunpack.c.h.b16 %v1902
    %v3337 = vunpack.c.l.b16 %v1903
    %v3338 = vunpack.c.h.b16 %v1903
    %v3339 = vunpack.c.l.b16 %v1904
    %v3340 = vunpack.c.h.b16 %v1904
    %v3341 = vunpack.c.l.b16 %v1905
    %v3342 = vunpack.c.h.b16 %v1905
    %v3343 = vunpack.c.l.b16 %v1906
    %v3344 = vunpack.c.h.b16 %v1906
    %v3345 = vunpack.c.l.b16 %v1907
    %v3346 = vunpack.c.h.b16 %v1907
    %v3347 = vunpack.c.l.b16 %v1908
    %v3348 = vunpack.c.h.b16 %v1908
    %v3349 = vunpack.c.l.b16 %v1909
    %v3350 = vunpack.c.h.b16 %v1909
    %v3351 = vunpack.c.l.b16 %v1910
    %v3352 = vunpack.c.h.b16 %v1910
    %v3353 = vunpack.c.l.b16 %v1911
    %v3354 = vunpack.c.h.b16 %v1911
    %v3355 = vunpack.c.l.b16 %v1912
    %v3356 = vunpack.c.h.b16 %v1912
    %v3357 = vunpack.c.l.b16 %v1913
    %v3358 = vunpack.c.h.b16 %v1913
    %v3359 = vunpack.c.l.b16 %v1914
    %v3360 = vunpack.c.h.b16 %v1914
    %v3361 = vunpack.c.l.b16 %v1915
    %v3362 = vunpack.c.h.b16 %v1915
    %v3363 = vunpack.c.l.b16 %v1916
    %v3364 = vunpack.c.h.b16 %v1916
    %v3365 = vunpack.c.l.b16 %v1917
    %v3366 = vunpack.c.h.b16 %v1917
    %v3367 = vunpack.c.l.b16 %v1918
    %v3368 = vunpack.c.h.b16 %v1918
    %v3369 = vunpack.c.l.b16 %v1919
    %v3370 = vunpack.c.h.b16 %v1919
    %v3371 = vunpack.c.l.b16 %v1920
    %v3372 = vunpack.c.h.b16 %v1920
    %v3373 = vunpack.c.l.b16 %v1921
    %v3374 = vunpack.c.h.b16 %v1921
    %v3375 = vunpack.c.l.b16 %v1922
    %v3376 = vunpack.c.h.b16 %v1922
    %v3377 = vunpack.c.l.b16 %v1923
    %v3378 = vunpack.c.h.b16 %v1923
    %v3379 = vunpack.c.l.b16 %v1924
    %v3380 = vunpack.c.h.b16 %v1924
    %v3381 = vunpack.c.l.b16 %v1925
    %v3382 = vunpack.c.h.b16 %v1925
    %v3383 = vunpack.c.l.b16 %v1926
    %v3384 = vunpack.c.h.b16 %v1926
    %v3385 = vunpack.c.l.b16 %v1927
    %v3386 = vunpack.c.h.b16 %v1927
    %v3387 = vunpack.c.l.b16 %v1928
    %v3388 = vunpack.c.h.b16 %v1928
    %v3389 = vunpack.c.l.b16 %v1929
    %v3390 = vunpack.c.h.b16 %v1929
    %v3391 = vunpack.c.l.b16 %v1930
    %v3392 = vunpack.c.h.b16 %v1930
    %v3393 = vunpack.c.l.b16 %v1931
    %v3394 = vunpack.c.h.b16 %v1931
    %v3395 = vunpack.c.l.b16 %v1932
    %v3396 = vunpack.c.h.b16 %v1932
    %v3397 = vunpack.c.l.b16 %v1933
    %v3398 = vunpack.c.h.b16 %v1933
    %v3399 = vunpack.c.l.b16 %v1934
    %v3400 = vunpack.c.h.b16 %v1934
    %v3401 = vunpack.c.l.b16 %v1935
    %v3402 = vunpack.c.h.b16 %v1935
    %v3403 = vunpack.c.l.b16 %v1936
    %v3404 = vunpack.c.h.b16 %v1936
    %v3405 = vunpack.c.l.b16 %v1937
    %v3406 = vunpack.c.h.b16 %v1937
    %v3407 = vunpack.c.l.b16 %v1938
    %v3408 = vunpack.c.h.b16 %v1938
    %v3409 = vunpack.c.l.b16 %v1939
    %v3410 = vunpack.c.h.b16 %v1939
    %v3411 = vunpack.c.l.b16 %v1940
    %v3412 = vunpack.c.h.b16 %v1940
    %v3413 = vunpack.c.l.b16 %v1941
    %v3414 = vunpack.c.h.b16 %v1941
    %v3415 = vunpack.c.l.b16 %v1942
    %v3416 = vunpack.c.h.b16 %v1942
    %v3417 = vunpack.c.l.b16 %v1943
    %v3418 = vunpack.c.h.b16 %v1943
    %v3419 = vunpack.c.l.b16 %v1944
    %v3420 = vunpack.c.h.b16 %v1944
    %v3421 = vunpack.c.l.b16 %v1945
    %v3422 = vunpack.c.h.b16 %v1945
    %v3423 = vunpack.c.l.b16 %v1946
    %v3424 = vunpack.c.h.b16 %v1946
    %v3425 = vunpack.c.l.b16 %v1947
    %v3426 = vunpack.c.h.b16 %v1947
    %v3427 = vunpack.c.l.b16 %v1948
    %v3428 = vunpack.c.h.b16 %v1948
    %v3429 = vunpack.c.l.b16 %v1949
    %v3430 = vunpack.c.h.b16 %v1949
    %v3431 = vpack.c.b16 %v3191, %v3175
    %v3432 = vpack.c.b16 %v3192, %v3176
    %v3433 = vpack.c.b16 %v3193, %v3177
    %v3434 = vpack.c.b16 %v3194, %v3178
    %v3435 = vpack.c.b16 %v3195, %v3179
    %v3436 = vpack.c.b16 %v3196, %v3180
    %v3437 = vpack.c.b16 %v3197, %v3181
    %v3438 = vpack.c.b16 %v3198, %v3182
    %v3439 = vpack.c.b16 %v3199, %v3183
    %v3440 = vpack.c.b16 %v3200, %v3184
    %v3441 = vpack.c.b16 %v3201, %v3185
    %v3442 = vpack.c.b16 %v3202, %v3186
    %v3443 = vpack.c.b16 %v3203, %v3187
    %v3444 = vpack.c.b16 %v3204, %v3188
    %v3445 = vpack.c.b16 %v3205, %v3189
    %v3446 = vpack.c.b16 %v3206, %v3190
    %v3447 = vpack.c.b16 %v3223, %v3207
    %v3448 = vpack.c.b16 %v3224, %v3208
    %v3449 = vpack.c.b16 %v3225, %v3209
    %v3450 = vpack.c.b16 %v3226, %v3210
    %v3451 = vpack.c.b16 %v3227, %v3211
    %v3452 = vpack.c.b16 %v3228, %v3212
    %v3453 = vpack.c.b16 %v3229, %v3213
    %v3454 = vpack.c.b16 %v3230, %v3214
    %v3455 = vpack.c.b16 %v3231, %v3215
    %v3456 = vpack.c.b16 %v3232, %v3216
    %v3457 = vpack.c.b16 %v3233, %v3217
    %v3458 = vpack.c.b16 %v3234, %v3218
    %v3459 = vpack.c.b16 %v3235, %v3219
    %v3460 = vpack.c.b16 %v3236, %v3220
    %v3461 = vpack.c.b16 %v3237, %v3221
    %v3462 = vpack.c.b16 %v3238, %v3222
    %v3463 = vpack.c.b16 %v3255, %v3239
    %v3464 = vpack.c.b16 %v3256, %v3240
    %v3465 = vpack.c.b16 %v3257, %v3241
    %v3466 = vpack.c.b16 %v3258, %v3242
    %v3467 = vpack.c.b16 %v3259, %v3243
    %v3468 = vpack.c.b16 %v3260, %v3244
    %v3469 = vpack.c.b16 %v3261, %v3245
    %v3470 = vpack.c.b16 %v3262, %v3246
    %v3471 = vpack.c.b16 %v3263, %v3247
    %v3472 = vpack.c.b16 %v3264, %v3248
    %v3473 = vpack.c.b16 %v3265, %v3249
    %v3474 = vpack.c.b16 %v3266, %v3250
    %v3475 = vpack.c.b16 %v3267, %v3251
    %v3476 = vpack.c.b16 %v3268, %v3252
    %v3477 = vpack.c.b16 %v3269, %v3253
    %v3478 = vpack.c.b16 %v3270, %v3254
    %v3479 = vpack.c.b16 %v3287, %v3271
    %v3480 = vpack.c.b16 %v3288, %v3272
    %v3481 = vpack.c.b16 %v3289, %v3273
    %v3482 = vpack.c.b16 %v3290, %v3274
    %v3483 = vpack.c.b16 %v3291, %v3275
    %v3484 = vpack.c.b16 %v3292, %v3276
    %v3485 = vpack.c.b16 %v3293, %v3277
    %v3486 = vpack.c.b16 %v3294, %v3278
    %v3487 = vpack.c.b16 %v3295, %v3279
    %v3488 = vpack.c.b16 %v3296, %v3280
    %v3489 = vpack.c.b16 %v3297, %v3281
    %v3490 = vpack.c.b16 %v3298, %v3282
    %v3491 = vpack.c.b16 %v3299, %v3283
    %v3492 = vpack.c.b16 %v3300, %v3284
    %v3493 = vpack.c.b16 %v3301, %v3285
    %v3494 = vpack.c.b16 %v3302, %v3286
    %v3495 = vpack.c.b16 %v3319, %v3303
    %v3496 = vpack.c.b16 %v3320, %v3304
    %v3497 = vpack.c.b16 %v3321, %v3305
    %v3498 = vpack.c.b16 %v3322, %v3306
    %v3499 = vpack.c.b16 %v3323, %v3307
    %v3500 = vpack.c.b16 %v3324, %v3308
    %v3501 = vpack.c.b16 %v3325, %v3309
    %v3502 = vpack.c.b16 %v3326, %v3310
    %v3503 = vpack.c.b16 %v3327, %v3311
    %v3504 = vpack.c.b16 %v3328, %v3312
    %v3505 = vpack.c.b16 %v3329, %v3313
    %v3506 = vpack.c.b16 %v3330, %v3314
    %v3507 = vpack.c.b16 %v3331, %v3315
    %v3508 = vpack.c.b16 %v3332, %v3316
    %v3509 = vpack.c.b16 %v3333, %v3317
    %v3510 = vpack.c.b16 %v3334, %v3318
    %v3511 = vpack.c.b16 %v3351, %v3335
    %v3512 = vpack.c.b16 %v3352, %v3336
    %v3513 = vpack.c.b16 %v3353, %v3337
    %v3514 = vpack.c.b16 %v3354, %v3338
    %v3515 = vpack.c.b16 %v3355, %v3339
    %v3516 = vpack.c.b16 %v3356, %v3340
    %v3517 = vpack.c.b16 %v3357, %v3341
    %v3518 = vpack.c.b16 %v3358, %v3342
    %v3519 = vpack.c.b16 %v3359, %v3343
    %v3520 = vpack.c.b16 %v3360, %v3344
    %v3521 = vpack.c.b16 %v3361, %v3345
    %v3522 = vpack.c.b16 %v3362, %v3346
    %v3523 = vpack.c.b16 %v3363, %v3347
    %v3524 = vpack.c.b16 %v3364, %v3348
    %v3525 = vpack.c.b16 %v3365, %v3349
    %v3526 = vpack.c.b16 %v3366, %v3350
    %v3527 = vpack.c.b16 %v3383, %v3367
    %v3528 = vpack.c.b16 %v3384, %v3368
    %v3529 = vpack.c.b16 %v3385, %v3369
    %v3530 = vpack.c.b16 %v3386, %v3370
    %v3531 = vpack.c.b16 %v3387, %v3371
    %v3532 = vpack.c.b16 %v3388, %v3372
    %v3533 = vpack.c.b16 %v3389, %v3373
    %v3534 = vpack.c.b16 %v3390, %v3374
    %v3535 = vpack.c.b16 %v3391, %v3375
    %v3536 = vpack.c.b16 %v3392, %v3376
    %v3537 = vpack.c.b16 %v3393, %v3377
    %v3538 = vpack.c.b16 %v3394, %v3378
    %v3539 = vpack.c.b16 %v3395, %v3379
    %v3540 = vpack.c.b16 %v3396, %v3380
    %v3541 = vpack.c.b16 %v3397, %v3381
    %v3542 = vpack.c.b16 %v3398, %v3382
    %v3543 = vpack.c.b16 %v3415, %v3399
    %v3544 = vpack.c.b16 %v3416, %v3400
    %v3545 = vpack.c.b16 %v3417, %v3401
    %v3546 = vpack.c.b16 %v3418, %v3402
    %v3547 = vpack.c.b16 %v3419, %v3403
    %v3548 = vpack.c.b16 %v3420, %v3404
    %v3549 = vpack.c.b16 %v3421, %v3405
    %v3550 = vpack.c.b16 %v3422, %v3406
    %v3551 = vpack.c.b16 %v3423, %v3407
    %v3552 = vpack.c.b16 %v3424, %v3408
    %v3553 = vpack.c.b16 %v3425, %v3409
    %v3554 = vpack.c.b16 %v3426, %v3410
    %v3555 = vpack.c.b16 %v3427, %v3411
    %v3556 = vpack.c.b16 %v3428, %v3412
    %v3557 = vpack.c.b16 %v3429, %v3413
    %v3558 = vpack.c.b16 %v3430, %v3414
    %3687 = vmatprep.subr.bf16.mxu0 %v3432
    %3688 = vmatpush1.bf16.msra.mxu0 %v3431
    %3689 = vmatprep.subr.bf16.mxu0 %v3448
    %3690 = vmatpush1.bf16.msra.mxu0 %v3447
    %3691 = vmatprep.subr.bf16.mxu0 %v3464
    %3692 = vmatpush1.bf16.msra.mxu0 %v3463
    %3693 = vmatprep.subr.bf16.mxu0 %v3480
    %3694 = vmatpush1.bf16.msra.mxu0 %v3479
    %3695 = vmatprep.subr.bf16.mxu0 %v3496
    %3696 = vmatpush1.bf16.msra.mxu0 %v3495
    %3697 = vmatprep.subr.bf16.mxu0 %v3512
    %3698 = vmatpush1.bf16.msra.mxu0 %v3511
    %3699 = vmatprep.subr.bf16.mxu0 %v3528
    %3700 = vmatpush1.bf16.msra.mxu0 %v3527
    %3701 = vmatprep.subr.bf16.mxu0 %v3544
    %3702 = vmatpush1.bf16.msra.mxu0 %v3543
    %3703 = vmatprep.subr.bf16.mxu0 0
    %3704 = vmatpush1.bf16.msra.mxu0 0
    %3705 = vmatprep.subr.bf16.mxu0 0
    %3706 = vmatpush1.bf16.msra.mxu0 0
    %3707 = vmatprep.subr.bf16.mxu0 0
    %3708 = vmatpush1.bf16.msra.mxu0 0
    %3709 = vmatprep.subr.bf16.mxu0 0
    %3710 = vmatpush1.bf16.msra.mxu0 0
    %3711 = vmatprep.subr.bf16.mxu0 0
    %3712 = vmatpush1.bf16.msra.mxu0 0
    %3713 = vmatprep.subr.bf16.mxu0 0
    %3714 = vmatpush1.bf16.msra.mxu0 0
    %3715 = vmatprep.subr.bf16.mxu0 0
    %3716 = vmatpush1.bf16.msra.mxu0 0
    %3717 = vmatprep.subr.bf16.mxu0 0
    %3718 = vmatpush1.bf16.msra.mxu0 0
    %3719 = vmatprep.mubr.bf16.mxu0 0
    %3720 = vmatmul.mubr.bf16.gmra.mrb[0].mxu0 %v1709
    %v3721 = vpop.f32.mrb[0].mxu0
    %v3722 = vadd.f32 %v2754, %v3721
    %v3723 = vpop.f32.mrb[0].mxu0
    %v3724 = vadd.f32 %v2756, %v3723
    %v3725 = vpop.f32.mrb[0].mxu0
    %v3726 = vpop.f32.mrb[0].mxu0
    %3727 = vdwg.mxu0
    %3728 = vmatprep.subr.bf16.mxu0 %v3434
    %3729 = vmatpush1.bf16.msra.mxu0 %v3433
    %3730 = vmatprep.subr.bf16.mxu0 %v3450
    %3731 = vmatpush1.bf16.msra.mxu0 %v3449
    %3732 = vmatprep.subr.bf16.mxu0 %v3466
    %3733 = vmatpush1.bf16.msra.mxu0 %v3465
    %3734 = vmatprep.subr.bf16.mxu0 %v3482
    %3735 = vmatpush1.bf16.msra.mxu0 %v3481
    %3736 = vmatprep.subr.bf16.mxu0 %v3498
    %3737 = vmatpush1.bf16.msra.mxu0 %v3497
    %3738 = vmatprep.subr.bf16.mxu0 %v3514
    %3739 = vmatpush1.bf16.msra.mxu0 %v3513
    %3740 = vmatprep.subr.bf16.mxu0 %v3530
    %3741 = vmatpush1.bf16.msra.mxu0 %v3529
    %3742 = vmatprep.subr.bf16.mxu0 %v3546
    %3743 = vmatpush1.bf16.msra.mxu0 %v3545
    %3744 = vmatprep.subr.bf16.mxu0 0
    %3745 = vmatpush1.bf16.msra.mxu0 0
    %3746 = vmatprep.subr.bf16.mxu0 0
    %3747 = vmatpush1.bf16.msra.mxu0 0
    %3748 = vmatprep.subr.bf16.mxu0 0
    %3749 = vmatpush1.bf16.msra.mxu0 0
    %3750 = vmatprep.subr.bf16.mxu0 0
    %3751 = vmatpush1.bf16.msra.mxu0 0
    %3752 = vmatprep.subr.bf16.mxu0 0
    %3753 = vmatpush1.bf16.msra.mxu0 0
    %3754 = vmatprep.subr.bf16.mxu0 0
    %3755 = vmatpush1.bf16.msra.mxu0 0
    %3756 = vmatprep.subr.bf16.mxu0 0
    %3757 = vmatpush1.bf16.msra.mxu0 0
    %3758 = vmatprep.subr.bf16.mxu0 0
    %3759 = vmatpush1.bf16.msra.mxu0 0
    %3760 = vmatprep.mubr.bf16.mxu0 0
    %3761 = vmatmul.mubr.bf16.gmra.mrb[0].mxu0 %v1709
    %v3762 = vpop.f32.mrb[0].mxu0
    %v3763 = vadd.f32 %v2795, %v3762
    %v3764 = vpop.f32.mrb[0].mxu0
    %v3765 = vadd.f32 %v2797, %v3764
    %v3766 = vpop.f32.mrb[0].mxu0
    %v3767 = vpop.f32.mrb[0].mxu0
    %3768 = vdwg.mxu0
    %3769 = vmatprep.subr.bf16.mxu0 %v3436
    %3770 = vmatpush1.bf16.msra.mxu0 %v3435
    %3771 = vmatprep.subr.bf16.mxu0 %v3452
    %3772 = vmatpush1.bf16.msra.mxu0 %v3451
    %3773 = vmatprep.subr.bf16.mxu0 %v3468
    %3774 = vmatpush1.bf16.msra.mxu0 %v3467
    %3775 = vmatprep.subr.bf16.mxu0 %v3484
    %3776 = vmatpush1.bf16.msra.mxu0 %v3483
    %3777 = vmatprep.subr.bf16.mxu0 %v3500
    %3778 = vmatpush1.bf16.msra.mxu0 %v3499
    %3779 = vmatprep.subr.bf16.mxu0 %v3516
    %3780 = vmatpush1.bf16.msra.mxu0 %v3515
    %3781 = vmatprep.subr.bf16.mxu0 %v3532
    %3782 = vmatpush1.bf16.msra.mxu0 %v3531
    %3783 = vmatprep.subr.bf16.mxu0 %v3548
    %3784 = vmatpush1.bf16.msra.mxu0 %v3547
    %3785 = vmatprep.subr.bf16.mxu0 0
    %3786 = vmatpush1.bf16.msra.mxu0 0
    %3787 = vmatprep.subr.bf16.mxu0 0
    %3788 = vmatpush1.bf16.msra.mxu0 0
    %3789 = vmatprep.subr.bf16.mxu0 0
    %3790 = vmatpush1.bf16.msra.mxu0 0
    %3791 = vmatprep.subr.bf16.mxu0 0
    %3792 = vmatpush1.bf16.msra.mxu0 0
    %3793 = vmatprep.subr.bf16.mxu0 0
    %3794 = vmatpush1.bf16.msra.mxu0 0
    %3795 = vmatprep.subr.bf16.mxu0 0
    %3796 = vmatpush1.bf16.msra.mxu0 0
    %3797 = vmatprep.subr.bf16.mxu0 0
    %3798 = vmatpush1.bf16.msra.mxu0 0
    %3799 = vmatprep.subr.bf16.mxu0 0
    %3800 = vmatpush1.bf16.msra.mxu0 0
    %3801 = vmatprep.mubr.bf16.mxu0 0
    %3802 = vmatmul.mubr.bf16.gmra.mrb[0].mxu0 %v1709
    %v3803 = vpop.f32.mrb[0].mxu0
    %v3804 = vadd.f32 %v2836, %v3803
    %v3805 = vpop.f32.mrb[0].mxu0
    %v3806 = vadd.f32 %v2838, %v3805
    %v3807 = vpop.f32.mrb[0].mxu0
    %v3808 = vpop.f32.mrb[0].mxu0
    %3809 = vdwg.mxu0
    %3810 = vmatprep.subr.bf16.mxu0 %v3438
    %3811 = vmatpush1.bf16.msra.mxu0 %v3437
    %3812 = vmatprep.subr.bf16.mxu0 %v3454
    %3813 = vmatpush1.bf16.msra.mxu0 %v3453
    %3814 = vmatprep.subr.bf16.mxu0 %v3470
    %3815 = vmatpush1.bf16.msra.mxu0 %v3469
    %3816 = vmatprep.subr.bf16.mxu0 %v3486
    %3817 = vmatpush1.bf16.msra.mxu0 %v3485
    %3818 = vmatprep.subr.bf16.mxu0 %v3502
    %3819 = vmatpush1.bf16.msra.mxu0 %v3501
    %3820 = vmatprep.subr.bf16.mxu0 %v3518
    %3821 = vmatpush1.bf16.msra.mxu0 %v3517
    %3822 = vmatprep.subr.bf16.mxu0 %v3534
    %3823 = vmatpush1.bf16.msra.mxu0 %v3533
    %3824 = vmatprep.subr.bf16.mxu0 %v3550
    %3825 = vmatpush1.bf16.msra.mxu0 %v3549
    %3826 = vmatprep.subr.bf16.mxu0 0
    %3827 = vmatpush1.bf16.msra.mxu0 0
    %3828 = vmatprep.subr.bf16.mxu0 0
    %3829 = vmatpush1.bf16.msra.mxu0 0
    %3830 = vmatprep.subr.bf16.mxu0 0
    %3831 = vmatpush1.bf16.msra.mxu0 0
    %3832 = vmatprep.subr.bf16.mxu0 0
    %3833 = vmatpush1.bf16.msra.mxu0 0
    %3834 = vmatprep.subr.bf16.mxu0 0
    %3835 = vmatpush1.bf16.msra.mxu0 0
    %3836 = vmatprep.subr.bf16.mxu0 0
    %3837 = vmatpush1.bf16.msra.mxu0 0
    %3838 = vmatprep.subr.bf16.mxu0 0
    %3839 = vmatpush1.bf16.msra.mxu0 0
    %3840 = vmatprep.subr.bf16.mxu0 0
    %3841 = vmatpush1.bf16.msra.mxu0 0
    %3842 = vmatprep.mubr.bf16.mxu0 0
    %3843 = vmatmul.mubr.bf16.gmra.mrb[0].mxu0 %v1709
    %v3844 = vpop.f32.mrb[0].mxu0
    %v3845 = vadd.f32 %v2877, %v3844
    %v3846 = vpop.f32.mrb[0].mxu0
    %v3847 = vadd.f32 %v2879, %v3846
    %v3848 = vpop.f32.mrb[0].mxu0
    %v3849 = vpop.f32.mrb[0].mxu0
    %3850 = vdwg.mxu0
    %3851 = vmatprep.subr.bf16.mxu0 %v3440
    %3852 = vmatpush1.bf16.msra.mxu0 %v3439
    %3853 = vmatprep.subr.bf16.mxu0 %v3456
    %3854 = vmatpush1.bf16.msra.mxu0 %v3455
    %3855 = vmatprep.subr.bf16.mxu0 %v3472
    %3856 = vmatpush1.bf16.msra.mxu0 %v3471
    %3857 = vmatprep.subr.bf16.mxu0 %v3488
    %3858 = vmatpush1.bf16.msra.mxu0 %v3487
    %3859 = vmatprep.subr.bf16.mxu0 %v3504
    %3860 = vmatpush1.bf16.msra.mxu0 %v3503
    %3861 = vmatprep.subr.bf16.mxu0 %v3520
    %3862 = vmatpush1.bf16.msra.mxu0 %v3519
    %3863 = vmatprep.subr.bf16.mxu0 %v3536
    %3864 = vmatpush1.bf16.msra.mxu0 %v3535
    %3865 = vmatprep.subr.bf16.mxu0 %v3552
    %3866 = vmatpush1.bf16.msra.mxu0 %v3551
    %3867 = vmatprep.subr.bf16.mxu0 0
    %3868 = vmatpush1.bf16.msra.mxu0 0
    %3869 = vmatprep.subr.bf16.mxu0 0
    %3870 = vmatpush1.bf16.msra.mxu0 0
    %3871 = vmatprep.subr.bf16.mxu0 0
    %3872 = vmatpush1.bf16.msra.mxu0 0
    %3873 = vmatprep.subr.bf16.mxu0 0
    %3874 = vmatpush1.bf16.msra.mxu0 0
    %3875 = vmatprep.subr.bf16.mxu0 0
    %3876 = vmatpush1.bf16.msra.mxu0 0
    %3877 = vmatprep.subr.bf16.mxu0 0
    %3878 = vmatpush1.bf16.msra.mxu0 0
    %3879 = vmatprep.subr.bf16.mxu0 0
    %3880 = vmatpush1.bf16.msra.mxu0 0
    %3881 = vmatprep.subr.bf16.mxu0 0
    %3882 = vmatpush1.bf16.msra.mxu0 0
    %3883 = vmatprep.mubr.bf16.mxu0 0
    %3884 = vmatmul.mubr.bf16.gmra.mrb[0].mxu0 %v1709
    %v3885 = vpop.f32.mrb[0].mxu0
    %v3886 = vadd.f32 %v2918, %v3885
    %v3887 = vpop.f32.mrb[0].mxu0
    %v3888 = vadd.f32 %v2920, %v3887
    %v3889 = vpop.f32.mrb[0].mxu0
    %v3890 = vpop.f32.mrb[0].mxu0
    %3891 = vdwg.mxu0
    %3892 = vmatprep.subr.bf16.mxu0 %v3442
    %3893 = vmatpush1.bf16.msra.mxu0 %v3441
    %3894 = vmatprep.subr.bf16.mxu0 %v3458
    %3895 = vmatpush1.bf16.msra.mxu0 %v3457
    %3896 = vmatprep.subr.bf16.mxu0 %v3474
    %3897 = vmatpush1.bf16.msra.mxu0 %v3473
    %3898 = vmatprep.subr.bf16.mxu0 %v3490
    %3899 = vmatpush1.bf16.msra.mxu0 %v3489
    %3900 = vmatprep.subr.bf16.mxu0 %v3506
    %3901 = vmatpush1.bf16.msra.mxu0 %v3505
    %3902 = vmatprep.subr.bf16.mxu0 %v3522
    %3903 = vmatpush1.bf16.msra.mxu0 %v3521
    %3904 = vmatprep.subr.bf16.mxu0 %v3538
    %3905 = vmatpush1.bf16.msra.mxu0 %v3537
    %3906 = vmatprep.subr.bf16.mxu0 %v3554
    %3907 = vmatpush1.bf16.msra.mxu0 %v3553
    %3908 = vmatprep.subr.bf16.mxu0 0
    %3909 = vmatpush1.bf16.msra.mxu0 0
    %3910 = vmatprep.subr.bf16.mxu0 0
    %3911 = vmatpush1.bf16.msra.mxu0 0
    %3912 = vmatprep.subr.bf16.mxu0 0
    %3913 = vmatpush1.bf16.msra.mxu0 0
    %3914 = vmatprep.subr.bf16.mxu0 0
    %3915 = vmatpush1.bf16.msra.mxu0 0
    %3916 = vmatprep.subr.bf16.mxu0 0
    %3917 = vmatpush1.bf16.msra.mxu0 0
    %3918 = vmatprep.subr.bf16.mxu0 0
    %3919 = vmatpush1.bf16.msra.mxu0 0
    %3920 = vmatprep.subr.bf16.mxu0 0
    %3921 = vmatpush1.bf16.msra.mxu0 0
    %3922 = vmatprep.subr.bf16.mxu0 0
    %3923 = vmatpush1.bf16.msra.mxu0 0
    %3924 = vmatprep.mubr.bf16.mxu0 0
    %3925 = vmatmul.mubr.bf16.gmra.mrb[0].mxu0 %v1709
    %v3926 = vpop.f32.mrb[0].mxu0
    %v3927 = vadd.f32 %v2959, %v3926
    %v3928 = vpop.f32.mrb[0].mxu0
    %v3929 = vadd.f32 %v2961, %v3928
    %v3930 = vpop.f32.mrb[0].mxu0
    %v3931 = vpop.f32.mrb[0].mxu0
    %3932 = vdwg.mxu0
    %3933 = vmatprep.subr.bf16.mxu0 %v3444
    %3934 = vmatpush1.bf16.msra.mxu0 %v3443
    %3935 = vmatprep.subr.bf16.mxu0 %v3460
    %3936 = vmatpush1.bf16.msra.mxu0 %v3459
    %3937 = vmatprep.subr.bf16.mxu0 %v3476
    %3938 = vmatpush1.bf16.msra.mxu0 %v3475
    %3939 = vmatprep.subr.bf16.mxu0 %v3492
    %3940 = vmatpush1.bf16.msra.mxu0 %v3491
    %3941 = vmatprep.subr.bf16.mxu0 %v3508
    %3942 = vmatpush1.bf16.msra.mxu0 %v3507
    %3943 = vmatprep.subr.bf16.mxu0 %v3524
    %3944 = vmatpush1.bf16.msra.mxu0 %v3523
    %3945 = vmatprep.subr.bf16.mxu0 %v3540
    %3946 = vmatpush1.bf16.msra.mxu0 %v3539
    %3947 = vmatprep.subr.bf16.mxu0 %v3556
    %3948 = vmatpush1.bf16.msra.mxu0 %v3555
    %3949 = vmatprep.subr.bf16.mxu0 0
    %3950 = vmatpush1.bf16.msra.mxu0 0
    %3951 = vmatprep.subr.bf16.mxu0 0
    %3952 = vmatpush1.bf16.msra.mxu0 0
    %3953 = vmatprep.subr.bf16.mxu0 0
    %3954 = vmatpush1.bf16.msra.mxu0 0
    %3955 = vmatprep.subr.bf16.mxu0 0
    %3956 = vmatpush1.bf16.msra.mxu0 0
    %3957 = vmatprep.subr.bf16.mxu0 0
    %3958 = vmatpush1.bf16.msra.mxu0 0
    %3959 = vmatprep.subr.bf16.mxu0 0
    %3960 = vmatpush1.bf16.msra.mxu0 0
    %3961 = vmatprep.subr.bf16.mxu0 0
    %3962 = vmatpush1.bf16.msra.mxu0 0
    %3963 = vmatprep.subr.bf16.mxu0 0
    %3964 = vmatpush1.bf16.msra.mxu0 0
    %3965 = vmatprep.mubr.bf16.mxu0 0
    %3966 = vmatmul.mubr.bf16.gmra.mrb[0].mxu0 %v1709
    %v3967 = vpop.f32.mrb[0].mxu0
    %v3968 = vadd.f32 %v3000, %v3967
    %v3969 = vpop.f32.mrb[0].mxu0
    %v3970 = vadd.f32 %v3002, %v3969
    %v3971 = vpop.f32.mrb[0].mxu0
    %v3972 = vpop.f32.mrb[0].mxu0
    %3973 = vdwg.mxu0
    %3974 = vmatprep.subr.bf16.mxu0 %v3446
    %3975 = vmatpush1.bf16.msra.mxu0 %v3445
    %3976 = vmatprep.subr.bf16.mxu0 %v3462
    %3977 = vmatpush1.bf16.msra.mxu0 %v3461
    %3978 = vmatprep.subr.bf16.mxu0 %v3478
    %3979 = vmatpush1.bf16.msra.mxu0 %v3477
    %3980 = vmatprep.subr.bf16.mxu0 %v3494
    %3981 = vmatpush1.bf16.msra.mxu0 %v3493
    %3982 = vmatprep.subr.bf16.mxu0 %v3510
    %3983 = vmatpush1.bf16.msra.mxu0 %v3509
    %3984 = vmatprep.subr.bf16.mxu0 %v3526
    %3985 = vmatpush1.bf16.msra.mxu0 %v3525
    %3986 = vmatprep.subr.bf16.mxu0 %v3542
    %3987 = vmatpush1.bf16.msra.mxu0 %v3541
    %3988 = vmatprep.subr.bf16.mxu0 %v3558
    %3989 = vmatpush1.bf16.msra.mxu0 %v3557
    %3990 = vmatprep.subr.bf16.mxu0 0
    %3991 = vmatpush1.bf16.msra.mxu0 0
    %3992 = vmatprep.subr.bf16.mxu0 0
    %3993 = vmatpush1.bf16.msra.mxu0 0
    %3994 = vmatprep.subr.bf16.mxu0 0
    %3995 = vmatpush1.bf16.msra.mxu0 0
    %3996 = vmatprep.subr.bf16.mxu0 0
    %3997 = vmatpush1.bf16.msra.mxu0 0
    %3998 = vmatprep.subr.bf16.mxu0 0
    %3999 = vmatpush1.bf16.msra.mxu0 0
    %4000 = vmatprep.subr.bf16.mxu0 0
    %4001 = vmatpush1.bf16.msra.mxu0 0
    %4002 = vmatprep.subr.bf16.mxu0 0
    %4003 = vmatpush1.bf16.msra.mxu0 0
    %4004 = vmatprep.subr.bf16.mxu0 0
    %4005 = vmatpush1.bf16.msra.mxu0 0
    %4006 = vmatprep.mubr.bf16.mxu0 0
    %4007 = vmatmul.mubr.bf16.gmra.mrb[0].mxu0 %v1709
    %v4008 = vpop.f32.mrb[0].mxu0
    %v4009 = vadd.f32 %v3041, %v4008
    %v4010 = vpop.f32.mrb[0].mxu0
    %v4011 = vadd.f32 %v3043, %v4010
    %v4012 = vpop.f32.mrb[0].mxu0
    %v4013 = vpop.f32.mrb[0].mxu0
    %4014 = vdwg.mxu0
    %v4015 = vld [vmem:[%s8] sm:$0xff]
    %v4016 = vld [vmem:[%s8 + $0x8] sm:$0xff]
    %v4019 = vlaneseq
    %v4020 = vshrl.u32 %v4019, 7
    %v4021 = vsub.s32 0, %v4020
    %v4022 = vrot.slane %v4015, %v4021
    %v4023 = vlaneseq
    %v4024 = vshrl.u32 %v4023, 7
    %v4025 = vsub.s32 1, %v4024
    %v4026 = vrot.slane %v4015, %v4025
    %v4027 = vlaneseq
    %v4028 = vshrl.u32 %v4027, 7
    %v4029 = vsub.s32 2, %v4028
    %v4030 = vrot.slane %v4015, %v4029
    %v4031 = vlaneseq
    %v4032 = vshrl.u32 %v4031, 7
    %v4033 = vsub.s32 3, %v4032
    %v4034 = vrot.slane %v4015, %v4033
    %v4035 = vlaneseq
    %v4036 = vshrl.u32 %v4035, 7
    %v4037 = vsub.s32 4, %v4036
    %v4038 = vrot.slane %v4015, %v4037
    %v4039 = vlaneseq
    %v4040 = vshrl.u32 %v4039, 7
    %v4041 = vsub.s32 5, %v4040
    %v4042 = vrot.slane %v4015, %v4041
    %v4043 = vlaneseq
    %v4044 = vshrl.u32 %v4043, 7
    %v4045 = vsub.s32 6, %v4044
    %v4046 = vrot.slane %v4015, %v4045
    %v4047 = vlaneseq
    %v4048 = vshrl.u32 %v4047, 7
    %v4049 = vsub.s32 7, %v4048
    %v4050 = vrot.slane %v4015, %v4049
    %v4051 = vlaneseq
    %v4052 = vshrl.u32 %v4051, 7
    %v4053 = vsub.s32 0, %v4052
    %v4054 = vrot.slane %v4016, %v4053
    %v4055 = vlaneseq
    %v4056 = vshrl.u32 %v4055, 7
    %v4057 = vsub.s32 1, %v4056
    %v4058 = vrot.slane %v4016, %v4057
    %v4059 = vlaneseq
    %v4060 = vshrl.u32 %v4059, 7
    %v4061 = vsub.s32 2, %v4060
    %v4062 = vrot.slane %v4016, %v4061
    %v4063 = vlaneseq
    %v4064 = vshrl.u32 %v4063, 7
    %v4065 = vsub.s32 3, %v4064
    %v4066 = vrot.slane %v4016, %v4065
    %v4067 = vlaneseq
    %v4068 = vshrl.u32 %v4067, 7
    %v4069 = vsub.s32 4, %v4068
    %v4070 = vrot.slane %v4016, %v4069
    %v4071 = vlaneseq
    %v4072 = vshrl.u32 %v4071, 7
    %v4073 = vsub.s32 5, %v4072
    %v4074 = vrot.slane %v4016, %v4073
    %v4075 = vlaneseq
    %v4076 = vshrl.u32 %v4075, 7
    %v4077 = vsub.s32 6, %v4076
    %v4078 = vrot.slane %v4016, %v4077
    %v4079 = vlaneseq
    %v4080 = vshrl.u32 %v4079, 7
    %v4081 = vsub.s32 7, %v4080
    %v4082 = vrot.slane %v4016, %v4081
    %v4099 = vadd.f32 %v3722, %v4022
    %v4100 = vadd.f32 %v3724, %v4026
    %v4101 = vadd.f32 %v3763, %v4030
    %v4102 = vadd.f32 %v3765, %v4034
    %v4103 = vadd.f32 %v3804, %v4038
    %v4104 = vadd.f32 %v3806, %v4042
    %v4105 = vadd.f32 %v3845, %v4046
    %v4106 = vadd.f32 %v3847, %v4050
    %v4107 = vadd.f32 %v3886, %v4054
    %v4108 = vadd.f32 %v3888, %v4058
    %v4109 = vadd.f32 %v3927, %v4062
    %v4110 = vadd.f32 %v3929, %v4066
    %v4111 = vadd.f32 %v3968, %v4070
    %v4112 = vadd.f32 %v3970, %v4074
    %v4113 = vadd.f32 %v4009, %v4078
    %v4114 = vadd.f32 %v4011, %v4082
    %v4115 = vpack.c.bf16 %v4099, %v4099
    %v4116 = vpack.c.bf16 %v4100, %v4100
    %v4117 = vpack.c.bf16 %v4101, %v4101
    %v4118 = vpack.c.bf16 %v4102, %v4102
    %v4119 = vpack.c.bf16 %v4103, %v4103
    %v4120 = vpack.c.bf16 %v4104, %v4104
    %v4121 = vpack.c.bf16 %v4105, %v4105
    %v4122 = vpack.c.bf16 %v4106, %v4106
    %v4123 = vpack.c.bf16 %v4107, %v4107
    %v4124 = vpack.c.bf16 %v4108, %v4108
    %v4125 = vpack.c.bf16 %v4109, %v4109
    %v4126 = vpack.c.bf16 %v4110, %v4110
    %v4127 = vpack.c.bf16 %v4111, %v4111
    %v4128 = vpack.c.bf16 %v4112, %v4112
    %v4129 = vpack.c.bf16 %v4113, %v4113
    %v4130 = vpack.c.bf16 %v4114, %v4114
    %v4147 = vcombine.low %v4115, %v4116
    %v4148 = vcombine.low %v4117, %v4118
    %v4149 = vcombine.low %v4119, %v4120
    %v4150 = vcombine.low %v4121, %v4122
    %v4152 = vunpack.c.l.s4 1966171168
    %v4153 = vunpack.c.0.s8 %v4152
    %v4154 = vlaneseq
    %v4155 = vshrl.u32 %v4154, 7
    %v4156 = vsub.s32 %v4153, %v4155
    %v4157 = vrot.slane %v4147, %v4156
    %v4159 = vunpack.c.l.s4 1966171168
    %v4160 = vunpack.c.0.s8 %v4159
    %v4161 = vlaneseq
    %v4162 = vshrl.u32 %v4161, 7
    %v4163 = vsub.s32 %v4160, %v4162
    %v4164 = vrot.slane %v4148, %v4163
    %v4166 = vunpack.c.l.s4 1966171168
    %v4167 = vunpack.c.0.s8 %v4166
    %v4168 = vlaneseq
    %v4169 = vshrl.u32 %v4168, 7
    %v4170 = vsub.s32 %v4167, %v4169
    %v4171 = vrot.slane %v4149, %v4170
    %v4173 = vunpack.c.l.s4 1966171168
    %v4174 = vunpack.c.0.s8 %v4173
    %v4175 = vlaneseq
    %v4176 = vshrl.u32 %v4175, 7
    %v4177 = vsub.s32 %v4174, %v4176
    %v4178 = vrot.slane %v4150, %v4177
    %v4179 = vcombine.low %v4157, %v4164
    %v4180 = vcombine.low %v4171, %v4178
    %v4182 = vunpack.c.l.s4 1966171168
    %v4183 = vunpack.c.0.s8 %v4182
    %v4184 = vlaneseq
    %v4185 = vshrl.u32 %v4184, 7
    %v4186 = vsub.s32 %v4183, %v4185
    %v4187 = vrot.slane %v4179, %v4186
    %v4189 = vunpack.c.l.s4 1966171168
    %v4190 = vunpack.c.0.s8 %v4189
    %v4191 = vlaneseq
    %v4192 = vshrl.u32 %v4191, 7
    %v4193 = vsub.s32 %v4190, %v4192
    %v4194 = vrot.slane %v4180, %v4193
    %v4195 = vcombine.low %v4187, %v4194
    %v4196 = vcombine.low %v4123, %v4124
    %v4197 = vcombine.low %v4125, %v4126
    %v4198 = vcombine.low %v4127, %v4128
    %v4199 = vcombine.low %v4129, %v4130
    %v4201 = vunpack.c.l.s4 1966171168
    %v4202 = vunpack.c.0.s8 %v4201
    %v4203 = vlaneseq
    %v4204 = vshrl.u32 %v4203, 7
    %v4205 = vsub.s32 %v4202, %v4204
    %v4206 = vrot.slane %v4196, %v4205
    %v4208 = vunpack.c.l.s4 1966171168
    %v4209 = vunpack.c.0.s8 %v4208
    %v4210 = vlaneseq
    %v4211 = vshrl.u32 %v4210, 7
    %v4212 = vsub.s32 %v4209, %v4211
    %v4213 = vrot.slane %v4197, %v4212
    %v4215 = vunpack.c.l.s4 1966171168
    %v4216 = vunpack.c.0.s8 %v4215
    %v4217 = vlaneseq
    %v4218 = vshrl.u32 %v4217, 7
    %v4219 = vsub.s32 %v4216, %v4218
    %v4220 = vrot.slane %v4198, %v4219
    %v4222 = vunpack.c.l.s4 1966171168
    %v4223 = vunpack.c.0.s8 %v4222
    %v4224 = vlaneseq
    %v4225 = vshrl.u32 %v4224, 7
    %v4226 = vsub.s32 %v4223, %v4225
    %v4227 = vrot.slane %v4199, %v4226
    %v4228 = vcombine.low %v4206, %v4213
    %v4229 = vcombine.low %v4220, %v4227
    %v4231 = vunpack.c.l.s4 1966171168
    %v4232 = vunpack.c.0.s8 %v4231
    %v4233 = vlaneseq
    %v4234 = vshrl.u32 %v4233, 7
    %v4235 = vsub.s32 %v4232, %v4234
    %v4236 = vrot.slane %v4228, %v4235
    %v4238 = vunpack.c.l.s4 1966171168
    %v4239 = vunpack.c.0.s8 %v4238
    %v4240 = vlaneseq
    %v4241 = vshrl.u32 %v4240, 7
    %v4242 = vsub.s32 %v4239, %v4241
    %v4243 = vrot.slane %v4229, %v4242
    %v4244 = vcombine.low %v4236, %v4243
    %vm4247 = vcmask 1040384
    %vm4248 = vsmask.f32 256
    %vm4249 = vmand %vm4247, %vm4248
    %vm4250 = vcmask 1041409
    %vm4251 = vsmask.f32 1280
    %vm4252 = vmand %vm4250, %vm4251
    %vm4253 = vmor %vm4252, %vm4249
    %vm4254 = vcmask 1042434
    %vm4255 = vsmask.f32 2304
    %vm4256 = vmand %vm4254, %vm4255
    %vm4257 = vmor %vm4256, %vm4253
    %vm4258 = vcmask 1043459
    %vm4259 = vsmask.f32 3328
    %vm4260 = vmand %vm4258, %vm4259
    %vm4261 = vmor %vm4260, %vm4257
    %vm4262 = vcmask 1044484
    %vm4263 = vsmask.f32 4352
    %vm4264 = vmand %vm4262, %vm4263
    %vm4265 = vmor %vm4264, %vm4261
    %vm4266 = vcmask 1045509
    %vm4267 = vsmask.f32 5376
    %vm4268 = vmand %vm4266, %vm4267
    %vm4269 = vmor %vm4268, %vm4265
    %vm4270 = vcmask 1046534
    %vm4271 = vsmask.f32 6400
    %vm4272 = vmand %vm4270, %vm4271
    %vm4273 = vmor %vm4272, %vm4269
    %vm4274 = vcmask 1047559
    %vm4275 = vsmask.f32 7424
    %vm4276 = vmand %vm4274, %vm4275
    %vm4277 = vmor %vm4276, %vm4273
    %v4278 = vld [vmem:[#allocation11] sm:$0xff]
    %v4279 = vsel %vm4277, %v4195, %v4278
    %4280 = vst [vmem:[#allocation11] sm:$0xff] %v4279
    %v4281 = vld [vmem:[#allocation11 + $0x8] sm:$0xff]
    %v4282 = vsel %vm4277, %v4244, %v4281
    %4283 = vst [vmem:[#allocation11 + $0x8] sm:$0xff] %v4282
    // Predicated region
    $region58: #{tpu_custom_call.1} parent=1 // pred_check
      _
    $region59: #{tpu_custom_call.1} parent=1 // pred_check_branch
      %4285 = sbr.rel (0) target = $region61
    $region60: #{tpu_custom_call.1} parent=1 // pred_region
      %s4287 = ssub.s32 256, 256
      %4288 = vsyncadd [#allocation4], %s4287
      %s4290 = sshll.u32 [#allocation11], 4
      %s4291 = int_to_ptr.vmem [resolvable:$true] %s4290
      %4293 = dma.vmem_to_hbm [thread:$0]  %s4291, 256, %s9, [#allocation4]
    $region61: #{tpu_custom_call.1} parent=1 // pred_fallthru
      _
    // Predicated region
    $region62: #{tpu_custom_call.1} parent=1 // pred_check
      _
    $region63: #{tpu_custom_call.1} parent=1 // pred_check_branch
      %4295 = sbr.rel (0) target = $region65
    $region64: #{tpu_custom_call.1} parent=1 // pred_region
      %4296 = dma.done [#allocation4], 256
    $region65: #{tpu_custom_call.1} parent=1 // pred_fallthru
      _
    %4297 = vsyncpa [#allocation3], 1
    %4298 = vsyncpa [#allocation6], 1
    %4299 = vsyncpa [#allocation9], 1
    %4300 = vsyncpa [#allocation4], 1

</llo_original>
